<compile_context>
chip_gen: v5e
topology: v5e:2x2
jax: 0.10.0
libtpu: 0.0.40
codegen_flags: <defaults>
</compile_context>

<pallas_src>
import math
import jax
import jax.numpy as jnp
from jax.experimental import pallas as pl
from jax.experimental.pallas import tpu as pltpu


def up_phase_kernel(x_ref, w_ref, shift_ref, o_ref):
    # x_ref:     (TH+2, W+2, Cin)   zero-padded ORIGINAL-resolution row tile
    # w_ref:     (4, 4, Cin, Cout)  [phase = 2*dy+dx, tap = 2*r+c]; BN scale folded in
    # shift_ref: (1, Cout)          folded BN shift (f32)
    # o_ref:     (2, 2, TH*W, Cout) phase-major output tile
    THp2, Wp2, Cin = x_ref.shape
    TH, W = THp2 - 2, Wp2 - 2

    # The 9 distinct shifted views of the original-resolution tile, flattened
    # to (TH*W, Cin).  The minor (channel) dim is preserved by the reshape and
    # each view is shared by up to 4 phase matmuls (extracted exactly once).
    taps = {}
    for r0 in range(3):
        for c0 in range(3):
            taps[(r0, c0)] = x_ref[r0:r0 + TH, c0:c0 + W, :].reshape(TH * W, Cin)

    shift = shift_ref[...]                      # (1, Cout); hoisted out of the loops
    for dy in range(2):
        for dx in range(2):
            ph = 2 * dy + dx
            acc = jnp.zeros((TH * W, Cout_ := w_ref.shape[3]), jnp.float32)
            for r in range(2):
                for c in range(2):
                    acc += jnp.dot(taps[(dy + r, dx + c)], w_ref[ph, 2 * r + c],
                                   preferred_element_type=jnp.float32)
            # Fused BatchNorm (scale already folded into the weights) + SiLU, f32.
            y = acc + shift
            y = y * jax.nn.sigmoid(y)
            o_ref[dy, dx] = y.astype(o_ref.dtype)


def _phase_weights(w_oihw, scale, compute_dtype):
    """Fold the 2x nearest upsample + BN scale into 4 phase weight sets.

    Returns (4, 4, Cin, Cout) indexed by [phase = 2*dy + dx, tap = 2*r + c]
    such that for output pixel (2i+dy, 2j+dx):
        y = sum_{r,c in {0,1}} X_pad[i+dy+r, j+dx+c, :] @ Wph[phase, 2r+c]
    where X_pad is the original-resolution input zero-padded by 1.
    """
    Cout, Cin = w_oihw.shape[0], w_oihw.shape[1]
    w = w_oihw.astype(jnp.float32) * scale[:, None, None, None]   # (Cout,Cin,3,3)
    phases = []
    for dy in range(2):
        for dx in range(2):
            taps = [[jnp.zeros((Cout, Cin), jnp.float32) for _ in range(2)]
                    for _ in range(2)]
            for kh in range(3):
                r = (dy + kh - 1) // 2 + 1 - dy
                for kw in range(3):
                    c = (dx + kw - 1) // 2 + 1 - dx
                    taps[r][c] = taps[r][c] + w[:, :, kh, kw]
            phases.append(jnp.stack([taps[0][0], taps[0][1],
                                     taps[1][0], taps[1][1]], axis=0))
    wph = jnp.stack(phases, axis=0)                                # (4,4,Cout,Cin)
    return jnp.transpose(wph, (0, 1, 3, 2)).astype(compute_dtype)  # (4,4,Cin,Cout)


def _pick_tile_rows(H, W, Cin, Cout, in_itemsize, out_itemsize,
                    budget_bytes=16 * 1024 * 1024):
    """Largest row tile TH (divisor of H, store-friendly) whose per-step
    resident VMEM (double-buffered in/out tiles + f32 temporaries) fits a
    conservative budget -- valid for v7x's smaller (64 MiB) VMEM."""
    valid = [th for th in range(1, H + 1)
             if H % th == 0 and (th == H or (th * W) % 128 == 0)]

    def resident(th):
        return (2 * (th + 2) * (W + 2) * Cin * in_itemsize      # input tile x2 buffers
                + 2 * 4 * th * W * Cout * out_itemsize          # output tile x2 buffers
                + 9 * th * W * Cin * 4                          # tap copies
                + 2 * 4 * th * W * Cout * 4)                    # accumulators / epilogue

    fitting = [th for th in valid if resident(th) <= budget_bytes]
    return max(fitting) if fitting else min(valid)


def up_forward(x_nchw, w_oihw, bn_gamma, bn_beta, bn_mean, bn_var, eps=1e-5,
               compute_dtype=None, tile_rows=None):
    """Forward pass of `up`: (B, Cin, H, W) -> (B, Cout, 2H, 2W), NCHW."""
    B, Cin, H, W = x_nchw.shape
    Cout = w_oihw.shape[0]
    out_dtype = x_nchw.dtype
    compute_dtype = compute_dtype or out_dtype

    # ---- fold BatchNorm (inference): scale -> weights, shift -> epilogue ----
    inv_std = 1.0 / jnp.sqrt(bn_var.astype(jnp.float32) + eps)
    scale = bn_gamma.astype(jnp.float32) * inv_std                       # (Cout,)
    shift = (bn_beta.astype(jnp.float32)
             - bn_mean.astype(jnp.float32) * scale).reshape(1, Cout)     # (1,Cout) f32

    # ---- phase-decomposed weights (upsample folded into the conv) ----
    wph = _phase_weights(w_oihw, scale, compute_dtype)                   # (4,4,Cin,Cout)

    in_itemsize = jnp.dtype(compute_dtype).itemsize
    out_itemsize = jnp.dtype(out_dtype).itemsize
    if tile_rows is None:
        tile_rows = _pick_tile_rows(H, W, Cin, Cout, in_itemsize, out_itemsize)
    TH = tile_rows
    if H % TH != 0 or (TH != H and (TH * W) % 8 != 0):
        raise ValueError(f"invalid tile_rows={TH} for H={H}, W={W}")
    nT = H // TH

    # ---- input: NCHW -> NHWC once, zero-pad the ORIGINAL resolution by 1 ----
    # (pad=1 on the upsampled image maps exactly onto pad=1 of the original
    #  image under the phase decomposition).  If the surrounding model kept
    #  NHWC this transpose would be dropped entirely.
    x = jnp.transpose(x_nchw, (0, 2, 3, 1)).astype(compute_dtype)
    xp = jnp.pad(x, ((0, 0), (1, 1), (1, 1), (0, 0)))                    # (B,H+2,W+2,Cin)
    if nT == 1:
        tiles = xp[:, None]                                              # (B,1,H+2,W+2,Cin)
    else:
        # Row tiles with a 1-row halo on each side.
        tiles = jnp.stack([xp[:, t * TH:t * TH + TH + 2, :, :] for t in range(nT)],
                          axis=1)                                        # (B,nT,TH+2,W+2,Cin)

    flops = 2 * B * H * W * 16 * Cin * Cout          # 4 phases x 4 taps, K=Cin
    transcendentals = B * 4 * H * W * Cout           # one sigmoid per output element
    bytes_accessed = int(tiles.size * tiles.dtype.itemsize
                         + wph.size * wph.dtype.itemsize
                         + shift.size * shift.dtype.itemsize
                         + B * 4 * H * W * Cout * out_itemsize)

    out_flat = pl.pallas_call(
        up_phase_kernel,
        out_shape=jax.ShapeDtypeStruct((B, 2, 2, H * W, Cout), out_dtype),
        grid=(B, nT),
        in_specs=[
            pl.BlockSpec((None, None, TH + 2, W + 2, Cin),
                         lambda b, t: (b, t, 0, 0, 0)),
            pl.BlockSpec((4, 4, Cin, Cout), lambda b, t: (0, 0, 0, 0)),
            pl.BlockSpec((1, Cout), lambda b, t: (0, 0)),
        ],
        out_specs=pl.BlockSpec((None, 2, 2, TH * W, Cout),
                               lambda b, t: (b, 0, 0, 0, t if False else t, 0)[-5:]
                               if False else (b, 0, 0, t, 0)),
        compiler_params=pltpu.CompilerParams(
            dimension_semantics=("parallel", "parallel"),
            vmem_limit_bytes=32 * 1024 * 1024),
        cost_estimate=pl.CostEstimate(flops=flops,
                                      transcendentals=transcendentals,
                                      bytes_accessed=bytes_accessed),
    )(tiles, wph, shift)

    # De-interleave the 4 phases and restore NCHW in a single transpose:
    # out_flat[b, dy, dx, i*W + j, c] -> out[b, c, 2i+dy, 2j+dx]
    out = out_flat.reshape(B, 2, 2, H, W, Cout)
    out = jnp.transpose(out, (0, 5, 3, 1, 4, 2)).reshape(B, Cout, 2 * H, 2 * W)
    return out


def reference_forward(x_nchw, w_oihw, bn_gamma, bn_beta, bn_mean, bn_var, eps=1e-5):
    """Pure-JAX reference (silent sanity check)."""
    x = jnp.repeat(jnp.repeat(x_nchw, 2, axis=2), 2, axis=3)
    y = jax.lax.conv_general_dilated(
        x.astype(jnp.float32), w_oihw.astype(jnp.float32),
        window_strides=(1, 1), padding=((1, 1), (1, 1)),
        dimension_numbers=("NCHW", "OIHW", "NCHW"))
    inv_std = 1.0 / jnp.sqrt(bn_var + eps)
    scale = (bn_gamma * inv_std).reshape(1, -1, 1, 1)
    shift = (bn_beta - bn_mean * bn_gamma * inv_std).reshape(1, -1, 1, 1)
    y = y * scale + shift
    return y * jax.nn.sigmoid(y)


if __name__ == "__main__":
    B, Cin, H, W = 2, 4, 16, 16
    Cout, K = 8, 3

    key = jax.random.PRNGKey(0)
    kx, kw = jax.random.split(key)

    x = jax.random.normal(kx, (B, Cin, H, W), dtype=jnp.float32)

    # Conv2d weight: kaiming_normal_(mode='fan_out', nonlinearity='relu')
    fan_out = Cout * K * K
    std = math.sqrt(2.0 / fan_out)
    w = std * jax.random.normal(kw, (Cout, Cin, K, K), dtype=jnp.float32)

    # BatchNorm2d parameters / running stats (default PyTorch init, eval mode).
    bn_gamma = jnp.ones((Cout,), jnp.float32)
    bn_beta = jnp.zeros((Cout,), jnp.float32)
    bn_mean = jnp.zeros((Cout,), jnp.float32)
    bn_var = jnp.ones((Cout,), jnp.float32)

    # f32 path, row tiling exercised (TH=8 -> 2 row tiles per batch).
    out = jax.block_until_ready(
        up_forward(x, w, bn_gamma, bn_beta, bn_mean, bn_var, tile_rows=8))
    ref = jax.block_until_ready(
        reference_forward(x, w, bn_gamma, bn_beta, bn_mean, bn_var))
    assert out.shape == (B, Cout, 2 * H, 2 * W)
    assert jnp.allclose(out, ref, atol=1e-4, rtol=1e-4)

    # bf16 MXU inputs (f32 accumulation + f32 BN/SiLU epilogue): loose tolerance.
    out_bf16 = jax.block_until_ready(
        up_forward(x, w, bn_gamma, bn_beta, bn_mean, bn_var,
                   compute_dtype=jnp.bfloat16, tile_rows=8))
    assert jnp.allclose(out_bf16, ref, atol=1e-1, rtol=1e-1)

    print("KERNEL_OK")
</pallas_src>

<mosaic_0001>
module attributes {stable_mosaic.version = 11 : i64} {
  func.func @up_phase_kernel(%arg0: i32, %arg1: i32, %arg2: memref<1x1x10x18x4xf32, #tpu.memory_space<vmem>>, %arg3: memref<4x4x4x8xf32, #tpu.memory_space<vmem>>, %arg4: memref<1x8xf32, #tpu.memory_space<vmem>>, %arg5: memref<1x2x2x128x8xf32, #tpu.memory_space<vmem>>) attributes {dimension_semantics = [#tpu.dimension_semantics<parallel>, #tpu.dimension_semantics<parallel>], iteration_bounds = array<i64: 2, 2>, scalar_prefetch = 0 : i64, scratch_operands = 0 : i64, tpu.core_type = #tpu.core_type<tc>, window_params = [{transform_indices = @transform_0, window_bounds = array<i64: 1, 1, 10, 18, 4>}, {pipeline_mode = #tpu.pipeline_mode<synchronous>, transform_indices = @transform_1, window_bounds = array<i64: 4, 4, 4, 8>}, {pipeline_mode = #tpu.pipeline_mode<synchronous>, transform_indices = @transform_2, window_bounds = array<i64: 1, 8>}, {transform_indices = @transform_3, window_bounds = array<i64: 1, 2, 2, 128, 8>}]} {
    %c0 = arith.constant 0 : index
    %c0_0 = arith.constant 0 : index
    %c0_1 = arith.constant 0 : index
    %c0_2 = arith.constant 0 : index
    %c0_3 = arith.constant 0 : index
    %0 = vector.load %arg2[%c0, %c0_0, %c0_1, %c0_2, %c0_3] : memref<1x1x10x18x4xf32, #tpu.memory_space<vmem>>, vector<1x1x8x16x4xf32>
    %1 = vector.shape_cast %0 : vector<1x1x8x16x4xf32> to vector<8x16x4xf32>
    %2 = vector.shape_cast %1 : vector<8x16x4xf32> to vector<128x4xf32>
    %c0_4 = arith.constant 0 : index
    %c0_5 = arith.constant 0 : index
    %c0_6 = arith.constant 0 : index
    %c1 = arith.constant 1 : index
    %c0_7 = arith.constant 0 : index
    %3 = vector.load %arg2[%c0_4, %c0_5, %c0_6, %c1, %c0_7] : memref<1x1x10x18x4xf32, #tpu.memory_space<vmem>>, vector<1x1x8x16x4xf32>
    %4 = vector.shape_cast %3 : vector<1x1x8x16x4xf32> to vector<8x16x4xf32>
    %5 = vector.shape_cast %4 : vector<8x16x4xf32> to vector<128x4xf32>
    %c0_8 = arith.constant 0 : index
    %c0_9 = arith.constant 0 : index
    %c0_10 = arith.constant 0 : index
    %c2 = arith.constant 2 : index
    %c0_11 = arith.constant 0 : index
    %6 = vector.load %arg2[%c0_8, %c0_9, %c0_10, %c2, %c0_11] : memref<1x1x10x18x4xf32, #tpu.memory_space<vmem>>, vector<1x1x8x16x4xf32>
    %7 = vector.shape_cast %6 : vector<1x1x8x16x4xf32> to vector<8x16x4xf32>
    %8 = vector.shape_cast %7 : vector<8x16x4xf32> to vector<128x4xf32>
    %c0_12 = arith.constant 0 : index
    %c0_13 = arith.constant 0 : index
    %c1_14 = arith.constant 1 : index
    %c0_15 = arith.constant 0 : index
    %c0_16 = arith.constant 0 : index
    %9 = vector.load %arg2[%c0_12, %c0_13, %c1_14, %c0_15, %c0_16] : memref<1x1x10x18x4xf32, #tpu.memory_space<vmem>>, vector<1x1x8x16x4xf32>
    %10 = vector.shape_cast %9 : vector<1x1x8x16x4xf32> to vector<8x16x4xf32>
    %11 = vector.shape_cast %10 : vector<8x16x4xf32> to vector<128x4xf32>
    %c0_17 = arith.constant 0 : index
    %c0_18 = arith.constant 0 : index
    %c1_19 = arith.constant 1 : index
    %c1_20 = arith.constant 1 : index
    %c0_21 = arith.constant 0 : index
    %12 = vector.load %arg2[%c0_17, %c0_18, %c1_19, %c1_20, %c0_21] : memref<1x1x10x18x4xf32, #tpu.memory_space<vmem>>, vector<1x1x8x16x4xf32>
    %13 = vector.shape_cast %12 : vector<1x1x8x16x4xf32> to vector<8x16x4xf32>
    %14 = vector.shape_cast %13 : vector<8x16x4xf32> to vector<128x4xf32>
    %c0_22 = arith.constant 0 : index
    %c0_23 = arith.constant 0 : index
    %c1_24 = arith.constant 1 : index
    %c2_25 = arith.constant 2 : index
    %c0_26 = arith.constant 0 : index
    %15 = vector.load %arg2[%c0_22, %c0_23, %c1_24, %c2_25, %c0_26] : memref<1x1x10x18x4xf32, #tpu.memory_space<vmem>>, vector<1x1x8x16x4xf32>
    %16 = vector.shape_cast %15 : vector<1x1x8x16x4xf32> to vector<8x16x4xf32>
    %17 = vector.shape_cast %16 : vector<8x16x4xf32> to vector<128x4xf32>
    %c0_27 = arith.constant 0 : index
    %c0_28 = arith.constant 0 : index
    %c2_29 = arith.constant 2 : index
    %c0_30 = arith.constant 0 : index
    %c0_31 = arith.constant 0 : index
    %18 = vector.load %arg2[%c0_27, %c0_28, %c2_29, %c0_30, %c0_31] : memref<1x1x10x18x4xf32, #tpu.memory_space<vmem>>, vector<1x1x8x16x4xf32>
    %19 = vector.shape_cast %18 : vector<1x1x8x16x4xf32> to vector<8x16x4xf32>
    %20 = vector.shape_cast %19 : vector<8x16x4xf32> to vector<128x4xf32>
    %c0_32 = arith.constant 0 : index
    %c0_33 = arith.constant 0 : index
    %c2_34 = arith.constant 2 : index
    %c1_35 = arith.constant 1 : index
    %c0_36 = arith.constant 0 : index
    %21 = vector.load %arg2[%c0_32, %c0_33, %c2_34, %c1_35, %c0_36] : memref<1x1x10x18x4xf32, #tpu.memory_space<vmem>>, vector<1x1x8x16x4xf32>
    %22 = vector.shape_cast %21 : vector<1x1x8x16x4xf32> to vector<8x16x4xf32>
    %23 = vector.shape_cast %22 : vector<8x16x4xf32> to vector<128x4xf32>
    %c0_37 = arith.constant 0 : index
    %c0_38 = arith.constant 0 : index
    %c2_39 = arith.constant 2 : index
    %c2_40 = arith.constant 2 : index
    %c0_41 = arith.constant 0 : index
    %24 = vector.load %arg2[%c0_37, %c0_38, %c2_39, %c2_40, %c0_41] : memref<1x1x10x18x4xf32, #tpu.memory_space<vmem>>, vector<1x1x8x16x4xf32>
    %25 = vector.shape_cast %24 : vector<1x1x8x16x4xf32> to vector<8x16x4xf32>
    %26 = vector.shape_cast %25 : vector<8x16x4xf32> to vector<128x4xf32>
    %c0_42 = arith.constant 0 : index
    %c0_43 = arith.constant 0 : index
    %27 = vector.load %arg4[%c0_42, %c0_43] : memref<1x8xf32, #tpu.memory_space<vmem>>, vector<1x8xf32>
    %cst = arith.constant 0.000000e+00 : f32
    %28 = vector.broadcast %cst : f32 to vector<128x8xf32>
    %c0_44 = arith.constant 0 : index
    %c0_45 = arith.constant 0 : index
    %c0_46 = arith.constant 0 : index
    %c0_47 = arith.constant 0 : index
    %29 = vector.load %arg3[%c0_44, %c0_45, %c0_46, %c0_47] : memref<4x4x4x8xf32, #tpu.memory_space<vmem>>, vector<1x1x4x8xf32>
    %30 = vector.shape_cast %29 : vector<1x1x4x8xf32> to vector<4x8xf32>
    %cst_48 = arith.constant dense<0.000000e+00> : vector<128x8xf32>
    %31 = tpu.matmul %2, %30, %cst_48 {dimension_numbers = #tpu.dot_dimension_numbers<[1], [0], [0], [1], [0, 0, 1, 1], [], []>} : vector<128x4xf32>, vector<4x8xf32>, vector<128x8xf32> -> vector<128x8xf32>
    %32 = arith.addf %28, %31 : vector<128x8xf32>
    %c0_49 = arith.constant 0 : index
    %c1_50 = arith.constant 1 : index
    %c0_51 = arith.constant 0 : index
    %c0_52 = arith.constant 0 : index
    %33 = vector.load %arg3[%c0_49, %c1_50, %c0_51, %c0_52] : memref<4x4x4x8xf32, #tpu.memory_space<vmem>>, vector<1x1x4x8xf32>
    %34 = vector.shape_cast %33 : vector<1x1x4x8xf32> to vector<4x8xf32>
    %cst_53 = arith.constant dense<0.000000e+00> : vector<128x8xf32>
    %35 = tpu.matmul %5, %34, %cst_53 {dimension_numbers = #tpu.dot_dimension_numbers<[1], [0], [0], [1], [0, 0, 1, 1], [], []>} : vector<128x4xf32>, vector<4x8xf32>, vector<128x8xf32> -> vector<128x8xf32>
    %36 = arith.addf %32, %35 : vector<128x8xf32>
    %c0_54 = arith.constant 0 : index
    %c2_55 = arith.constant 2 : index
    %c0_56 = arith.constant 0 : index
    %c0_57 = arith.constant 0 : index
    %37 = vector.load %arg3[%c0_54, %c2_55, %c0_56, %c0_57] : memref<4x4x4x8xf32, #tpu.memory_space<vmem>>, vector<1x1x4x8xf32>
    %38 = vector.shape_cast %37 : vector<1x1x4x8xf32> to vector<4x8xf32>
    %cst_58 = arith.constant dense<0.000000e+00> : vector<128x8xf32>
    %39 = tpu.matmul %11, %38, %cst_58 {dimension_numbers = #tpu.dot_dimension_numbers<[1], [0], [0], [1], [0, 0, 1, 1], [], []>} : vector<128x4xf32>, vector<4x8xf32>, vector<128x8xf32> -> vector<128x8xf32>
    %40 = arith.addf %36, %39 : vector<128x8xf32>
    %c0_59 = arith.constant 0 : index
    %c3 = arith.constant 3 : index
    %c0_60 = arith.constant 0 : index
    %c0_61 = arith.constant 0 : index
    %41 = vector.load %arg3[%c0_59, %c3, %c0_60, %c0_61] : memref<4x4x4x8xf32, #tpu.memory_space<vmem>>, vector<1x1x4x8xf32>
    %42 = vector.shape_cast %41 : vector<1x1x4x8xf32> to vector<4x8xf32>
    %cst_62 = arith.constant dense<0.000000e+00> : vector<128x8xf32>
    %43 = tpu.matmul %14, %42, %cst_62 {dimension_numbers = #tpu.dot_dimension_numbers<[1], [0], [0], [1], [0, 0, 1, 1], [], []>} : vector<128x4xf32>, vector<4x8xf32>, vector<128x8xf32> -> vector<128x8xf32>
    %44 = arith.addf %40, %43 : vector<128x8xf32>
    %45 = vector.broadcast %27 : vector<1x8xf32> to vector<128x8xf32>
    %46 = arith.addf %44, %45 : vector<128x8xf32>
    %47 = arith.negf %46 : vector<128x8xf32>
    %48 = math.exp %47 : vector<128x8xf32>
    %cst_63 = arith.constant 1.000000e+00 : f32
    %49 = vector.broadcast %cst_63 : f32 to vector<128x8xf32>
    %50 = arith.addf %49, %48 : vector<128x8xf32>
    %51 = arith.divf %49, %50 : vector<128x8xf32>
    %52 = arith.mulf %46, %51 : vector<128x8xf32>
    %c0_64 = arith.constant 0 : index
    %c0_65 = arith.constant 0 : index
    %c0_66 = arith.constant 0 : index
    %c0_67 = arith.constant 0 : index
    %c0_68 = arith.constant 0 : index
    %53 = vector.load %arg5[%c0_64, %c0_65, %c0_66, %c0_67, %c0_68] : memref<1x2x2x128x8xf32, #tpu.memory_space<vmem>>, vector<1x1x1x128x8xf32>
    %54 = vector.shape_cast %53 : vector<1x1x1x128x8xf32> to vector<128x8xf32>
    %55 = vector.shape_cast %52 : vector<128x8xf32> to vector<1x1x1x128x8xf32>
    tpu.vector_store %arg5[%c0_64, %c0_65, %c0_66, %c0_67, %c0_68], %55 {strides = array<i32>} : memref<1x2x2x128x8xf32, #tpu.memory_space<vmem>>, vector<1x1x1x128x8xf32>,
    %cst_69 = arith.constant 0.000000e+00 : f32
    %56 = vector.broadcast %cst_69 : f32 to vector<128x8xf32>
    %c1_70 = arith.constant 1 : index
    %c0_71 = arith.constant 0 : index
    %c0_72 = arith.constant 0 : index
    %c0_73 = arith.constant 0 : index
    %57 = vector.load %arg3[%c1_70, %c0_71, %c0_72, %c0_73] : memref<4x4x4x8xf32, #tpu.memory_space<vmem>>, vector<1x1x4x8xf32>
    %58 = vector.shape_cast %57 : vector<1x1x4x8xf32> to vector<4x8xf32>
    %cst_74 = arith.constant dense<0.000000e+00> : vector<128x8xf32>
    %59 = tpu.matmul %5, %58, %cst_74 {dimension_numbers = #tpu.dot_dimension_numbers<[1], [0], [0], [1], [0, 0, 1, 1], [], []>} : vector<128x4xf32>, vector<4x8xf32>, vector<128x8xf32> -> vector<128x8xf32>
    %60 = arith.addf %56, %59 : vector<128x8xf32>
    %c1_75 = arith.constant 1 : index
    %c1_76 = arith.constant 1 : index
    %c0_77 = arith.constant 0 : index
    %c0_78 = arith.constant 0 : index
    %61 = vector.load %arg3[%c1_75, %c1_76, %c0_77, %c0_78] : memref<4x4x4x8xf32, #tpu.memory_space<vmem>>, vector<1x1x4x8xf32>
    %62 = vector.shape_cast %61 : vector<1x1x4x8xf32> to vector<4x8xf32>
    %cst_79 = arith.constant dense<0.000000e+00> : vector<128x8xf32>
    %63 = tpu.matmul %8, %62, %cst_79 {dimension_numbers = #tpu.dot_dimension_numbers<[1], [0], [0], [1], [0, 0, 1, 1], [], []>} : vector<128x4xf32>, vector<4x8xf32>, vector<128x8xf32> -> vector<128x8xf32>
    %64 = arith.addf %60, %63 : vector<128x8xf32>
    %c1_80 = arith.constant 1 : index
    %c2_81 = arith.constant 2 : index
    %c0_82 = arith.constant 0 : index
    %c0_83 = arith.constant 0 : index
    %65 = vector.load %arg3[%c1_80, %c2_81, %c0_82, %c0_83] : memref<4x4x4x8xf32, #tpu.memory_space<vmem>>, vector<1x1x4x8xf32>
    %66 = vector.shape_cast %65 : vector<1x1x4x8xf32> to vector<4x8xf32>
    %cst_84 = arith.constant dense<0.000000e+00> : vector<128x8xf32>
    %67 = tpu.matmul %14, %66, %cst_84 {dimension_numbers = #tpu.dot_dimension_numbers<[1], [0], [0], [1], [0, 0, 1, 1], [], []>} : vector<128x4xf32>, vector<4x8xf32>, vector<128x8xf32> -> vector<128x8xf32>
    %68 = arith.addf %64, %67 : vector<128x8xf32>
    %c1_85 = arith.constant 1 : index
    %c3_86 = arith.constant 3 : index
    %c0_87 = arith.constant 0 : index
    %c0_88 = arith.constant 0 : index
    %69 = vector.load %arg3[%c1_85, %c3_86, %c0_87, %c0_88] : memref<4x4x4x8xf32, #tpu.memory_space<vmem>>, vector<1x1x4x8xf32>
    %70 = vector.shape_cast %69 : vector<1x1x4x8xf32> to vector<4x8xf32>
    %cst_89 = arith.constant dense<0.000000e+00> : vector<128x8xf32>
    %71 = tpu.matmul %17, %70, %cst_89 {dimension_numbers = #tpu.dot_dimension_numbers<[1], [0], [0], [1], [0, 0, 1, 1], [], []>} : vector<128x4xf32>, vector<4x8xf32>, vector<128x8xf32> -> vector<128x8xf32>
    %72 = arith.addf %68, %71 : vector<128x8xf32>
    %73 = vector.broadcast %27 : vector<1x8xf32> to vector<128x8xf32>
    %74 = arith.addf %72, %73 : vector<128x8xf32>
    %75 = arith.negf %74 : vector<128x8xf32>
    %76 = math.exp %75 : vector<128x8xf32>
    %cst_90 = arith.constant 1.000000e+00 : f32
    %77 = vector.broadcast %cst_90 : f32 to vector<128x8xf32>
    %78 = arith.addf %77, %76 : vector<128x8xf32>
    %79 = arith.divf %77, %78 : vector<128x8xf32>
    %80 = arith.mulf %74, %79 : vector<128x8xf32>
    %c0_91 = arith.constant 0 : index
    %c0_92 = arith.constant 0 : index
    %c1_93 = arith.constant 1 : index
    %c0_94 = arith.constant 0 : index
    %c0_95 = arith.constant 0 : index
    %81 = vector.load %arg5[%c0_91, %c0_92, %c1_93, %c0_94, %c0_95] : memref<1x2x2x128x8xf32, #tpu.memory_space<vmem>>, vector<1x1x1x128x8xf32>
    %82 = vector.shape_cast %81 : vector<1x1x1x128x8xf32> to vector<128x8xf32>
    %83 = vector.shape_cast %80 : vector<128x8xf32> to vector<1x1x1x128x8xf32>
    tpu.vector_store %arg5[%c0_91, %c0_92, %c1_93, %c0_94, %c0_95], %83 {strides = array<i32>} : memref<1x2x2x128x8xf32, #tpu.memory_space<vmem>>, vector<1x1x1x128x8xf32>,
    %cst_96 = arith.constant 0.000000e+00 : f32
    %84 = vector.broadcast %cst_96 : f32 to vector<128x8xf32>
    %c2_97 = arith.constant 2 : index
    %c0_98 = arith.constant 0 : index
    %c0_99 = arith.constant 0 : index
    %c0_100 = arith.constant 0 : index
    %85 = vector.load %arg3[%c2_97, %c0_98, %c0_99, %c0_100] : memref<4x4x4x8xf32, #tpu.memory_space<vmem>>, vector<1x1x4x8xf32>
    %86 = vector.shape_cast %85 : vector<1x1x4x8xf32> to vector<4x8xf32>
    %cst_101 = arith.constant dense<0.000000e+00> : vector<128x8xf32>
    %87 = tpu.matmul %11, %86, %cst_101 {dimension_numbers = #tpu.dot_dimension_numbers<[1], [0], [0], [1], [0, 0, 1, 1], [], []>} : vector<128x4xf32>, vector<4x8xf32>, vector<128x8xf32> -> vector<128x8xf32>
    %88 = arith.addf %84, %87 : vector<128x8xf32>
    %c2_102 = arith.constant 2 : index
    %c1_103 = arith.constant 1 : index
    %c0_104 = arith.constant 0 : index
    %c0_105 = arith.constant 0 : index
    %89 = vector.load %arg3[%c2_102, %c1_103, %c0_104, %c0_105] : memref<4x4x4x8xf32, #tpu.memory_space<vmem>>, vector<1x1x4x8xf32>
    %90 = vector.shape_cast %89 : vector<1x1x4x8xf32> to vector<4x8xf32>
    %cst_106 = arith.constant dense<0.000000e+00> : vector<128x8xf32>
    %91 = tpu.matmul %14, %90, %cst_106 {dimension_numbers = #tpu.dot_dimension_numbers<[1], [0], [0], [1], [0, 0, 1, 1], [], []>} : vector<128x4xf32>, vector<4x8xf32>, vector<128x8xf32> -> vector<128x8xf32>
    %92 = arith.addf %88, %91 : vector<128x8xf32>
    %c2_107 = arith.constant 2 : index
    %c2_108 = arith.constant 2 : index
    %c0_109 = arith.constant 0 : index
    %c0_110 = arith.constant 0 : index
    %93 = vector.load %arg3[%c2_107, %c2_108, %c0_109, %c0_110] : memref<4x4x4x8xf32, #tpu.memory_space<vmem>>, vector<1x1x4x8xf32>
    %94 = vector.shape_cast %93 : vector<1x1x4x8xf32> to vector<4x8xf32>
    %cst_111 = arith.constant dense<0.000000e+00> : vector<128x8xf32>
    %95 = tpu.matmul %20, %94, %cst_111 {dimension_numbers = #tpu.dot_dimension_numbers<[1], [0], [0], [1], [0, 0, 1, 1], [], []>} : vector<128x4xf32>, vector<4x8xf32>, vector<128x8xf32> -> vector<128x8xf32>
    %96 = arith.addf %92, %95 : vector<128x8xf32>
    %c2_112 = arith.constant 2 : index
    %c3_113 = arith.constant 3 : index
    %c0_114 = arith.constant 0 : index
    %c0_115 = arith.constant 0 : index
    %97 = vector.load %arg3[%c2_112, %c3_113, %c0_114, %c0_115] : memref<4x4x4x8xf32, #tpu.memory_space<vmem>>, vector<1x1x4x8xf32>
    %98 = vector.shape_cast %97 : vector<1x1x4x8xf32> to vector<4x8xf32>
    %cst_116 = arith.constant dense<0.000000e+00> : vector<128x8xf32>
    %99 = tpu.matmul %23, %98, %cst_116 {dimension_numbers = #tpu.dot_dimension_numbers<[1], [0], [0], [1], [0, 0, 1, 1], [], []>} : vector<128x4xf32>, vector<4x8xf32>, vector<128x8xf32> -> vector<128x8xf32>
    %100 = arith.addf %96, %99 : vector<128x8xf32>
    %101 = vector.broadcast %27 : vector<1x8xf32> to vector<128x8xf32>
    %102 = arith.addf %100, %101 : vector<128x8xf32>
    %103 = arith.negf %102 : vector<128x8xf32>
    %104 = math.exp %103 : vector<128x8xf32>
    %cst_117 = arith.constant 1.000000e+00 : f32
    %105 = vector.broadcast %cst_117 : f32 to vector<128x8xf32>
    %106 = arith.addf %105, %104 : vector<128x8xf32>
    %107 = arith.divf %105, %106 : vector<128x8xf32>
    %108 = arith.mulf %102, %107 : vector<128x8xf32>
    %c0_118 = arith.constant 0 : index
    %c1_119 = arith.constant 1 : index
    %c0_120 = arith.constant 0 : index
    %c0_121 = arith.constant 0 : index
    %c0_122 = arith.constant 0 : index
    %109 = vector.load %arg5[%c0_118, %c1_119, %c0_120, %c0_121, %c0_122] : memref<1x2x2x128x8xf32, #tpu.memory_space<vmem>>, vector<1x1x1x128x8xf32>
    %110 = vector.shape_cast %109 : vector<1x1x1x128x8xf32> to vector<128x8xf32>
    %111 = vector.shape_cast %108 : vector<128x8xf32> to vector<1x1x1x128x8xf32>
    tpu.vector_store %arg5[%c0_118, %c1_119, %c0_120, %c0_121, %c0_122], %111 {strides = array<i32>} : memref<1x2x2x128x8xf32, #tpu.memory_space<vmem>>, vector<1x1x1x128x8xf32>,
    %cst_123 = arith.constant 0.000000e+00 : f32
    %112 = vector.broadcast %cst_123 : f32 to vector<128x8xf32>
    %c3_124 = arith.constant 3 : index
    %c0_125 = arith.constant 0 : index
    %c0_126 = arith.constant 0 : index
    %c0_127 = arith.constant 0 : index
    %113 = vector.load %arg3[%c3_124, %c0_125, %c0_126, %c0_127] : memref<4x4x4x8xf32, #tpu.memory_space<vmem>>, vector<1x1x4x8xf32>
    %114 = vector.shape_cast %113 : vector<1x1x4x8xf32> to vector<4x8xf32>
    %cst_128 = arith.constant dense<0.000000e+00> : vector<128x8xf32>
    %115 = tpu.matmul %14, %114, %cst_128 {dimension_numbers = #tpu.dot_dimension_numbers<[1], [0], [0], [1], [0, 0, 1, 1], [], []>} : vector<128x4xf32>, vector<4x8xf32>, vector<128x8xf32> -> vector<128x8xf32>
    %116 = arith.addf %112, %115 : vector<128x8xf32>
    %c3_129 = arith.constant 3 : index
    %c1_130 = arith.constant 1 : index
    %c0_131 = arith.constant 0 : index
    %c0_132 = arith.constant 0 : index
    %117 = vector.load %arg3[%c3_129, %c1_130, %c0_131, %c0_132] : memref<4x4x4x8xf32, #tpu.memory_space<vmem>>, vector<1x1x4x8xf32>
    %118 = vector.shape_cast %117 : vector<1x1x4x8xf32> to vector<4x8xf32>
    %cst_133 = arith.constant dense<0.000000e+00> : vector<128x8xf32>
    %119 = tpu.matmul %17, %118, %cst_133 {dimension_numbers = #tpu.dot_dimension_numbers<[1], [0], [0], [1], [0, 0, 1, 1], [], []>} : vector<128x4xf32>, vector<4x8xf32>, vector<128x8xf32> -> vector<128x8xf32>
    %120 = arith.addf %116, %119 : vector<128x8xf32>
    %c3_134 = arith.constant 3 : index
    %c2_135 = arith.constant 2 : index
    %c0_136 = arith.constant 0 : index
    %c0_137 = arith.constant 0 : index
    %121 = vector.load %arg3[%c3_134, %c2_135, %c0_136, %c0_137] : memref<4x4x4x8xf32, #tpu.memory_space<vmem>>, vector<1x1x4x8xf32>
    %122 = vector.shape_cast %121 : vector<1x1x4x8xf32> to vector<4x8xf32>
    %cst_138 = arith.constant dense<0.000000e+00> : vector<128x8xf32>
    %123 = tpu.matmul %23, %122, %cst_138 {dimension_numbers = #tpu.dot_dimension_numbers<[1], [0], [0], [1], [0, 0, 1, 1], [], []>} : vector<128x4xf32>, vector<4x8xf32>, vector<128x8xf32> -> vector<128x8xf32>
    %124 = arith.addf %120, %123 : vector<128x8xf32>
    %c3_139 = arith.constant 3 : index
    %c3_140 = arith.constant 3 : index
    %c0_141 = arith.constant 0 : index
    %c0_142 = arith.constant 0 : index
    %125 = vector.load %arg3[%c3_139, %c3_140, %c0_141, %c0_142] : memref<4x4x4x8xf32, #tpu.memory_space<vmem>>, vector<1x1x4x8xf32>
    %126 = vector.shape_cast %125 : vector<1x1x4x8xf32> to vector<4x8xf32>
    %cst_143 = arith.constant dense<0.000000e+00> : vector<128x8xf32>
    %127 = tpu.matmul %26, %126, %cst_143 {dimension_numbers = #tpu.dot_dimension_numbers<[1], [0], [0], [1], [0, 0, 1, 1], [], []>} : vector<128x4xf32>, vector<4x8xf32>, vector<128x8xf32> -> vector<128x8xf32>
    %128 = arith.addf %124, %127 : vector<128x8xf32>
    %129 = vector.broadcast %27 : vector<1x8xf32> to vector<128x8xf32>
    %130 = arith.addf %128, %129 : vector<128x8xf32>
    %131 = arith.negf %130 : vector<128x8xf32>
    %132 = math.exp %131 : vector<128x8xf32>
    %cst_144 = arith.constant 1.000000e+00 : f32
    %133 = vector.broadcast %cst_144 : f32 to vector<128x8xf32>
    %134 = arith.addf %133, %132 : vector<128x8xf32>
    %135 = arith.divf %133, %134 : vector<128x8xf32>
    %136 = arith.mulf %130, %135 : vector<128x8xf32>
    %c0_145 = arith.constant 0 : index
    %c1_146 = arith.constant 1 : index
    %c1_147 = arith.constant 1 : index
    %c0_148 = arith.constant 0 : index
    %c0_149 = arith.constant 0 : index
    %137 = vector.load %arg5[%c0_145, %c1_146, %c1_147, %c0_148, %c0_149] : memref<1x2x2x128x8xf32, #tpu.memory_space<vmem>>, vector<1x1x1x128x8xf32>
    %138 = vector.shape_cast %137 : vector<1x1x1x128x8xf32> to vector<128x8xf32>
    %139 = vector.shape_cast %136 : vector<128x8xf32> to vector<1x1x1x128x8xf32>
    tpu.vector_store %arg5[%c0_145, %c1_146, %c1_147, %c0_148, %c0_149], %139 {strides = array<i32>} : memref<1x2x2x128x8xf32, #tpu.memory_space<vmem>>, vector<1x1x1x128x8xf32>,
    return
  }
  func.func @transform_0(%arg0: i32, %arg1: i32) -> (i32, i32, i32, i32, i32) {
    %c0_i32 = arith.constant 0 : i32
    %c0_i32_0 = arith.constant 0 : i32
    %c0_i32_1 = arith.constant 0 : i32
    %c0_i32_2 = arith.constant 0 : i32
    return %arg0, %arg1, %c0_i32, %c0_i32_0, %c0_i32_1 : i32, i32, i32, i32, i32
  }
  func.func @transform_1(%arg0: i32, %arg1: i32) -> (i32, i32, i32, i32) {
    %c0_i32 = arith.constant 0 : i32
    %c0_i32_0 = arith.constant 0 : i32
    %c0_i32_1 = arith.constant 0 : i32
    %c0_i32_2 = arith.constant 0 : i32
    %c0_i32_3 = arith.constant 0 : i32
    return %c0_i32, %c0_i32_0, %c0_i32_1, %c0_i32_2 : i32, i32, i32, i32
  }
  func.func @transform_2(%arg0: i32, %arg1: i32) -> (i32, i32) {
    %c0_i32 = arith.constant 0 : i32
    %c0_i32_0 = arith.constant 0 : i32
    %c0_i32_1 = arith.constant 0 : i32
    return %c0_i32, %c0_i32_0 : i32, i32
  }
  func.func @transform_3(%arg0: i32, %arg1: i32) -> (i32, i32, i32, i32, i32) {
    %c0_i32 = arith.constant 0 : i32
    %c0_i32_0 = arith.constant 0 : i32
    %c0_i32_1 = arith.constant 0 : i32
    %c0_i32_2 = arith.constant 0 : i32
    return %arg0, %c0_i32, %c0_i32_0, %arg1, %c0_i32_1 : i32, i32, i32, i32, i32
  }
}

</mosaic_0001>

<llo_original>
// kernel: tpu_custom_call.1
$region0: #{tpu_custom_call.1}
  #allocation0 [shape = 'u32[]', space=smem, size = 0x4, offset = 0x4, fixed_abs, tag = 'smem constant byte address 0x4 - core index']
  #allocation1 [shape = 'u32[72,128]{1,0:T(1,128)}', space=vmem, size = 0x9000, scoped, tag = 'internal scratch']
  %s0 = inlined_call_operand.vmem [shape: f32[2,2,10,18,4], index: 0, kind: input, shape index: {}]
  %s1 = inlined_call_operand.vmem [shape: f32[4,4,4,8], index: 1, kind: input, shape index: {}]
  %s2 = inlined_call_operand.vmem [shape: f32[1,8], index: 2, kind: input, shape index: {}]
  %s3 = inlined_call_operand.vmem [shape: f32[2,2,2,256,8], index: 3, kind: output, shape index: {}]
  %s4 = sld [smem:[#allocation0]]
  $region79: #{tpu_custom_call.1} parent=0
    _
  %s6 = ssub.s32 1, %s4
  %s7 = scalar_select 0, %s6, %s4
  $region1: #{tpu_custom_call.1} parent=0
    #allocation2 [shape = 'u8[524288]{0}', space=vmem, size = 0x80000, scoped, tag = 'output window, operand 0']
    loop: start=0, step=1, limit=6
    $region2: #{tpu_custom_call.1} parent=1 // loop_pre_header
      _
    $region3: #{tpu_custom_call.1} parent=1 // loop_header
      %s9 = sphi 0, %s13
      %p10 = scmp.ge.s32.totalorder %s9, 6
      %s16 = sphi 0, %s28
      %s17 = sphi 0, %s24
      %s18 = sphi 0, %s16
      %s19 = sphi 0, %s17
      %s20 = sphi 0, %s18
      %s21 = sphi 0, %s19
      %s33 = sphi 0, %s35
      %s36 = sphi 0, %s33
      %s37 = sphi 0, %s36
      %s53 = sphi 0, %s37
      %s57 = sphi 0, %s57
      %s59 = sphi 0, %s57
      %s60 = sphi 0, %s59
      %s74 = sphi 0, %s60
      %s78 = sphi 0, %s78
      %s80 = sphi 0, %s78
      %s81 = sphi 0, %s80
      %s95 = sphi 0, %s81
      %s103 = sphi 0, %s105
      %s106 = sphi 0, %s103
      %s107 = sphi 0, %s106
      %s123 = sphi 0, %s107
    $region4: #{tpu_custom_call.1} parent=1 // loop_header_branch
      %12 = sbr.rel (%p10) target = $region8
    $region5: #{tpu_custom_call.1} parent=1 // loop_body
      %s14 = ssub.s32 %s9, 1
      %s15 = ssub.s32 %s9, 2
      %s22 = sadd.s32 1, %s17
      %p23 = scmp.ge.s32.totalorder %s22, 2
      %s24 = scalar_select %p23, 0, %s22
      %s25 = sadd.s32 1, %s16
      %s26 = scalar_select %p23, %s25, %s16
      %p27 = scmp.ge.s32.totalorder %s26, 2
      %s28 = scalar_select %p27, 0, %s26
      %s29 = ssub.s32 %s16, %s28
      %s30 = ssub.s32 %s17, %s24
      %s31 = sor.u32 %s29, %s30
      %p32 = scmp.eq.s32.totalorder %s31, 0
      %s34 = sadd.s32 %s33, 1
      %s35 = scalar_select %p32, %s33, %s34
      %p38 = pneg %p32
      %p39 = scmp.eq.s32.totalorder %s9, 3
      %p40 = por %p38, %p39
      %p41 = scmp.ne.s32.totalorder %s33, %s36
      %p42 = scmp.eq.s32.totalorder %s9, 0
      %p43 = por %p41, %p42
      %p44 = scmp.ne.s32.totalorder %s33, %s36
      %p45 = scmp.eq.s32.totalorder %s14, 3
      %p46 = por %p44, %p45
      %p47 = scmp.ne.s32.totalorder %s36, %s37
      %p48 = scmp.eq.s32.totalorder %s14, 0
      %p49 = por %p47, %p48
      %p50 = scmp.ne.s32.totalorder %s36, %s37
      %p51 = scmp.eq.s32.totalorder %s15, 3
      %p52 = por %p50, %p51
      %p54 = scmp.ne.s32.totalorder %s37, %s53
      %p55 = scmp.eq.s32.totalorder %s15, 0
      %p56 = por %p54, %p55
      %s58 = sadd.s32 %s57, 1
      %p61 = scmp.eq.s32.totalorder %s9, 3
      %p62 = scmp.ne.s32.totalorder %s57, %s59
      %p63 = scmp.eq.s32.totalorder %s9, 0
      %p64 = por %p62, %p63
      %p65 = scmp.ne.s32.totalorder %s57, %s59
      %p66 = scmp.eq.s32.totalorder %s14, 3
      %p67 = por %p65, %p66
      %p68 = scmp.ne.s32.totalorder %s59, %s60
      %p69 = scmp.eq.s32.totalorder %s14, 0
      %p70 = por %p68, %p69
      %p71 = scmp.ne.s32.totalorder %s59, %s60
      %p72 = scmp.eq.s32.totalorder %s15, 3
      %p73 = por %p71, %p72
      %p75 = scmp.ne.s32.totalorder %s60, %s74
      %p76 = scmp.eq.s32.totalorder %s15, 0
      %p77 = por %p75, %p76
      %s79 = sadd.s32 %s78, 1
      %p82 = scmp.eq.s32.totalorder %s9, 3
      %p83 = scmp.ne.s32.totalorder %s78, %s80
      %p84 = scmp.eq.s32.totalorder %s9, 0
      %p85 = por %p83, %p84
      %p86 = scmp.ne.s32.totalorder %s78, %s80
      %p87 = scmp.eq.s32.totalorder %s14, 3
      %p88 = por %p86, %p87
      %p89 = scmp.ne.s32.totalorder %s80, %s81
      %p90 = scmp.eq.s32.totalorder %s14, 0
      %p91 = por %p89, %p90
      %p92 = scmp.ne.s32.totalorder %s80, %s81
      %p93 = scmp.eq.s32.totalorder %s15, 3
      %p94 = por %p92, %p93
      %p96 = scmp.ne.s32.totalorder %s81, %s95
      %p97 = scmp.eq.s32.totalorder %s15, 0
      %p98 = por %p96, %p97
      %s99 = ssub.s32 %s16, %s28
      %s100 = ssub.s32 %s17, %s24
      %s101 = sor.u32 %s99, %s100
      %p102 = scmp.eq.s32.totalorder %s101, 0
      %s104 = sadd.s32 %s103, 1
      %s105 = scalar_select %p102, %s103, %s104
      %p108 = pneg %p102
      %p109 = scmp.eq.s32.totalorder %s9, 3
      %p110 = por %p108, %p109
      %p111 = scmp.ne.s32.totalorder %s103, %s106
      %p112 = scmp.eq.s32.totalorder %s9, 0
      %p113 = por %p111, %p112
      %p114 = scmp.ne.s32.totalorder %s103, %s106
      %p115 = scmp.eq.s32.totalorder %s14, 3
      %p116 = por %p114, %p115
      %p117 = scmp.ne.s32.totalorder %s106, %s107
      %p118 = scmp.eq.s32.totalorder %s14, 0
      %p119 = por %p117, %p118
      %p120 = scmp.ne.s32.totalorder %s106, %s107
      %p121 = scmp.eq.s32.totalorder %s15, 3
      %p122 = por %p120, %p121
      %p124 = scmp.ne.s32.totalorder %s107, %s123
      %p125 = scmp.eq.s32.totalorder %s15, 0
      %p126 = por %p124, %p125
      %p127 = scmp.le.s32.totalorder 1, %s9
      %p128 = scmp.lt.s32.totalorder %s9, 5
      %p129 = pnand %p127, %p128
      %p130 = pneg %p129
      // Predicated region
      $region9: #{tpu_custom_call.1} parent=5 // pred_check
        _
      $region10: #{tpu_custom_call.1} parent=5 // pred_check_branch
        %132 = sbr.rel (%p129) target = $region12
      $region11: #{tpu_custom_call.1} parent=5 // pred_region
        %s133 = ssub.s32 %s9, 1
        // Predicated region
        $region13: #{tpu_custom_call.1} parent=11 // pred_check
          %p134 = pneg %p70
        $region14: #{tpu_custom_call.1} parent=11 // pred_check_branch
          %136 = sbr.rel (%p134) target = $region16
        $region15: #{tpu_custom_call.1} parent=11 // pred_region
          _
        $region16: #{tpu_custom_call.1} parent=11 // pred_fallthru
          _
        // Predicated region
        $region17: #{tpu_custom_call.1} parent=11 // pred_check
          %p137 = pneg %p91
        $region18: #{tpu_custom_call.1} parent=11 // pred_check_branch
          %139 = sbr.rel (%p137) target = $region20
        $region19: #{tpu_custom_call.1} parent=11 // pred_region
          _
        $region20: #{tpu_custom_call.1} parent=11 // pred_fallthru
          _
      $region12: #{tpu_custom_call.1} parent=5 // pred_fallthru
        _
      %p140 = scmp.lt.s32.totalorder %s9, 4
      // Predicated region
      $region21: #{tpu_custom_call.1} parent=5 // pred_check
        %p141 = pneg %p140
      $region22: #{tpu_custom_call.1} parent=5 // pred_check_branch
        %143 = sbr.rel (%p141) target = $region24
      $region23: #{tpu_custom_call.1} parent=5 // pred_region
        // Predicated region
        $region25: #{tpu_custom_call.1} parent=23 // pred_check
          %p144 = pneg %p43
        $region26: #{tpu_custom_call.1} parent=23 // pred_check_branch
          %146 = sbr.rel (%p144) target = $region28
        $region27: #{tpu_custom_call.1} parent=23 // pred_region
          %p147 = scmp.lt.s32.totalorder %s16, 1
          %s148 = scalar_select %p147, %s16, 1
          %p149 = scmp.lt.s32.totalorder %s17, 1
          %s150 = scalar_select %p149, %s17, 1
          %s151 = smul.addr %s150, 30
          %s152 = smul.addr %s148, 60
          %s153 = sadd.s32 %s151, %s152
          %s154 = smul.addr %s153, 8
          %s155 = scalar_lea.vmem %s0, %s154
        $region28: #{tpu_custom_call.1} parent=23 // pred_fallthru
          _
      $region24: #{tpu_custom_call.1} parent=5 // pred_fallthru
        _
      %p156 = scmp.le.s32.totalorder 1, %s9
      %p157 = scmp.lt.s32.totalorder %s9, 5
      %p158 = pnand %p156, %p157
      %p159 = pneg %p158
      // Predicated region
      $region29: #{tpu_custom_call.1} parent=5 // pred_check
        _
      $region30: #{tpu_custom_call.1} parent=5 // pred_check_branch
        %161 = sbr.rel (%p158) target = $region32
      $region31: #{tpu_custom_call.1} parent=5 // pred_region
        %s162 = ssub.s32 %s9, 1
        %p163 = scmp.lt.s32.totalorder %s18, 1
        %s164 = scalar_select %p163, %s18, 1
        %p165 = scmp.lt.s32.totalorder %s19, 1
        %s166 = scalar_select %p165, %s19, 1
        %s167 = smul.addr %s166, 30
        %s168 = smul.addr %s164, 60
        %s169 = sadd.s32 %s167, %s168
        %s170 = smul.addr %s169, 8
        %s171 = scalar_lea.vmem %s0, %s170
        %p172 = pneg %p49
        %p173 = pneg %p46
        %p174 = pneg %p70
        %p175 = pneg %p67
        %p176 = pneg %p91
        %p177 = pneg %p88
        %p178 = pneg %p119
        %p179 = pneg %p116
        %s180 = sand.u32 %s106, 1
        %s181 = sand.u32 %s106, 1
        %s182 = smul.addr %s181, 512
        %s183 = scalar_lea.vmem [#allocation2], %s182
        %p184 = scmp.lt.s32.totalorder %s18, 1
        %s185 = scalar_select %p184, %s18, 1
        %p186 = scmp.lt.s32.totalorder %s19, 1
        %s187 = scalar_select %p186, %s19, 1
        %s188 = smul.addr %s187, 30
        %s189 = smul.addr %s185, 60
        %s190 = sadd.s32 %s188, %s189
        %s191 = smul.addr %s190, 8
        %s192 = scalar_lea.vmem %s0, %s191
        %s193 = smul.u32 16, %s19
        %v194 = vld [vmem:[%s192] sm:$0xff]
        %v195 = vld [vmem:[%s192 + $0x8] sm:$0xff]
        %v196 = vld [vmem:[%s192 + $0x18] sm:$0xff]
        %v197 = vld [vmem:[%s192 + $0x20] sm:$0xff]
        %v198 = vld [vmem:[%s192 + $0x30] sm:$0xff]
        %v199 = vld [vmem:[%s192 + $0x38] sm:$0xff]
        %v200 = vld [vmem:[%s192 + $0x48] sm:$0xff]
        %v201 = vld [vmem:[%s192 + $0x50] sm:$0xff]
        %v202 = vld [vmem:[%s192 + $0x60] sm:$0xff]
        %v203 = vld [vmem:[%s192 + $0x68] sm:$0xff]
        %v204 = vld [vmem:[%s192 + $0x78] sm:$0xff]
        %v205 = vld [vmem:[%s192 + $0x80] sm:$0xff]
        %v206 = vld [vmem:[%s192 + $0x90] sm:$0xff]
        %v207 = vld [vmem:[%s192 + $0x98] sm:$0xff]
        %v208 = vld [vmem:[%s192 + $0xa8] sm:$0xff]
        %v209 = vld [vmem:[%s192 + $0xb0] sm:$0xff]
        %v210 = vld [vmem:[%s192 + $0x1] sm:$0xff]
        %v211 = vld [vmem:[%s192 + $0x9] sm:$0xff]
        %v212 = vld [vmem:[%s192 + $0x19] sm:$0xff]
        %v213 = vld [vmem:[%s192 + $0x21] sm:$0xff]
        %v214 = vld [vmem:[%s192 + $0x31] sm:$0xff]
        %v215 = vld [vmem:[%s192 + $0x39] sm:$0xff]
        %v216 = vld [vmem:[%s192 + $0x49] sm:$0xff]
        %v217 = vld [vmem:[%s192 + $0x51] sm:$0xff]
        %v218 = vld [vmem:[%s192 + $0x61] sm:$0xff]
        %v219 = vld [vmem:[%s192 + $0x69] sm:$0xff]
        %v220 = vld [vmem:[%s192 + $0x79] sm:$0xff]
        %v221 = vld [vmem:[%s192 + $0x81] sm:$0xff]
        %v222 = vld [vmem:[%s192 + $0x91] sm:$0xff]
        %v223 = vld [vmem:[%s192 + $0x99] sm:$0xff]
        %v224 = vld [vmem:[%s192 + $0xa9] sm:$0xff]
        %v225 = vld [vmem:[%s192 + $0xb1] sm:$0xff]
        %v226 = vld [vmem:[%s192 + $0x2] sm:$0xff]
        %v227 = vld [vmem:[%s192 + $0xa] sm:$0xff]
        %v228 = vld [vmem:[%s192 + $0x1a] sm:$0xff]
        %v229 = vld [vmem:[%s192 + $0x22] sm:$0xff]
        %v230 = vld [vmem:[%s192 + $0x32] sm:$0xff]
        %v231 = vld [vmem:[%s192 + $0x3a] sm:$0xff]
        %v232 = vld [vmem:[%s192 + $0x4a] sm:$0xff]
        %v233 = vld [vmem:[%s192 + $0x52] sm:$0xff]
        %v234 = vld [vmem:[%s192 + $0x62] sm:$0xff]
        %v235 = vld [vmem:[%s192 + $0x6a] sm:$0xff]
        %v236 = vld [vmem:[%s192 + $0x7a] sm:$0xff]
        %v237 = vld [vmem:[%s192 + $0x82] sm:$0xff]
        %v238 = vld [vmem:[%s192 + $0x92] sm:$0xff]
        %v239 = vld [vmem:[%s192 + $0x9a] sm:$0xff]
        %v240 = vld [vmem:[%s192 + $0xaa] sm:$0xff]
        %v241 = vld [vmem:[%s192 + $0xb2] sm:$0xff]
        %s242 = scalar_lea.vmem %s192, 24
        %v243 = vld [vmem:[%s242] sm:$0xff]
        %v244 = vld [vmem:[%s242 + $0x8] sm:$0xff]
        %v245 = vld [vmem:[%s242 + $0x18] sm:$0xff]
        %v246 = vld [vmem:[%s242 + $0x20] sm:$0xff]
        %v247 = vld [vmem:[%s242 + $0x30] sm:$0xff]
        %v248 = vld [vmem:[%s242 + $0x38] sm:$0xff]
        %v249 = vld [vmem:[%s242 + $0x48] sm:$0xff]
        %v250 = vld [vmem:[%s242 + $0x50] sm:$0xff]
        %v251 = vld [vmem:[%s242 + $0x60] sm:$0xff]
        %v252 = vld [vmem:[%s242 + $0x68] sm:$0xff]
        %v253 = vld [vmem:[%s242 + $0x78] sm:$0xff]
        %v254 = vld [vmem:[%s242 + $0x80] sm:$0xff]
        %v255 = vld [vmem:[%s242 + $0x90] sm:$0xff]
        %v256 = vld [vmem:[%s242 + $0x98] sm:$0xff]
        %v257 = vld [vmem:[%s242 + $0xa8] sm:$0xff]
        %v258 = vld [vmem:[%s242 + $0xb0] sm:$0xff]
        %v259 = vld [vmem:[%s242 + $0x1] sm:$0xff]
        %v260 = vld [vmem:[%s242 + $0x9] sm:$0xff]
        %v261 = vld [vmem:[%s242 + $0x19] sm:$0xff]
        %v262 = vld [vmem:[%s242 + $0x21] sm:$0xff]
        %v263 = vld [vmem:[%s242 + $0x31] sm:$0xff]
        %v264 = vld [vmem:[%s242 + $0x39] sm:$0xff]
        %v265 = vld [vmem:[%s242 + $0x49] sm:$0xff]
        %v266 = vld [vmem:[%s242 + $0x51] sm:$0xff]
        %v267 = vld [vmem:[%s242 + $0x61] sm:$0xff]
        %v268 = vld [vmem:[%s242 + $0x69] sm:$0xff]
        %v269 = vld [vmem:[%s242 + $0x79] sm:$0xff]
        %v270 = vld [vmem:[%s242 + $0x81] sm:$0xff]
        %v271 = vld [vmem:[%s242 + $0x91] sm:$0xff]
        %v272 = vld [vmem:[%s242 + $0x99] sm:$0xff]
        %v273 = vld [vmem:[%s242 + $0xa9] sm:$0xff]
        %v274 = vld [vmem:[%s242 + $0xb1] sm:$0xff]
        %v275 = vld [vmem:[%s242 + $0x2] sm:$0xff]
        %v276 = vld [vmem:[%s242 + $0xa] sm:$0xff]
        %v277 = vld [vmem:[%s242 + $0x1a] sm:$0xff]
        %v278 = vld [vmem:[%s242 + $0x22] sm:$0xff]
        %v279 = vld [vmem:[%s242 + $0x32] sm:$0xff]
        %v280 = vld [vmem:[%s242 + $0x3a] sm:$0xff]
        %v281 = vld [vmem:[%s242 + $0x4a] sm:$0xff]
        %v282 = vld [vmem:[%s242 + $0x52] sm:$0xff]
        %v283 = vld [vmem:[%s242 + $0x62] sm:$0xff]
        %v284 = vld [vmem:[%s242 + $0x6a] sm:$0xff]
        %v285 = vld [vmem:[%s242 + $0x7a] sm:$0xff]
        %v286 = vld [vmem:[%s242 + $0x82] sm:$0xff]
        %v287 = vld [vmem:[%s242 + $0x92] sm:$0xff]
        %v288 = vld [vmem:[%s242 + $0x9a] sm:$0xff]
        %v289 = vld [vmem:[%s242 + $0xaa] sm:$0xff]
        %v290 = vld [vmem:[%s242 + $0xb2] sm:$0xff]
        %s291 = scalar_lea.vmem %s192, 48
        %v292 = vld [vmem:[%s291] sm:$0xff]
        %v293 = vld [vmem:[%s291 + $0x8] sm:$0xff]
        %v294 = vld [vmem:[%s291 + $0x18] sm:$0xff]
        %v295 = vld [vmem:[%s291 + $0x20] sm:$0xff]
        %v296 = vld [vmem:[%s291 + $0x30] sm:$0xff]
        %v297 = vld [vmem:[%s291 + $0x38] sm:$0xff]
        %v298 = vld [vmem:[%s291 + $0x48] sm:$0xff]
        %v299 = vld [vmem:[%s291 + $0x50] sm:$0xff]
        %v300 = vld [vmem:[%s291 + $0x60] sm:$0xff]
        %v301 = vld [vmem:[%s291 + $0x68] sm:$0xff]
        %v302 = vld [vmem:[%s291 + $0x78] sm:$0xff]
        %v303 = vld [vmem:[%s291 + $0x80] sm:$0xff]
        %v304 = vld [vmem:[%s291 + $0x90] sm:$0xff]
        %v305 = vld [vmem:[%s291 + $0x98] sm:$0xff]
        %v306 = vld [vmem:[%s291 + $0xa8] sm:$0xff]
        %v307 = vld [vmem:[%s291 + $0xb0] sm:$0xff]
        %v308 = vld [vmem:[%s291 + $0x1] sm:$0xff]
        %v309 = vld [vmem:[%s291 + $0x9] sm:$0xff]
        %v310 = vld [vmem:[%s291 + $0x19] sm:$0xff]
        %v311 = vld [vmem:[%s291 + $0x21] sm:$0xff]
        %v312 = vld [vmem:[%s291 + $0x31] sm:$0xff]
        %v313 = vld [vmem:[%s291 + $0x39] sm:$0xff]
        %v314 = vld [vmem:[%s291 + $0x49] sm:$0xff]
        %v315 = vld [vmem:[%s291 + $0x51] sm:$0xff]
        %v316 = vld [vmem:[%s291 + $0x61] sm:$0xff]
        %v317 = vld [vmem:[%s291 + $0x69] sm:$0xff]
        %v318 = vld [vmem:[%s291 + $0x79] sm:$0xff]
        %v319 = vld [vmem:[%s291 + $0x81] sm:$0xff]
        %v320 = vld [vmem:[%s291 + $0x91] sm:$0xff]
        %v321 = vld [vmem:[%s291 + $0x99] sm:$0xff]
        %v322 = vld [vmem:[%s291 + $0xa9] sm:$0xff]
        %v323 = vld [vmem:[%s291 + $0xb1] sm:$0xff]
        %v324 = vld [vmem:[%s291 + $0x2] sm:$0xff]
        %v325 = vld [vmem:[%s291 + $0xa] sm:$0xff]
        %v326 = vld [vmem:[%s291 + $0x1a] sm:$0xff]
        %v327 = vld [vmem:[%s291 + $0x22] sm:$0xff]
        %v328 = vld [vmem:[%s291 + $0x32] sm:$0xff]
        %v329 = vld [vmem:[%s291 + $0x3a] sm:$0xff]
        %v330 = vld [vmem:[%s291 + $0x4a] sm:$0xff]
        %v331 = vld [vmem:[%s291 + $0x52] sm:$0xff]
        %v332 = vld [vmem:[%s291 + $0x62] sm:$0xff]
        %v333 = vld [vmem:[%s291 + $0x6a] sm:$0xff]
        %v334 = vld [vmem:[%s291 + $0x7a] sm:$0xff]
        %v335 = vld [vmem:[%s291 + $0x82] sm:$0xff]
        %v336 = vld [vmem:[%s291 + $0x92] sm:$0xff]
        %v337 = vld [vmem:[%s291 + $0x9a] sm:$0xff]
        %v338 = vld [vmem:[%s291 + $0xaa] sm:$0xff]
        %v339 = vld [vmem:[%s291 + $0xb2] sm:$0xff]
        %v340 = vld [vmem:[%s2] sm:$0x1]
        %v341 = vld [vmem:[%s1] sm:$0xf]
        %s342 = scalar_lea.vmem %s1, 4
        %v343 = vld [vmem:[%s342] sm:$0xf]
        %vm344 = vcmask 31744
        %v346 = vsel %vm344, %v210, 0
        %v349 = vsel %vm344, %v211, 0
        %v352 = vsel %vm344, %v212, 0
        %v355 = vsel %vm344, %v213, 0
        %v358 = vsel %vm344, %v214, 0
        %v361 = vsel %vm344, %v215, 0
        %v364 = vsel %vm344, %v216, 0
        %v367 = vsel %vm344, %v217, 0
        %v370 = vsel %vm344, %v218, 0
        %v373 = vsel %vm344, %v219, 0
        %v376 = vsel %vm344, %v220, 0
        %v379 = vsel %vm344, %v221, 0
        %v382 = vsel %vm344, %v222, 0
        %v385 = vsel %vm344, %v223, 0
        %v388 = vsel %vm344, %v224, 0
        %v391 = vsel %vm344, %v225, 0
        %vm393 = vcmask 1043456
        %v395 = vsel %vm393, %v343, 0
        %397 = vmatpush.msra.mxu0 0.0
        %398 = vmatpush.msra.mxu0 0.0
        %399 = vmatpush.msra.mxu0 0.0
        %400 = vmatpush.msra.mxu0 0.0
        %401 = vmatpush.msra.mxu0 0.0
        %402 = vmatpush.msra.mxu0 0.0
        %403 = vmatpush.msra.mxu0 0.0
        %404 = vmatpush.msra.mxu0 0.0
        %405 = vmatpush.msra.mxu0 0.0
        %406 = vmatpush.msra.mxu0 0.0
        %407 = vmatpush.msra.mxu0 0.0
        %408 = vmatpush.msra.mxu0 0.0
        %409 = vmatpush.msra.mxu0 0.0
        %410 = vmatpush.msra.mxu0 0.0
        %411 = vmatpush.msra.mxu0 0.0
        %412 = vmatpush.msra.mxu0 %v395
        %413 = vmatmul.f32.gmra.mxu0 %v346
        %v414 = vpop.f32.mrf.mxu0
        %v415 = vadd.f32 0.0, %v414
        %416 = vmatmul.f32.gmra.mxu0 %v349
        %v417 = vpop.f32.mrf.mxu0
        %v418 = vadd.f32 0.0, %v417
        %419 = vmatmul.f32.gmra.mxu0 %v352
        %v420 = vpop.f32.mrf.mxu0
        %v421 = vadd.f32 0.0, %v420
        %422 = vmatmul.f32.gmra.mxu0 %v355
        %v423 = vpop.f32.mrf.mxu0
        %v424 = vadd.f32 0.0, %v423
        %425 = vmatmul.f32.gmra.mxu0 %v358
        %v426 = vpop.f32.mrf.mxu0
        %v427 = vadd.f32 0.0, %v426
        %428 = vmatmul.f32.gmra.mxu0 %v361
        %v429 = vpop.f32.mrf.mxu0
        %v430 = vadd.f32 0.0, %v429
        %431 = vmatmul.f32.gmra.mxu0 %v364
        %v432 = vpop.f32.mrf.mxu0
        %v433 = vadd.f32 0.0, %v432
        %434 = vmatmul.f32.gmra.mxu0 %v367
        %v435 = vpop.f32.mrf.mxu0
        %v436 = vadd.f32 0.0, %v435
        %437 = vmatmul.f32.gmra.mxu0 %v370
        %v438 = vpop.f32.mrf.mxu0
        %v439 = vadd.f32 0.0, %v438
        %440 = vmatmul.f32.gmra.mxu0 %v373
        %v441 = vpop.f32.mrf.mxu0
        %v442 = vadd.f32 0.0, %v441
        %443 = vmatmul.f32.gmra.mxu0 %v376
        %v444 = vpop.f32.mrf.mxu0
        %v445 = vadd.f32 0.0, %v444
        %446 = vmatmul.f32.gmra.mxu0 %v379
        %v447 = vpop.f32.mrf.mxu0
        %v448 = vadd.f32 0.0, %v447
        %449 = vmatmul.f32.gmra.mxu0 %v382
        %v450 = vpop.f32.mrf.mxu0
        %v451 = vadd.f32 0.0, %v450
        %452 = vmatmul.f32.gmra.mxu0 %v385
        %v453 = vpop.f32.mrf.mxu0
        %v454 = vadd.f32 0.0, %v453
        %455 = vmatmul.f32.gmra.mxu0 %v388
        %v456 = vpop.f32.mrf.mxu0
        %v457 = vadd.f32 0.0, %v456
        %458 = vmatmul.f32.gmra.mxu0 %v391
        %v459 = vpop.f32.mrf.mxu0
        %v460 = vadd.f32 0.0, %v459
        %461 = vdwg.mxu0
        %v463 = vsel %vm344, %v194, 0
        %v466 = vsel %vm344, %v195, 0
        %v469 = vsel %vm344, %v196, 0
        %v472 = vsel %vm344, %v197, 0
        %v475 = vsel %vm344, %v198, 0
        %v478 = vsel %vm344, %v199, 0
        %v481 = vsel %vm344, %v200, 0
        %v484 = vsel %vm344, %v201, 0
        %v487 = vsel %vm344, %v202, 0
        %v490 = vsel %vm344, %v203, 0
        %v493 = vsel %vm344, %v204, 0
        %v496 = vsel %vm344, %v205, 0
        %v499 = vsel %vm344, %v206, 0
        %v502 = vsel %vm344, %v207, 0
        %v505 = vsel %vm344, %v208, 0
        %v508 = vsel %vm344, %v209, 0
        %v511 = vsel %vm393, %v341, 0
        %513 = vmatpush.msra.mxu0 0.0
        %514 = vmatpush.msra.mxu0 0.0
        %515 = vmatpush.msra.mxu0 0.0
        %516 = vmatpush.msra.mxu0 0.0
        %517 = vmatpush.msra.mxu0 0.0
        %518 = vmatpush.msra.mxu0 0.0
        %519 = vmatpush.msra.mxu0 0.0
        %520 = vmatpush.msra.mxu0 0.0
        %521 = vmatpush.msra.mxu0 0.0
        %522 = vmatpush.msra.mxu0 0.0
        %523 = vmatpush.msra.mxu0 0.0
        %524 = vmatpush.msra.mxu0 0.0
        %525 = vmatpush.msra.mxu0 0.0
        %526 = vmatpush.msra.mxu0 0.0
        %527 = vmatpush.msra.mxu0 0.0
        %528 = vmatpush.msra.mxu0 %v511
        %529 = vmatmul.f32.gmra.mxu0 %v463
        %v530 = vpop.f32.mrf.mxu0
        %v531 = vadd.f32 %v415, %v530
        %532 = vmatmul.f32.gmra.mxu0 %v466
        %v533 = vpop.f32.mrf.mxu0
        %v534 = vadd.f32 %v418, %v533
        %535 = vmatmul.f32.gmra.mxu0 %v469
        %v536 = vpop.f32.mrf.mxu0
        %v537 = vadd.f32 %v421, %v536
        %538 = vmatmul.f32.gmra.mxu0 %v472
        %v539 = vpop.f32.mrf.mxu0
        %v540 = vadd.f32 %v424, %v539
        %541 = vmatmul.f32.gmra.mxu0 %v475
        %v542 = vpop.f32.mrf.mxu0
        %v543 = vadd.f32 %v427, %v542
        %544 = vmatmul.f32.gmra.mxu0 %v478
        %v545 = vpop.f32.mrf.mxu0
        %v546 = vadd.f32 %v430, %v545
        %547 = vmatmul.f32.gmra.mxu0 %v481
        %v548 = vpop.f32.mrf.mxu0
        %v549 = vadd.f32 %v433, %v548
        %550 = vmatmul.f32.gmra.mxu0 %v484
        %v551 = vpop.f32.mrf.mxu0
        %v552 = vadd.f32 %v436, %v551
        %553 = vmatmul.f32.gmra.mxu0 %v487
        %v554 = vpop.f32.mrf.mxu0
        %v555 = vadd.f32 %v439, %v554
        %556 = vmatmul.f32.gmra.mxu0 %v490
        %v557 = vpop.f32.mrf.mxu0
        %v558 = vadd.f32 %v442, %v557
        %559 = vmatmul.f32.gmra.mxu0 %v493
        %v560 = vpop.f32.mrf.mxu0
        %v561 = vadd.f32 %v445, %v560
        %562 = vmatmul.f32.gmra.mxu0 %v496
        %v563 = vpop.f32.mrf.mxu0
        %v564 = vadd.f32 %v448, %v563
        %565 = vmatmul.f32.gmra.mxu0 %v499
        %v566 = vpop.f32.mrf.mxu0
        %v567 = vadd.f32 %v451, %v566
        %568 = vmatmul.f32.gmra.mxu0 %v502
        %v569 = vpop.f32.mrf.mxu0
        %v570 = vadd.f32 %v454, %v569
        %571 = vmatmul.f32.gmra.mxu0 %v505
        %v572 = vpop.f32.mrf.mxu0
        %v573 = vadd.f32 %v457, %v572
        %574 = vmatmul.f32.gmra.mxu0 %v508
        %v575 = vpop.f32.mrf.mxu0
        %v576 = vadd.f32 %v460, %v575
        %577 = vdwg.mxu0
        %s578 = scalar_lea.vmem %s1, 8
        %v579 = vld [vmem:[%s578] sm:$0xf]
        %v581 = vsel %vm344, %v243, 0
        %v584 = vsel %vm344, %v244, 0
        %v587 = vsel %vm344, %v245, 0
        %v590 = vsel %vm344, %v246, 0
        %v593 = vsel %vm344, %v247, 0
        %v596 = vsel %vm344, %v248, 0
        %v599 = vsel %vm344, %v249, 0
        %v602 = vsel %vm344, %v250, 0
        %v605 = vsel %vm344, %v251, 0
        %v608 = vsel %vm344, %v252, 0
        %v611 = vsel %vm344, %v253, 0
        %v614 = vsel %vm344, %v254, 0
        %v617 = vsel %vm344, %v255, 0
        %v620 = vsel %vm344, %v256, 0
        %v623 = vsel %vm344, %v257, 0
        %v626 = vsel %vm344, %v258, 0
        %v629 = vsel %vm393, %v579, 0
        %631 = vmatpush.msra.mxu0 0.0
        %632 = vmatpush.msra.mxu0 0.0
        %633 = vmatpush.msra.mxu0 0.0
        %634 = vmatpush.msra.mxu0 0.0
        %635 = vmatpush.msra.mxu0 0.0
        %636 = vmatpush.msra.mxu0 0.0
        %637 = vmatpush.msra.mxu0 0.0
        %638 = vmatpush.msra.mxu0 0.0
        %639 = vmatpush.msra.mxu0 0.0
        %640 = vmatpush.msra.mxu0 0.0
        %641 = vmatpush.msra.mxu0 0.0
        %642 = vmatpush.msra.mxu0 0.0
        %643 = vmatpush.msra.mxu0 0.0
        %644 = vmatpush.msra.mxu0 0.0
        %645 = vmatpush.msra.mxu0 0.0
        %646 = vmatpush.msra.mxu0 %v629
        %647 = vmatmul.f32.gmra.mxu0 %v581
        %v648 = vpop.f32.mrf.mxu0
        %v649 = vadd.f32 0.0, %v648
        %650 = vmatmul.f32.gmra.mxu0 %v584
        %v651 = vpop.f32.mrf.mxu0
        %v652 = vadd.f32 0.0, %v651
        %653 = vmatmul.f32.gmra.mxu0 %v587
        %v654 = vpop.f32.mrf.mxu0
        %v655 = vadd.f32 0.0, %v654
        %656 = vmatmul.f32.gmra.mxu0 %v590
        %v657 = vpop.f32.mrf.mxu0
        %v658 = vadd.f32 0.0, %v657
        %659 = vmatmul.f32.gmra.mxu0 %v593
        %v660 = vpop.f32.mrf.mxu0
        %v661 = vadd.f32 0.0, %v660
        %662 = vmatmul.f32.gmra.mxu0 %v596
        %v663 = vpop.f32.mrf.mxu0
        %v664 = vadd.f32 0.0, %v663
        %665 = vmatmul.f32.gmra.mxu0 %v599
        %v666 = vpop.f32.mrf.mxu0
        %v667 = vadd.f32 0.0, %v666
        %668 = vmatmul.f32.gmra.mxu0 %v602
        %v669 = vpop.f32.mrf.mxu0
        %v670 = vadd.f32 0.0, %v669
        %671 = vmatmul.f32.gmra.mxu0 %v605
        %v672 = vpop.f32.mrf.mxu0
        %v673 = vadd.f32 0.0, %v672
        %674 = vmatmul.f32.gmra.mxu0 %v608
        %v675 = vpop.f32.mrf.mxu0
        %v676 = vadd.f32 0.0, %v675
        %677 = vmatmul.f32.gmra.mxu0 %v611
        %v678 = vpop.f32.mrf.mxu0
        %v679 = vadd.f32 0.0, %v678
        %680 = vmatmul.f32.gmra.mxu0 %v614
        %v681 = vpop.f32.mrf.mxu0
        %v682 = vadd.f32 0.0, %v681
        %683 = vmatmul.f32.gmra.mxu0 %v617
        %v684 = vpop.f32.mrf.mxu0
        %v685 = vadd.f32 0.0, %v684
        %686 = vmatmul.f32.gmra.mxu0 %v620
        %v687 = vpop.f32.mrf.mxu0
        %v688 = vadd.f32 0.0, %v687
        %689 = vmatmul.f32.gmra.mxu0 %v623
        %v690 = vpop.f32.mrf.mxu0
        %v691 = vadd.f32 0.0, %v690
        %692 = vmatmul.f32.gmra.mxu0 %v626
        %v693 = vpop.f32.mrf.mxu0
        %v694 = vadd.f32 0.0, %v693
        %695 = vdwg.mxu0
        %v696 = vadd.f32 %v531, %v649
        %v697 = vadd.f32 %v534, %v652
        %v698 = vadd.f32 %v537, %v655
        %v699 = vadd.f32 %v540, %v658
        %v700 = vadd.f32 %v543, %v661
        %v701 = vadd.f32 %v546, %v664
        %v702 = vadd.f32 %v549, %v667
        %v703 = vadd.f32 %v552, %v670
        %v704 = vadd.f32 %v555, %v673
        %v705 = vadd.f32 %v558, %v676
        %v706 = vadd.f32 %v561, %v679
        %v707 = vadd.f32 %v564, %v682
        %v708 = vadd.f32 %v567, %v685
        %v709 = vadd.f32 %v570, %v688
        %v710 = vadd.f32 %v573, %v691
        %v711 = vadd.f32 %v576, %v694
        %s712 = scalar_lea.vmem %s1, 12
        %v713 = vld [vmem:[%s712] sm:$0xf]
        %v715 = vsel %vm344, %v259, 0
        %v718 = vsel %vm344, %v260, 0
        %v721 = vsel %vm344, %v261, 0
        %v724 = vsel %vm344, %v262, 0
        %v727 = vsel %vm344, %v263, 0
        %v730 = vsel %vm344, %v264, 0
        %v733 = vsel %vm344, %v265, 0
        %v736 = vsel %vm344, %v266, 0
        %v739 = vsel %vm344, %v267, 0
        %v742 = vsel %vm344, %v268, 0
        %v745 = vsel %vm344, %v269, 0
        %v748 = vsel %vm344, %v270, 0
        %v751 = vsel %vm344, %v271, 0
        %v754 = vsel %vm344, %v272, 0
        %v757 = vsel %vm344, %v273, 0
        %v760 = vsel %vm344, %v274, 0
        %v763 = vsel %vm393, %v713, 0
        %765 = vmatpush.msra.mxu0 0.0
        %766 = vmatpush.msra.mxu0 0.0
        %767 = vmatpush.msra.mxu0 0.0
        %768 = vmatpush.msra.mxu0 0.0
        %769 = vmatpush.msra.mxu0 0.0
        %770 = vmatpush.msra.mxu0 0.0
        %771 = vmatpush.msra.mxu0 0.0
        %772 = vmatpush.msra.mxu0 0.0
        %773 = vmatpush.msra.mxu0 0.0
        %774 = vmatpush.msra.mxu0 0.0
        %775 = vmatpush.msra.mxu0 0.0
        %776 = vmatpush.msra.mxu0 0.0
        %777 = vmatpush.msra.mxu0 0.0
        %778 = vmatpush.msra.mxu0 0.0
        %779 = vmatpush.msra.mxu0 0.0
        %780 = vmatpush.msra.mxu0 %v763
        %781 = vmatmul.f32.gmra.mxu0 %v715
        %v782 = vpop.f32.mrf.mxu0
        %v783 = vadd.f32 0.0, %v782
        %784 = vmatmul.f32.gmra.mxu0 %v718
        %v785 = vpop.f32.mrf.mxu0
        %v786 = vadd.f32 0.0, %v785
        %787 = vmatmul.f32.gmra.mxu0 %v721
        %v788 = vpop.f32.mrf.mxu0
        %v789 = vadd.f32 0.0, %v788
        %790 = vmatmul.f32.gmra.mxu0 %v724
        %v791 = vpop.f32.mrf.mxu0
        %v792 = vadd.f32 0.0, %v791
        %793 = vmatmul.f32.gmra.mxu0 %v727
        %v794 = vpop.f32.mrf.mxu0
        %v795 = vadd.f32 0.0, %v794
        %796 = vmatmul.f32.gmra.mxu0 %v730
        %v797 = vpop.f32.mrf.mxu0
        %v798 = vadd.f32 0.0, %v797
        %799 = vmatmul.f32.gmra.mxu0 %v733
        %v800 = vpop.f32.mrf.mxu0
        %v801 = vadd.f32 0.0, %v800
        %802 = vmatmul.f32.gmra.mxu0 %v736
        %v803 = vpop.f32.mrf.mxu0
        %v804 = vadd.f32 0.0, %v803
        %805 = vmatmul.f32.gmra.mxu0 %v739
        %v806 = vpop.f32.mrf.mxu0
        %v807 = vadd.f32 0.0, %v806
        %808 = vmatmul.f32.gmra.mxu0 %v742
        %v809 = vpop.f32.mrf.mxu0
        %v810 = vadd.f32 0.0, %v809
        %811 = vmatmul.f32.gmra.mxu0 %v745
        %v812 = vpop.f32.mrf.mxu0
        %v813 = vadd.f32 0.0, %v812
        %814 = vmatmul.f32.gmra.mxu0 %v748
        %v815 = vpop.f32.mrf.mxu0
        %v816 = vadd.f32 0.0, %v815
        %817 = vmatmul.f32.gmra.mxu0 %v751
        %v818 = vpop.f32.mrf.mxu0
        %v819 = vadd.f32 0.0, %v818
        %820 = vmatmul.f32.gmra.mxu0 %v754
        %v821 = vpop.f32.mrf.mxu0
        %v822 = vadd.f32 0.0, %v821
        %823 = vmatmul.f32.gmra.mxu0 %v757
        %v824 = vpop.f32.mrf.mxu0
        %v825 = vadd.f32 0.0, %v824
        %826 = vmatmul.f32.gmra.mxu0 %v760
        %v827 = vpop.f32.mrf.mxu0
        %v828 = vadd.f32 0.0, %v827
        %829 = vdwg.mxu0
        %v830 = vadd.f32 %v696, %v783
        %v831 = vadd.f32 %v697, %v786
        %v832 = vadd.f32 %v698, %v789
        %v833 = vadd.f32 %v699, %v792
        %v834 = vadd.f32 %v700, %v795
        %v835 = vadd.f32 %v701, %v798
        %v836 = vadd.f32 %v702, %v801
        %v837 = vadd.f32 %v703, %v804
        %v838 = vadd.f32 %v704, %v807
        %v839 = vadd.f32 %v705, %v810
        %v840 = vadd.f32 %v706, %v813
        %v841 = vadd.f32 %v707, %v816
        %v842 = vadd.f32 %v708, %v819
        %v843 = vadd.f32 %v709, %v822
        %v844 = vadd.f32 %v710, %v825
        %v845 = vadd.f32 %v711, %v828
        %v847 = vperm.slane %v340, 0
        %v849 = vadd.f32 %v830, %v847
        %v850 = vadd.f32 %v831, %v847
        %v851 = vadd.f32 %v832, %v847
        %v852 = vadd.f32 %v833, %v847
        %v853 = vadd.f32 %v834, %v847
        %v854 = vadd.f32 %v835, %v847
        %v855 = vadd.f32 %v836, %v847
        %v856 = vadd.f32 %v837, %v847
        %v857 = vadd.f32 %v838, %v847
        %v858 = vadd.f32 %v839, %v847
        %v859 = vadd.f32 %v840, %v847
        %v860 = vadd.f32 %v841, %v847
        %v861 = vadd.f32 %v842, %v847
        %v862 = vadd.f32 %v843, %v847
        %v863 = vadd.f32 %v844, %v847
        %v864 = vadd.f32 %v845, %v847
        %v865 = vxor.u32 %v849, 2147483648
        %v866 = vxor.u32 %v850, 2147483648
        %v867 = vxor.u32 %v851, 2147483648
        %v868 = vxor.u32 %v852, 2147483648
        %v869 = vxor.u32 %v853, 2147483648
        %v870 = vxor.u32 %v854, 2147483648
        %v871 = vxor.u32 %v855, 2147483648
        %v872 = vxor.u32 %v856, 2147483648
        %v873 = vxor.u32 %v857, 2147483648
        %v874 = vxor.u32 %v858, 2147483648
        %v875 = vxor.u32 %v859, 2147483648
        %v876 = vxor.u32 %v860, 2147483648
        %v877 = vxor.u32 %v861, 2147483648
        %v878 = vxor.u32 %v862, 2147483648
        %v879 = vxor.u32 %v863, 2147483648
        %v880 = vxor.u32 %v864, 2147483648
        %v881 = vmul.f32 %v865, 1.442695
        %v882 = vpow.pop %v881
        %v883 = vmul.f32 %v866, 1.442695
        %v884 = vpow.pop %v883
        %v885 = vmul.f32 %v867, 1.442695
        %v886 = vpow.pop %v885
        %v887 = vmul.f32 %v868, 1.442695
        %v888 = vpow.pop %v887
        %v889 = vmul.f32 %v869, 1.442695
        %v890 = vpow.pop %v889
        %v891 = vmul.f32 %v870, 1.442695
        %v892 = vpow.pop %v891
        %v893 = vmul.f32 %v871, 1.442695
        %v894 = vpow.pop %v893
        %v895 = vmul.f32 %v872, 1.442695
        %v896 = vpow.pop %v895
        %v897 = vmul.f32 %v873, 1.442695
        %v898 = vpow.pop %v897
        %v899 = vmul.f32 %v874, 1.442695
        %v900 = vpow.pop %v899
        %v901 = vmul.f32 %v875, 1.442695
        %v902 = vpow.pop %v901
        %v903 = vmul.f32 %v876, 1.442695
        %v904 = vpow.pop %v903
        %v905 = vmul.f32 %v877, 1.442695
        %v906 = vpow.pop %v905
        %v907 = vmul.f32 %v878, 1.442695
        %v908 = vpow.pop %v907
        %v909 = vmul.f32 %v879, 1.442695
        %v910 = vpow.pop %v909
        %v911 = vmul.f32 %v880, 1.442695
        %v912 = vpow.pop %v911
        %v913 = vadd.f32 %v882, 1.0
        %v914 = vadd.f32 %v884, 1.0
        %v915 = vadd.f32 %v886, 1.0
        %v916 = vadd.f32 %v888, 1.0
        %v917 = vadd.f32 %v890, 1.0
        %v918 = vadd.f32 %v892, 1.0
        %v919 = vadd.f32 %v894, 1.0
        %v920 = vadd.f32 %v896, 1.0
        %v921 = vadd.f32 %v898, 1.0
        %v922 = vadd.f32 %v900, 1.0
        %v923 = vadd.f32 %v902, 1.0
        %v924 = vadd.f32 %v904, 1.0
        %v925 = vadd.f32 %v906, 1.0
        %v926 = vadd.f32 %v908, 1.0
        %v927 = vadd.f32 %v910, 1.0
        %v928 = vadd.f32 %v912, 1.0
        %v929 = vrcp.pop %v913
        %v930 = vmul.f32 %v913, %v929
        %v931 = vsub.f32 1.0, %v930
        %v932 = vmul.f32 %v929, %v931
        %v933 = vadd.f32 %v929, %v932
        %vm934 = vweird.f32 %v913
        %vm935 = vweird.f32 %v929
        %vm936 = vmor %vm934, %vm935
        %v937 = vsel %vm936, %v929, %v933
        %v938 = vand.u32 2147483647, %v913
        %vm939 = vcmp.eq.f32.partialorder %v938, 8.507059e+37
        %v940 = vand.u32 %v913, 2147483648
        %v941 = vor.u32 1.1754944e-38, %v940
        %v942 = vsel %vm939, %v941, %v937
        %v943 = vmul.f32 1.0, %v942
        %v944 = vrcp.pop %v914
        %v945 = vmul.f32 %v914, %v944
        %v946 = vsub.f32 1.0, %v945
        %v947 = vmul.f32 %v944, %v946
        %v948 = vadd.f32 %v944, %v947
        %vm949 = vweird.f32 %v914
        %vm950 = vweird.f32 %v944
        %vm951 = vmor %vm949, %vm950
        %v952 = vsel %vm951, %v944, %v948
        %v953 = vand.u32 2147483647, %v914
        %vm954 = vcmp.eq.f32.partialorder %v953, 8.507059e+37
        %v955 = vand.u32 %v914, 2147483648
        %v956 = vor.u32 1.1754944e-38, %v955
        %v957 = vsel %vm954, %v956, %v952
        %v958 = vmul.f32 1.0, %v957
        %v959 = vrcp.pop %v915
        %v960 = vmul.f32 %v915, %v959
        %v961 = vsub.f32 1.0, %v960
        %v962 = vmul.f32 %v959, %v961
        %v963 = vadd.f32 %v959, %v962
        %vm964 = vweird.f32 %v915
        %vm965 = vweird.f32 %v959
        %vm966 = vmor %vm964, %vm965
        %v967 = vsel %vm966, %v959, %v963
        %v968 = vand.u32 2147483647, %v915
        %vm969 = vcmp.eq.f32.partialorder %v968, 8.507059e+37
        %v970 = vand.u32 %v915, 2147483648
        %v971 = vor.u32 1.1754944e-38, %v970
        %v972 = vsel %vm969, %v971, %v967
        %v973 = vmul.f32 1.0, %v972
        %v974 = vrcp.pop %v916
        %v975 = vmul.f32 %v916, %v974
        %v976 = vsub.f32 1.0, %v975
        %v977 = vmul.f32 %v974, %v976
        %v978 = vadd.f32 %v974, %v977
        %vm979 = vweird.f32 %v916
        %vm980 = vweird.f32 %v974
        %vm981 = vmor %vm979, %vm980
        %v982 = vsel %vm981, %v974, %v978
        %v983 = vand.u32 2147483647, %v916
        %vm984 = vcmp.eq.f32.partialorder %v983, 8.507059e+37
        %v985 = vand.u32 %v916, 2147483648
        %v986 = vor.u32 1.1754944e-38, %v985
        %v987 = vsel %vm984, %v986, %v982
        %v988 = vmul.f32 1.0, %v987
        %v989 = vrcp.pop %v917
        %v990 = vmul.f32 %v917, %v989
        %v991 = vsub.f32 1.0, %v990
        %v992 = vmul.f32 %v989, %v991
        %v993 = vadd.f32 %v989, %v992
        %vm994 = vweird.f32 %v917
        %vm995 = vweird.f32 %v989
        %vm996 = vmor %vm994, %vm995
        %v997 = vsel %vm996, %v989, %v993
        %v998 = vand.u32 2147483647, %v917
        %vm999 = vcmp.eq.f32.partialorder %v998, 8.507059e+37
        %v1000 = vand.u32 %v917, 2147483648
        %v1001 = vor.u32 1.1754944e-38, %v1000
        %v1002 = vsel %vm999, %v1001, %v997
        %v1003 = vmul.f32 1.0, %v1002
        %v1004 = vrcp.pop %v918
        %v1005 = vmul.f32 %v918, %v1004
        %v1006 = vsub.f32 1.0, %v1005
        %v1007 = vmul.f32 %v1004, %v1006
        %v1008 = vadd.f32 %v1004, %v1007
        %vm1009 = vweird.f32 %v918
        %vm1010 = vweird.f32 %v1004
        %vm1011 = vmor %vm1009, %vm1010
        %v1012 = vsel %vm1011, %v1004, %v1008
        %v1013 = vand.u32 2147483647, %v918
        %vm1014 = vcmp.eq.f32.partialorder %v1013, 8.507059e+37
        %v1015 = vand.u32 %v918, 2147483648
        %v1016 = vor.u32 1.1754944e-38, %v1015
        %v1017 = vsel %vm1014, %v1016, %v1012
        %v1018 = vmul.f32 1.0, %v1017
        %v1019 = vrcp.pop %v919
        %v1020 = vmul.f32 %v919, %v1019
        %v1021 = vsub.f32 1.0, %v1020
        %v1022 = vmul.f32 %v1019, %v1021
        %v1023 = vadd.f32 %v1019, %v1022
        %vm1024 = vweird.f32 %v919
        %vm1025 = vweird.f32 %v1019
        %vm1026 = vmor %vm1024, %vm1025
        %v1027 = vsel %vm1026, %v1019, %v1023
        %v1028 = vand.u32 2147483647, %v919
        %vm1029 = vcmp.eq.f32.partialorder %v1028, 8.507059e+37
        %v1030 = vand.u32 %v919, 2147483648
        %v1031 = vor.u32 1.1754944e-38, %v1030
        %v1032 = vsel %vm1029, %v1031, %v1027
        %v1033 = vmul.f32 1.0, %v1032
        %v1034 = vrcp.pop %v920
        %v1035 = vmul.f32 %v920, %v1034
        %v1036 = vsub.f32 1.0, %v1035
        %v1037 = vmul.f32 %v1034, %v1036
        %v1038 = vadd.f32 %v1034, %v1037
        %vm1039 = vweird.f32 %v920
        %vm1040 = vweird.f32 %v1034
        %vm1041 = vmor %vm1039, %vm1040
        %v1042 = vsel %vm1041, %v1034, %v1038
        %v1043 = vand.u32 2147483647, %v920
        %vm1044 = vcmp.eq.f32.partialorder %v1043, 8.507059e+37
        %v1045 = vand.u32 %v920, 2147483648
        %v1046 = vor.u32 1.1754944e-38, %v1045
        %v1047 = vsel %vm1044, %v1046, %v1042
        %v1048 = vmul.f32 1.0, %v1047
        %v1049 = vrcp.pop %v921
        %v1050 = vmul.f32 %v921, %v1049
        %v1051 = vsub.f32 1.0, %v1050
        %v1052 = vmul.f32 %v1049, %v1051
        %v1053 = vadd.f32 %v1049, %v1052
        %vm1054 = vweird.f32 %v921
        %vm1055 = vweird.f32 %v1049
        %vm1056 = vmor %vm1054, %vm1055
        %v1057 = vsel %vm1056, %v1049, %v1053
        %v1058 = vand.u32 2147483647, %v921
        %vm1059 = vcmp.eq.f32.partialorder %v1058, 8.507059e+37
        %v1060 = vand.u32 %v921, 2147483648
        %v1061 = vor.u32 1.1754944e-38, %v1060
        %v1062 = vsel %vm1059, %v1061, %v1057
        %v1063 = vmul.f32 1.0, %v1062
        %v1064 = vrcp.pop %v922
        %v1065 = vmul.f32 %v922, %v1064
        %v1066 = vsub.f32 1.0, %v1065
        %v1067 = vmul.f32 %v1064, %v1066
        %v1068 = vadd.f32 %v1064, %v1067
        %vm1069 = vweird.f32 %v922
        %vm1070 = vweird.f32 %v1064
        %vm1071 = vmor %vm1069, %vm1070
        %v1072 = vsel %vm1071, %v1064, %v1068
        %v1073 = vand.u32 2147483647, %v922
        %vm1074 = vcmp.eq.f32.partialorder %v1073, 8.507059e+37
        %v1075 = vand.u32 %v922, 2147483648
        %v1076 = vor.u32 1.1754944e-38, %v1075
        %v1077 = vsel %vm1074, %v1076, %v1072
        %v1078 = vmul.f32 1.0, %v1077
        %v1079 = vrcp.pop %v923
        %v1080 = vmul.f32 %v923, %v1079
        %v1081 = vsub.f32 1.0, %v1080
        %v1082 = vmul.f32 %v1079, %v1081
        %v1083 = vadd.f32 %v1079, %v1082
        %vm1084 = vweird.f32 %v923
        %vm1085 = vweird.f32 %v1079
        %vm1086 = vmor %vm1084, %vm1085
        %v1087 = vsel %vm1086, %v1079, %v1083
        %v1088 = vand.u32 2147483647, %v923
        %vm1089 = vcmp.eq.f32.partialorder %v1088, 8.507059e+37
        %v1090 = vand.u32 %v923, 2147483648
        %v1091 = vor.u32 1.1754944e-38, %v1090
        %v1092 = vsel %vm1089, %v1091, %v1087
        %v1093 = vmul.f32 1.0, %v1092
        %v1094 = vrcp.pop %v924
        %v1095 = vmul.f32 %v924, %v1094
        %v1096 = vsub.f32 1.0, %v1095
        %v1097 = vmul.f32 %v1094, %v1096
        %v1098 = vadd.f32 %v1094, %v1097
        %vm1099 = vweird.f32 %v924
        %vm1100 = vweird.f32 %v1094
        %vm1101 = vmor %vm1099, %vm1100
        %v1102 = vsel %vm1101, %v1094, %v1098
        %v1103 = vand.u32 2147483647, %v924
        %vm1104 = vcmp.eq.f32.partialorder %v1103, 8.507059e+37
        %v1105 = vand.u32 %v924, 2147483648
        %v1106 = vor.u32 1.1754944e-38, %v1105
        %v1107 = vsel %vm1104, %v1106, %v1102
        %v1108 = vmul.f32 1.0, %v1107
        %v1109 = vrcp.pop %v925
        %v1110 = vmul.f32 %v925, %v1109
        %v1111 = vsub.f32 1.0, %v1110
        %v1112 = vmul.f32 %v1109, %v1111
        %v1113 = vadd.f32 %v1109, %v1112
        %vm1114 = vweird.f32 %v925
        %vm1115 = vweird.f32 %v1109
        %vm1116 = vmor %vm1114, %vm1115
        %v1117 = vsel %vm1116, %v1109, %v1113
        %v1118 = vand.u32 2147483647, %v925
        %vm1119 = vcmp.eq.f32.partialorder %v1118, 8.507059e+37
        %v1120 = vand.u32 %v925, 2147483648
        %v1121 = vor.u32 1.1754944e-38, %v1120
        %v1122 = vsel %vm1119, %v1121, %v1117
        %v1123 = vmul.f32 1.0, %v1122
        %v1124 = vrcp.pop %v926
        %v1125 = vmul.f32 %v926, %v1124
        %v1126 = vsub.f32 1.0, %v1125
        %v1127 = vmul.f32 %v1124, %v1126
        %v1128 = vadd.f32 %v1124, %v1127
        %vm1129 = vweird.f32 %v926
        %vm1130 = vweird.f32 %v1124
        %vm1131 = vmor %vm1129, %vm1130
        %v1132 = vsel %vm1131, %v1124, %v1128
        %v1133 = vand.u32 2147483647, %v926
        %vm1134 = vcmp.eq.f32.partialorder %v1133, 8.507059e+37
        %v1135 = vand.u32 %v926, 2147483648
        %v1136 = vor.u32 1.1754944e-38, %v1135
        %v1137 = vsel %vm1134, %v1136, %v1132
        %v1138 = vmul.f32 1.0, %v1137
        %v1139 = vrcp.pop %v927
        %v1140 = vmul.f32 %v927, %v1139
        %v1141 = vsub.f32 1.0, %v1140
        %v1142 = vmul.f32 %v1139, %v1141
        %v1143 = vadd.f32 %v1139, %v1142
        %vm1144 = vweird.f32 %v927
        %vm1145 = vweird.f32 %v1139
        %vm1146 = vmor %vm1144, %vm1145
        %v1147 = vsel %vm1146, %v1139, %v1143
        %v1148 = vand.u32 2147483647, %v927
        %vm1149 = vcmp.eq.f32.partialorder %v1148, 8.507059e+37
        %v1150 = vand.u32 %v927, 2147483648
        %v1151 = vor.u32 1.1754944e-38, %v1150
        %v1152 = vsel %vm1149, %v1151, %v1147
        %v1153 = vmul.f32 1.0, %v1152
        %v1154 = vrcp.pop %v928
        %v1155 = vmul.f32 %v928, %v1154
        %v1156 = vsub.f32 1.0, %v1155
        %v1157 = vmul.f32 %v1154, %v1156
        %v1158 = vadd.f32 %v1154, %v1157
        %vm1159 = vweird.f32 %v928
        %vm1160 = vweird.f32 %v1154
        %vm1161 = vmor %vm1159, %vm1160
        %v1162 = vsel %vm1161, %v1154, %v1158
        %v1163 = vand.u32 2147483647, %v928
        %vm1164 = vcmp.eq.f32.partialorder %v1163, 8.507059e+37
        %v1165 = vand.u32 %v928, 2147483648
        %v1166 = vor.u32 1.1754944e-38, %v1165
        %v1167 = vsel %vm1164, %v1166, %v1162
        %v1168 = vmul.f32 1.0, %v1167
        %v1169 = vmul.f32 %v849, %v943
        %v1170 = vmul.f32 %v850, %v958
        %v1171 = vmul.f32 %v851, %v973
        %v1172 = vmul.f32 %v852, %v988
        %v1173 = vmul.f32 %v853, %v1003
        %v1174 = vmul.f32 %v854, %v1018
        %v1175 = vmul.f32 %v855, %v1033
        %v1176 = vmul.f32 %v856, %v1048
        %v1177 = vmul.f32 %v857, %v1063
        %v1178 = vmul.f32 %v858, %v1078
        %v1179 = vmul.f32 %v859, %v1093
        %v1180 = vmul.f32 %v860, %v1108
        %v1181 = vmul.f32 %v861, %v1123
        %v1182 = vmul.f32 %v862, %v1138
        %v1183 = vmul.f32 %v863, %v1153
        %v1184 = vmul.f32 %v864, %v1168
        %vm1185 = vcmask 64512
        %1186 = vst.msk [vmem:[%s183] sm:$0xff] %vm1185, %v1169
        %1187 = vst.msk [vmem:[%s183 + $0x8] sm:$0xff] %vm1185, %v1170
        %1188 = vst.msk [vmem:[%s183 + $0x10] sm:$0xff] %vm1185, %v1171
        %1189 = vst.msk [vmem:[%s183 + $0x18] sm:$0xff] %vm1185, %v1172
        %1190 = vst.msk [vmem:[%s183 + $0x20] sm:$0xff] %vm1185, %v1173
        %1191 = vst.msk [vmem:[%s183 + $0x28] sm:$0xff] %vm1185, %v1174
        %1192 = vst.msk [vmem:[%s183 + $0x30] sm:$0xff] %vm1185, %v1175
        %1193 = vst.msk [vmem:[%s183 + $0x38] sm:$0xff] %vm1185, %v1176
        %1194 = vst.msk [vmem:[%s183 + $0x40] sm:$0xff] %vm1185, %v1177
        %1195 = vst.msk [vmem:[%s183 + $0x48] sm:$0xff] %vm1185, %v1178
        %1196 = vst.msk [vmem:[%s183 + $0x50] sm:$0xff] %vm1185, %v1179
        %1197 = vst.msk [vmem:[%s183 + $0x58] sm:$0xff] %vm1185, %v1180
        %1198 = vst.msk [vmem:[%s183 + $0x60] sm:$0xff] %vm1185, %v1181
        %1199 = vst.msk [vmem:[%s183 + $0x68] sm:$0xff] %vm1185, %v1182
        %1200 = vst.msk [vmem:[%s183 + $0x70] sm:$0xff] %vm1185, %v1183
        %1201 = vst.msk [vmem:[%s183 + $0x78] sm:$0xff] %vm1185, %v1184
        %s1202 = scalar_lea.vmem %s1, 16
        %v1203 = vld [vmem:[%s1202] sm:$0xf]
        %s1204 = scalar_lea.vmem %s1, 20
        %v1205 = vld [vmem:[%s1204] sm:$0xf]
        %v1207 = vsel %vm344, %v226, 0
        %v1210 = vsel %vm344, %v227, 0
        %v1213 = vsel %vm344, %v228, 0
        %v1216 = vsel %vm344, %v229, 0
        %v1219 = vsel %vm344, %v230, 0
        %v1222 = vsel %vm344, %v231, 0
        %v1225 = vsel %vm344, %v232, 0
        %v1228 = vsel %vm344, %v233, 0
        %v1231 = vsel %vm344, %v234, 0
        %v1234 = vsel %vm344, %v235, 0
        %v1237 = vsel %vm344, %v236, 0
        %v1240 = vsel %vm344, %v237, 0
        %v1243 = vsel %vm344, %v238, 0
        %v1246 = vsel %vm344, %v239, 0
        %v1249 = vsel %vm344, %v240, 0
        %v1252 = vsel %vm344, %v241, 0
        %v1255 = vsel %vm393, %v1205, 0
        %1257 = vmatpush.msra.mxu0 0.0
        %1258 = vmatpush.msra.mxu0 0.0
        %1259 = vmatpush.msra.mxu0 0.0
        %1260 = vmatpush.msra.mxu0 0.0
        %1261 = vmatpush.msra.mxu0 0.0
        %1262 = vmatpush.msra.mxu0 0.0
        %1263 = vmatpush.msra.mxu0 0.0
        %1264 = vmatpush.msra.mxu0 0.0
        %1265 = vmatpush.msra.mxu0 0.0
        %1266 = vmatpush.msra.mxu0 0.0
        %1267 = vmatpush.msra.mxu0 0.0
        %1268 = vmatpush.msra.mxu0 0.0
        %1269 = vmatpush.msra.mxu0 0.0
        %1270 = vmatpush.msra.mxu0 0.0
        %1271 = vmatpush.msra.mxu0 0.0
        %1272 = vmatpush.msra.mxu0 %v1255
        %1273 = vmatmul.f32.gmra.mxu0 %v1207
        %v1274 = vpop.f32.mrf.mxu0
        %v1275 = vadd.f32 0.0, %v1274
        %1276 = vmatmul.f32.gmra.mxu0 %v1210
        %v1277 = vpop.f32.mrf.mxu0
        %v1278 = vadd.f32 0.0, %v1277
        %1279 = vmatmul.f32.gmra.mxu0 %v1213
        %v1280 = vpop.f32.mrf.mxu0
        %v1281 = vadd.f32 0.0, %v1280
        %1282 = vmatmul.f32.gmra.mxu0 %v1216
        %v1283 = vpop.f32.mrf.mxu0
        %v1284 = vadd.f32 0.0, %v1283
        %1285 = vmatmul.f32.gmra.mxu0 %v1219
        %v1286 = vpop.f32.mrf.mxu0
        %v1287 = vadd.f32 0.0, %v1286
        %1288 = vmatmul.f32.gmra.mxu0 %v1222
        %v1289 = vpop.f32.mrf.mxu0
        %v1290 = vadd.f32 0.0, %v1289
        %1291 = vmatmul.f32.gmra.mxu0 %v1225
        %v1292 = vpop.f32.mrf.mxu0
        %v1293 = vadd.f32 0.0, %v1292
        %1294 = vmatmul.f32.gmra.mxu0 %v1228
        %v1295 = vpop.f32.mrf.mxu0
        %v1296 = vadd.f32 0.0, %v1295
        %1297 = vmatmul.f32.gmra.mxu0 %v1231
        %v1298 = vpop.f32.mrf.mxu0
        %v1299 = vadd.f32 0.0, %v1298
        %1300 = vmatmul.f32.gmra.mxu0 %v1234
        %v1301 = vpop.f32.mrf.mxu0
        %v1302 = vadd.f32 0.0, %v1301
        %1303 = vmatmul.f32.gmra.mxu0 %v1237
        %v1304 = vpop.f32.mrf.mxu0
        %v1305 = vadd.f32 0.0, %v1304
        %1306 = vmatmul.f32.gmra.mxu0 %v1240
        %v1307 = vpop.f32.mrf.mxu0
        %v1308 = vadd.f32 0.0, %v1307
        %1309 = vmatmul.f32.gmra.mxu0 %v1243
        %v1310 = vpop.f32.mrf.mxu0
        %v1311 = vadd.f32 0.0, %v1310
        %1312 = vmatmul.f32.gmra.mxu0 %v1246
        %v1313 = vpop.f32.mrf.mxu0
        %v1314 = vadd.f32 0.0, %v1313
        %1315 = vmatmul.f32.gmra.mxu0 %v1249
        %v1316 = vpop.f32.mrf.mxu0
        %v1317 = vadd.f32 0.0, %v1316
        %1318 = vmatmul.f32.gmra.mxu0 %v1252
        %v1319 = vpop.f32.mrf.mxu0
        %v1320 = vadd.f32 0.0, %v1319
        %1321 = vdwg.mxu0
        %v1323 = vsel %vm393, %v1203, 0
        %1325 = vmatpush.msra.mxu0 0.0
        %1326 = vmatpush.msra.mxu0 0.0
        %1327 = vmatpush.msra.mxu0 0.0
        %1328 = vmatpush.msra.mxu0 0.0
        %1329 = vmatpush.msra.mxu0 0.0
        %1330 = vmatpush.msra.mxu0 0.0
        %1331 = vmatpush.msra.mxu0 0.0
        %1332 = vmatpush.msra.mxu0 0.0
        %1333 = vmatpush.msra.mxu0 0.0
        %1334 = vmatpush.msra.mxu0 0.0
        %1335 = vmatpush.msra.mxu0 0.0
        %1336 = vmatpush.msra.mxu0 0.0
        %1337 = vmatpush.msra.mxu0 0.0
        %1338 = vmatpush.msra.mxu0 0.0
        %1339 = vmatpush.msra.mxu0 0.0
        %1340 = vmatpush.msra.mxu0 %v1323
        %1341 = vmatmul.f32.gmra.mxu0 %v346
        %v1342 = vpop.f32.mrf.mxu0
        %v1343 = vadd.f32 %v1275, %v1342
        %1344 = vmatmul.f32.gmra.mxu0 %v349
        %v1345 = vpop.f32.mrf.mxu0
        %v1346 = vadd.f32 %v1278, %v1345
        %1347 = vmatmul.f32.gmra.mxu0 %v352
        %v1348 = vpop.f32.mrf.mxu0
        %v1349 = vadd.f32 %v1281, %v1348
        %1350 = vmatmul.f32.gmra.mxu0 %v355
        %v1351 = vpop.f32.mrf.mxu0
        %v1352 = vadd.f32 %v1284, %v1351
        %1353 = vmatmul.f32.gmra.mxu0 %v358
        %v1354 = vpop.f32.mrf.mxu0
        %v1355 = vadd.f32 %v1287, %v1354
        %1356 = vmatmul.f32.gmra.mxu0 %v361
        %v1357 = vpop.f32.mrf.mxu0
        %v1358 = vadd.f32 %v1290, %v1357
        %1359 = vmatmul.f32.gmra.mxu0 %v364
        %v1360 = vpop.f32.mrf.mxu0
        %v1361 = vadd.f32 %v1293, %v1360
        %1362 = vmatmul.f32.gmra.mxu0 %v367
        %v1363 = vpop.f32.mrf.mxu0
        %v1364 = vadd.f32 %v1296, %v1363
        %1365 = vmatmul.f32.gmra.mxu0 %v370
        %v1366 = vpop.f32.mrf.mxu0
        %v1367 = vadd.f32 %v1299, %v1366
        %1368 = vmatmul.f32.gmra.mxu0 %v373
        %v1369 = vpop.f32.mrf.mxu0
        %v1370 = vadd.f32 %v1302, %v1369
        %1371 = vmatmul.f32.gmra.mxu0 %v376
        %v1372 = vpop.f32.mrf.mxu0
        %v1373 = vadd.f32 %v1305, %v1372
        %1374 = vmatmul.f32.gmra.mxu0 %v379
        %v1375 = vpop.f32.mrf.mxu0
        %v1376 = vadd.f32 %v1308, %v1375
        %1377 = vmatmul.f32.gmra.mxu0 %v382
        %v1378 = vpop.f32.mrf.mxu0
        %v1379 = vadd.f32 %v1311, %v1378
        %1380 = vmatmul.f32.gmra.mxu0 %v385
        %v1381 = vpop.f32.mrf.mxu0
        %v1382 = vadd.f32 %v1314, %v1381
        %1383 = vmatmul.f32.gmra.mxu0 %v388
        %v1384 = vpop.f32.mrf.mxu0
        %v1385 = vadd.f32 %v1317, %v1384
        %1386 = vmatmul.f32.gmra.mxu0 %v391
        %v1387 = vpop.f32.mrf.mxu0
        %v1388 = vadd.f32 %v1320, %v1387
        %1389 = vdwg.mxu0
        %s1390 = scalar_lea.vmem %s1, 24
        %v1391 = vld [vmem:[%s1390] sm:$0xf]
        %v1393 = vsel %vm393, %v1391, 0
        %1395 = vmatpush.msra.mxu0 0.0
        %1396 = vmatpush.msra.mxu0 0.0
        %1397 = vmatpush.msra.mxu0 0.0
        %1398 = vmatpush.msra.mxu0 0.0
        %1399 = vmatpush.msra.mxu0 0.0
        %1400 = vmatpush.msra.mxu0 0.0
        %1401 = vmatpush.msra.mxu0 0.0
        %1402 = vmatpush.msra.mxu0 0.0
        %1403 = vmatpush.msra.mxu0 0.0
        %1404 = vmatpush.msra.mxu0 0.0
        %1405 = vmatpush.msra.mxu0 0.0
        %1406 = vmatpush.msra.mxu0 0.0
        %1407 = vmatpush.msra.mxu0 0.0
        %1408 = vmatpush.msra.mxu0 0.0
        %1409 = vmatpush.msra.mxu0 0.0
        %1410 = vmatpush.msra.mxu0 %v1393
        %1411 = vmatmul.f32.gmra.mxu0 %v715
        %v1412 = vpop.f32.mrf.mxu0
        %v1413 = vadd.f32 0.0, %v1412
        %1414 = vmatmul.f32.gmra.mxu0 %v718
        %v1415 = vpop.f32.mrf.mxu0
        %v1416 = vadd.f32 0.0, %v1415
        %1417 = vmatmul.f32.gmra.mxu0 %v721
        %v1418 = vpop.f32.mrf.mxu0
        %v1419 = vadd.f32 0.0, %v1418
        %1420 = vmatmul.f32.gmra.mxu0 %v724
        %v1421 = vpop.f32.mrf.mxu0
        %v1422 = vadd.f32 0.0, %v1421
        %1423 = vmatmul.f32.gmra.mxu0 %v727
        %v1424 = vpop.f32.mrf.mxu0
        %v1425 = vadd.f32 0.0, %v1424
        %1426 = vmatmul.f32.gmra.mxu0 %v730
        %v1427 = vpop.f32.mrf.mxu0
        %v1428 = vadd.f32 0.0, %v1427
        %1429 = vmatmul.f32.gmra.mxu0 %v733
        %v1430 = vpop.f32.mrf.mxu0
        %v1431 = vadd.f32 0.0, %v1430
        %1432 = vmatmul.f32.gmra.mxu0 %v736
        %v1433 = vpop.f32.mrf.mxu0
        %v1434 = vadd.f32 0.0, %v1433
        %1435 = vmatmul.f32.gmra.mxu0 %v739
        %v1436 = vpop.f32.mrf.mxu0
        %v1437 = vadd.f32 0.0, %v1436
        %1438 = vmatmul.f32.gmra.mxu0 %v742
        %v1439 = vpop.f32.mrf.mxu0
        %v1440 = vadd.f32 0.0, %v1439
        %1441 = vmatmul.f32.gmra.mxu0 %v745
        %v1442 = vpop.f32.mrf.mxu0
        %v1443 = vadd.f32 0.0, %v1442
        %1444 = vmatmul.f32.gmra.mxu0 %v748
        %v1445 = vpop.f32.mrf.mxu0
        %v1446 = vadd.f32 0.0, %v1445
        %1447 = vmatmul.f32.gmra.mxu0 %v751
        %v1448 = vpop.f32.mrf.mxu0
        %v1449 = vadd.f32 0.0, %v1448
        %1450 = vmatmul.f32.gmra.mxu0 %v754
        %v1451 = vpop.f32.mrf.mxu0
        %v1452 = vadd.f32 0.0, %v1451
        %1453 = vmatmul.f32.gmra.mxu0 %v757
        %v1454 = vpop.f32.mrf.mxu0
        %v1455 = vadd.f32 0.0, %v1454
        %1456 = vmatmul.f32.gmra.mxu0 %v760
        %v1457 = vpop.f32.mrf.mxu0
        %v1458 = vadd.f32 0.0, %v1457
        %1459 = vdwg.mxu0
        %v1460 = vadd.f32 %v1343, %v1413
        %v1461 = vadd.f32 %v1346, %v1416
        %v1462 = vadd.f32 %v1349, %v1419
        %v1463 = vadd.f32 %v1352, %v1422
        %v1464 = vadd.f32 %v1355, %v1425
        %v1465 = vadd.f32 %v1358, %v1428
        %v1466 = vadd.f32 %v1361, %v1431
        %v1467 = vadd.f32 %v1364, %v1434
        %v1468 = vadd.f32 %v1367, %v1437
        %v1469 = vadd.f32 %v1370, %v1440
        %v1470 = vadd.f32 %v1373, %v1443
        %v1471 = vadd.f32 %v1376, %v1446
        %v1472 = vadd.f32 %v1379, %v1449
        %v1473 = vadd.f32 %v1382, %v1452
        %v1474 = vadd.f32 %v1385, %v1455
        %v1475 = vadd.f32 %v1388, %v1458
        %s1476 = scalar_lea.vmem %s1, 28
        %v1477 = vld [vmem:[%s1476] sm:$0xf]
        %v1479 = vsel %vm344, %v275, 0
        %v1482 = vsel %vm344, %v276, 0
        %v1485 = vsel %vm344, %v277, 0
        %v1488 = vsel %vm344, %v278, 0
        %v1491 = vsel %vm344, %v279, 0
        %v1494 = vsel %vm344, %v280, 0
        %v1497 = vsel %vm344, %v281, 0
        %v1500 = vsel %vm344, %v282, 0
        %v1503 = vsel %vm344, %v283, 0
        %v1506 = vsel %vm344, %v284, 0
        %v1509 = vsel %vm344, %v285, 0
        %v1512 = vsel %vm344, %v286, 0
        %v1515 = vsel %vm344, %v287, 0
        %v1518 = vsel %vm344, %v288, 0
        %v1521 = vsel %vm344, %v289, 0
        %v1524 = vsel %vm344, %v290, 0
        %v1527 = vsel %vm393, %v1477, 0
        %1529 = vmatpush.msra.mxu0 0.0
        %1530 = vmatpush.msra.mxu0 0.0
        %1531 = vmatpush.msra.mxu0 0.0
        %1532 = vmatpush.msra.mxu0 0.0
        %1533 = vmatpush.msra.mxu0 0.0
        %1534 = vmatpush.msra.mxu0 0.0
        %1535 = vmatpush.msra.mxu0 0.0
        %1536 = vmatpush.msra.mxu0 0.0
        %1537 = vmatpush.msra.mxu0 0.0
        %1538 = vmatpush.msra.mxu0 0.0
        %1539 = vmatpush.msra.mxu0 0.0
        %1540 = vmatpush.msra.mxu0 0.0
        %1541 = vmatpush.msra.mxu0 0.0
        %1542 = vmatpush.msra.mxu0 0.0
        %1543 = vmatpush.msra.mxu0 0.0
        %1544 = vmatpush.msra.mxu0 %v1527
        %1545 = vmatmul.f32.gmra.mxu0 %v1479
        %v1546 = vpop.f32.mrf.mxu0
        %v1547 = vadd.f32 0.0, %v1546
        %1548 = vmatmul.f32.gmra.mxu0 %v1482
        %v1549 = vpop.f32.mrf.mxu0
        %v1550 = vadd.f32 0.0, %v1549
        %1551 = vmatmul.f32.gmra.mxu0 %v1485
        %v1552 = vpop.f32.mrf.mxu0
        %v1553 = vadd.f32 0.0, %v1552
        %1554 = vmatmul.f32.gmra.mxu0 %v1488
        %v1555 = vpop.f32.mrf.mxu0
        %v1556 = vadd.f32 0.0, %v1555
        %1557 = vmatmul.f32.gmra.mxu0 %v1491
        %v1558 = vpop.f32.mrf.mxu0
        %v1559 = vadd.f32 0.0, %v1558
        %1560 = vmatmul.f32.gmra.mxu0 %v1494
        %v1561 = vpop.f32.mrf.mxu0
        %v1562 = vadd.f32 0.0, %v1561
        %1563 = vmatmul.f32.gmra.mxu0 %v1497
        %v1564 = vpop.f32.mrf.mxu0
        %v1565 = vadd.f32 0.0, %v1564
        %1566 = vmatmul.f32.gmra.mxu0 %v1500
        %v1567 = vpop.f32.mrf.mxu0
        %v1568 = vadd.f32 0.0, %v1567
        %1569 = vmatmul.f32.gmra.mxu0 %v1503
        %v1570 = vpop.f32.mrf.mxu0
        %v1571 = vadd.f32 0.0, %v1570
        %1572 = vmatmul.f32.gmra.mxu0 %v1506
        %v1573 = vpop.f32.mrf.mxu0
        %v1574 = vadd.f32 0.0, %v1573
        %1575 = vmatmul.f32.gmra.mxu0 %v1509
        %v1576 = vpop.f32.mrf.mxu0
        %v1577 = vadd.f32 0.0, %v1576
        %1578 = vmatmul.f32.gmra.mxu0 %v1512
        %v1579 = vpop.f32.mrf.mxu0
        %v1580 = vadd.f32 0.0, %v1579
        %1581 = vmatmul.f32.gmra.mxu0 %v1515
        %v1582 = vpop.f32.mrf.mxu0
        %v1583 = vadd.f32 0.0, %v1582
        %1584 = vmatmul.f32.gmra.mxu0 %v1518
        %v1585 = vpop.f32.mrf.mxu0
        %v1586 = vadd.f32 0.0, %v1585
        %1587 = vmatmul.f32.gmra.mxu0 %v1521
        %v1588 = vpop.f32.mrf.mxu0
        %v1589 = vadd.f32 0.0, %v1588
        %1590 = vmatmul.f32.gmra.mxu0 %v1524
        %v1591 = vpop.f32.mrf.mxu0
        %v1592 = vadd.f32 0.0, %v1591
        %1593 = vdwg.mxu0
        %v1594 = vadd.f32 %v1460, %v1547
        %v1595 = vadd.f32 %v1461, %v1550
        %v1596 = vadd.f32 %v1462, %v1553
        %v1597 = vadd.f32 %v1463, %v1556
        %v1598 = vadd.f32 %v1464, %v1559
        %v1599 = vadd.f32 %v1465, %v1562
        %v1600 = vadd.f32 %v1466, %v1565
        %v1601 = vadd.f32 %v1467, %v1568
        %v1602 = vadd.f32 %v1468, %v1571
        %v1603 = vadd.f32 %v1469, %v1574
        %v1604 = vadd.f32 %v1470, %v1577
        %v1605 = vadd.f32 %v1471, %v1580
        %v1606 = vadd.f32 %v1472, %v1583
        %v1607 = vadd.f32 %v1473, %v1586
        %v1608 = vadd.f32 %v1474, %v1589
        %v1609 = vadd.f32 %v1475, %v1592
        %v1610 = vadd.f32 %v1594, %v847
        %v1611 = vadd.f32 %v1595, %v847
        %v1612 = vadd.f32 %v1596, %v847
        %v1613 = vadd.f32 %v1597, %v847
        %v1614 = vadd.f32 %v1598, %v847
        %v1615 = vadd.f32 %v1599, %v847
        %v1616 = vadd.f32 %v1600, %v847
        %v1617 = vadd.f32 %v1601, %v847
        %v1618 = vadd.f32 %v1602, %v847
        %v1619 = vadd.f32 %v1603, %v847
        %v1620 = vadd.f32 %v1604, %v847
        %v1621 = vadd.f32 %v1605, %v847
        %v1622 = vadd.f32 %v1606, %v847
        %v1623 = vadd.f32 %v1607, %v847
        %v1624 = vadd.f32 %v1608, %v847
        %v1625 = vadd.f32 %v1609, %v847
        %v1626 = vxor.u32 %v1610, 2147483648
        %v1627 = vxor.u32 %v1611, 2147483648
        %v1628 = vxor.u32 %v1612, 2147483648
        %v1629 = vxor.u32 %v1613, 2147483648
        %v1630 = vxor.u32 %v1614, 2147483648
        %v1631 = vxor.u32 %v1615, 2147483648
        %v1632 = vxor.u32 %v1616, 2147483648
        %v1633 = vxor.u32 %v1617, 2147483648
        %v1634 = vxor.u32 %v1618, 2147483648
        %v1635 = vxor.u32 %v1619, 2147483648
        %v1636 = vxor.u32 %v1620, 2147483648
        %v1637 = vxor.u32 %v1621, 2147483648
        %v1638 = vxor.u32 %v1622, 2147483648
        %v1639 = vxor.u32 %v1623, 2147483648
        %v1640 = vxor.u32 %v1624, 2147483648
        %v1641 = vxor.u32 %v1625, 2147483648
        %v1642 = vmul.f32 %v1626, 1.442695
        %v1643 = vpow.pop %v1642
        %v1644 = vmul.f32 %v1627, 1.442695
        %v1645 = vpow.pop %v1644
        %v1646 = vmul.f32 %v1628, 1.442695
        %v1647 = vpow.pop %v1646
        %v1648 = vmul.f32 %v1629, 1.442695
        %v1649 = vpow.pop %v1648
        %v1650 = vmul.f32 %v1630, 1.442695
        %v1651 = vpow.pop %v1650
        %v1652 = vmul.f32 %v1631, 1.442695
        %v1653 = vpow.pop %v1652
        %v1654 = vmul.f32 %v1632, 1.442695
        %v1655 = vpow.pop %v1654
        %v1656 = vmul.f32 %v1633, 1.442695
        %v1657 = vpow.pop %v1656
        %v1658 = vmul.f32 %v1634, 1.442695
        %v1659 = vpow.pop %v1658
        %v1660 = vmul.f32 %v1635, 1.442695
        %v1661 = vpow.pop %v1660
        %v1662 = vmul.f32 %v1636, 1.442695
        %v1663 = vpow.pop %v1662
        %v1664 = vmul.f32 %v1637, 1.442695
        %v1665 = vpow.pop %v1664
        %v1666 = vmul.f32 %v1638, 1.442695
        %v1667 = vpow.pop %v1666
        %v1668 = vmul.f32 %v1639, 1.442695
        %v1669 = vpow.pop %v1668
        %v1670 = vmul.f32 %v1640, 1.442695
        %v1671 = vpow.pop %v1670
        %v1672 = vmul.f32 %v1641, 1.442695
        %v1673 = vpow.pop %v1672
        %v1674 = vadd.f32 %v1643, 1.0
        %v1675 = vadd.f32 %v1645, 1.0
        %v1676 = vadd.f32 %v1647, 1.0
        %v1677 = vadd.f32 %v1649, 1.0
        %v1678 = vadd.f32 %v1651, 1.0
        %v1679 = vadd.f32 %v1653, 1.0
        %v1680 = vadd.f32 %v1655, 1.0
        %v1681 = vadd.f32 %v1657, 1.0
        %v1682 = vadd.f32 %v1659, 1.0
        %v1683 = vadd.f32 %v1661, 1.0
        %v1684 = vadd.f32 %v1663, 1.0
        %v1685 = vadd.f32 %v1665, 1.0
        %v1686 = vadd.f32 %v1667, 1.0
        %v1687 = vadd.f32 %v1669, 1.0
        %v1688 = vadd.f32 %v1671, 1.0
        %v1689 = vadd.f32 %v1673, 1.0
        %v1690 = vrcp.pop %v1674
        %v1691 = vmul.f32 %v1674, %v1690
        %v1692 = vsub.f32 1.0, %v1691
        %v1693 = vmul.f32 %v1690, %v1692
        %v1694 = vadd.f32 %v1690, %v1693
        %vm1695 = vweird.f32 %v1674
        %vm1696 = vweird.f32 %v1690
        %vm1697 = vmor %vm1695, %vm1696
        %v1698 = vsel %vm1697, %v1690, %v1694
        %v1699 = vand.u32 2147483647, %v1674
        %vm1700 = vcmp.eq.f32.partialorder %v1699, 8.507059e+37
        %v1701 = vand.u32 %v1674, 2147483648
        %v1702 = vor.u32 1.1754944e-38, %v1701
        %v1703 = vsel %vm1700, %v1702, %v1698
        %v1704 = vmul.f32 1.0, %v1703
        %v1705 = vrcp.pop %v1675
        %v1706 = vmul.f32 %v1675, %v1705
        %v1707 = vsub.f32 1.0, %v1706
        %v1708 = vmul.f32 %v1705, %v1707
        %v1709 = vadd.f32 %v1705, %v1708
        %vm1710 = vweird.f32 %v1675
        %vm1711 = vweird.f32 %v1705
        %vm1712 = vmor %vm1710, %vm1711
        %v1713 = vsel %vm1712, %v1705, %v1709
        %v1714 = vand.u32 2147483647, %v1675
        %vm1715 = vcmp.eq.f32.partialorder %v1714, 8.507059e+37
        %v1716 = vand.u32 %v1675, 2147483648
        %v1717 = vor.u32 1.1754944e-38, %v1716
        %v1718 = vsel %vm1715, %v1717, %v1713
        %v1719 = vmul.f32 1.0, %v1718
        %v1720 = vrcp.pop %v1676
        %v1721 = vmul.f32 %v1676, %v1720
        %v1722 = vsub.f32 1.0, %v1721
        %v1723 = vmul.f32 %v1720, %v1722
        %v1724 = vadd.f32 %v1720, %v1723
        %vm1725 = vweird.f32 %v1676
        %vm1726 = vweird.f32 %v1720
        %vm1727 = vmor %vm1725, %vm1726
        %v1728 = vsel %vm1727, %v1720, %v1724
        %v1729 = vand.u32 2147483647, %v1676
        %vm1730 = vcmp.eq.f32.partialorder %v1729, 8.507059e+37
        %v1731 = vand.u32 %v1676, 2147483648
        %v1732 = vor.u32 1.1754944e-38, %v1731
        %v1733 = vsel %vm1730, %v1732, %v1728
        %v1734 = vmul.f32 1.0, %v1733
        %v1735 = vrcp.pop %v1677
        %v1736 = vmul.f32 %v1677, %v1735
        %v1737 = vsub.f32 1.0, %v1736
        %v1738 = vmul.f32 %v1735, %v1737
        %v1739 = vadd.f32 %v1735, %v1738
        %vm1740 = vweird.f32 %v1677
        %vm1741 = vweird.f32 %v1735
        %vm1742 = vmor %vm1740, %vm1741
        %v1743 = vsel %vm1742, %v1735, %v1739
        %v1744 = vand.u32 2147483647, %v1677
        %vm1745 = vcmp.eq.f32.partialorder %v1744, 8.507059e+37
        %v1746 = vand.u32 %v1677, 2147483648
        %v1747 = vor.u32 1.1754944e-38, %v1746
        %v1748 = vsel %vm1745, %v1747, %v1743
        %v1749 = vmul.f32 1.0, %v1748
        %v1750 = vrcp.pop %v1678
        %v1751 = vmul.f32 %v1678, %v1750
        %v1752 = vsub.f32 1.0, %v1751
        %v1753 = vmul.f32 %v1750, %v1752
        %v1754 = vadd.f32 %v1750, %v1753
        %vm1755 = vweird.f32 %v1678
        %vm1756 = vweird.f32 %v1750
        %vm1757 = vmor %vm1755, %vm1756
        %v1758 = vsel %vm1757, %v1750, %v1754
        %v1759 = vand.u32 2147483647, %v1678
        %vm1760 = vcmp.eq.f32.partialorder %v1759, 8.507059e+37
        %v1761 = vand.u32 %v1678, 2147483648
        %v1762 = vor.u32 1.1754944e-38, %v1761
        %v1763 = vsel %vm1760, %v1762, %v1758
        %v1764 = vmul.f32 1.0, %v1763
        %v1765 = vrcp.pop %v1679
        %v1766 = vmul.f32 %v1679, %v1765
        %v1767 = vsub.f32 1.0, %v1766
        %v1768 = vmul.f32 %v1765, %v1767
        %v1769 = vadd.f32 %v1765, %v1768
        %vm1770 = vweird.f32 %v1679
        %vm1771 = vweird.f32 %v1765
        %vm1772 = vmor %vm1770, %vm1771
        %v1773 = vsel %vm1772, %v1765, %v1769
        %v1774 = vand.u32 2147483647, %v1679
        %vm1775 = vcmp.eq.f32.partialorder %v1774, 8.507059e+37
        %v1776 = vand.u32 %v1679, 2147483648
        %v1777 = vor.u32 1.1754944e-38, %v1776
        %v1778 = vsel %vm1775, %v1777, %v1773
        %v1779 = vmul.f32 1.0, %v1778
        %v1780 = vrcp.pop %v1680
        %v1781 = vmul.f32 %v1680, %v1780
        %v1782 = vsub.f32 1.0, %v1781
        %v1783 = vmul.f32 %v1780, %v1782
        %v1784 = vadd.f32 %v1780, %v1783
        %vm1785 = vweird.f32 %v1680
        %vm1786 = vweird.f32 %v1780
        %vm1787 = vmor %vm1785, %vm1786
        %v1788 = vsel %vm1787, %v1780, %v1784
        %v1789 = vand.u32 2147483647, %v1680
        %vm1790 = vcmp.eq.f32.partialorder %v1789, 8.507059e+37
        %v1791 = vand.u32 %v1680, 2147483648
        %v1792 = vor.u32 1.1754944e-38, %v1791
        %v1793 = vsel %vm1790, %v1792, %v1788
        %v1794 = vmul.f32 1.0, %v1793
        %v1795 = vrcp.pop %v1681
        %v1796 = vmul.f32 %v1681, %v1795
        %v1797 = vsub.f32 1.0, %v1796
        %v1798 = vmul.f32 %v1795, %v1797
        %v1799 = vadd.f32 %v1795, %v1798
        %vm1800 = vweird.f32 %v1681
        %vm1801 = vweird.f32 %v1795
        %vm1802 = vmor %vm1800, %vm1801
        %v1803 = vsel %vm1802, %v1795, %v1799
        %v1804 = vand.u32 2147483647, %v1681
        %vm1805 = vcmp.eq.f32.partialorder %v1804, 8.507059e+37
        %v1806 = vand.u32 %v1681, 2147483648
        %v1807 = vor.u32 1.1754944e-38, %v1806
        %v1808 = vsel %vm1805, %v1807, %v1803
        %v1809 = vmul.f32 1.0, %v1808
        %v1810 = vrcp.pop %v1682
        %v1811 = vmul.f32 %v1682, %v1810
        %v1812 = vsub.f32 1.0, %v1811
        %v1813 = vmul.f32 %v1810, %v1812
        %v1814 = vadd.f32 %v1810, %v1813
        %vm1815 = vweird.f32 %v1682
        %vm1816 = vweird.f32 %v1810
        %vm1817 = vmor %vm1815, %vm1816
        %v1818 = vsel %vm1817, %v1810, %v1814
        %v1819 = vand.u32 2147483647, %v1682
        %vm1820 = vcmp.eq.f32.partialorder %v1819, 8.507059e+37
        %v1821 = vand.u32 %v1682, 2147483648
        %v1822 = vor.u32 1.1754944e-38, %v1821
        %v1823 = vsel %vm1820, %v1822, %v1818
        %v1824 = vmul.f32 1.0, %v1823
        %v1825 = vrcp.pop %v1683
        %v1826 = vmul.f32 %v1683, %v1825
        %v1827 = vsub.f32 1.0, %v1826
        %v1828 = vmul.f32 %v1825, %v1827
        %v1829 = vadd.f32 %v1825, %v1828
        %vm1830 = vweird.f32 %v1683
        %vm1831 = vweird.f32 %v1825
        %vm1832 = vmor %vm1830, %vm1831
        %v1833 = vsel %vm1832, %v1825, %v1829
        %v1834 = vand.u32 2147483647, %v1683
        %vm1835 = vcmp.eq.f32.partialorder %v1834, 8.507059e+37
        %v1836 = vand.u32 %v1683, 2147483648
        %v1837 = vor.u32 1.1754944e-38, %v1836
        %v1838 = vsel %vm1835, %v1837, %v1833
        %v1839 = vmul.f32 1.0, %v1838
        %v1840 = vrcp.pop %v1684
        %v1841 = vmul.f32 %v1684, %v1840
        %v1842 = vsub.f32 1.0, %v1841
        %v1843 = vmul.f32 %v1840, %v1842
        %v1844 = vadd.f32 %v1840, %v1843
        %vm1845 = vweird.f32 %v1684
        %vm1846 = vweird.f32 %v1840
        %vm1847 = vmor %vm1845, %vm1846
        %v1848 = vsel %vm1847, %v1840, %v1844
        %v1849 = vand.u32 2147483647, %v1684
        %vm1850 = vcmp.eq.f32.partialorder %v1849, 8.507059e+37
        %v1851 = vand.u32 %v1684, 2147483648
        %v1852 = vor.u32 1.1754944e-38, %v1851
        %v1853 = vsel %vm1850, %v1852, %v1848
        %v1854 = vmul.f32 1.0, %v1853
        %v1855 = vrcp.pop %v1685
        %v1856 = vmul.f32 %v1685, %v1855
        %v1857 = vsub.f32 1.0, %v1856
        %v1858 = vmul.f32 %v1855, %v1857
        %v1859 = vadd.f32 %v1855, %v1858
        %vm1860 = vweird.f32 %v1685
        %vm1861 = vweird.f32 %v1855
        %vm1862 = vmor %vm1860, %vm1861
        %v1863 = vsel %vm1862, %v1855, %v1859
        %v1864 = vand.u32 2147483647, %v1685
        %vm1865 = vcmp.eq.f32.partialorder %v1864, 8.507059e+37
        %v1866 = vand.u32 %v1685, 2147483648
        %v1867 = vor.u32 1.1754944e-38, %v1866
        %v1868 = vsel %vm1865, %v1867, %v1863
        %v1869 = vmul.f32 1.0, %v1868
        %v1870 = vrcp.pop %v1686
        %v1871 = vmul.f32 %v1686, %v1870
        %v1872 = vsub.f32 1.0, %v1871
        %v1873 = vmul.f32 %v1870, %v1872
        %v1874 = vadd.f32 %v1870, %v1873
        %vm1875 = vweird.f32 %v1686
        %vm1876 = vweird.f32 %v1870
        %vm1877 = vmor %vm1875, %vm1876
        %v1878 = vsel %vm1877, %v1870, %v1874
        %v1879 = vand.u32 2147483647, %v1686
        %vm1880 = vcmp.eq.f32.partialorder %v1879, 8.507059e+37
        %v1881 = vand.u32 %v1686, 2147483648
        %v1882 = vor.u32 1.1754944e-38, %v1881
        %v1883 = vsel %vm1880, %v1882, %v1878
        %v1884 = vmul.f32 1.0, %v1883
        %v1885 = vrcp.pop %v1687
        %v1886 = vmul.f32 %v1687, %v1885
        %v1887 = vsub.f32 1.0, %v1886
        %v1888 = vmul.f32 %v1885, %v1887
        %v1889 = vadd.f32 %v1885, %v1888
        %vm1890 = vweird.f32 %v1687
        %vm1891 = vweird.f32 %v1885
        %vm1892 = vmor %vm1890, %vm1891
        %v1893 = vsel %vm1892, %v1885, %v1889
        %v1894 = vand.u32 2147483647, %v1687
        %vm1895 = vcmp.eq.f32.partialorder %v1894, 8.507059e+37
        %v1896 = vand.u32 %v1687, 2147483648
        %v1897 = vor.u32 1.1754944e-38, %v1896
        %v1898 = vsel %vm1895, %v1897, %v1893
        %v1899 = vmul.f32 1.0, %v1898
        %v1900 = vrcp.pop %v1688
        %v1901 = vmul.f32 %v1688, %v1900
        %v1902 = vsub.f32 1.0, %v1901
        %v1903 = vmul.f32 %v1900, %v1902
        %v1904 = vadd.f32 %v1900, %v1903
        %vm1905 = vweird.f32 %v1688
        %vm1906 = vweird.f32 %v1900
        %vm1907 = vmor %vm1905, %vm1906
        %v1908 = vsel %vm1907, %v1900, %v1904
        %v1909 = vand.u32 2147483647, %v1688
        %vm1910 = vcmp.eq.f32.partialorder %v1909, 8.507059e+37
        %v1911 = vand.u32 %v1688, 2147483648
        %v1912 = vor.u32 1.1754944e-38, %v1911
        %v1913 = vsel %vm1910, %v1912, %v1908
        %v1914 = vmul.f32 1.0, %v1913
        %v1915 = vrcp.pop %v1689
        %v1916 = vmul.f32 %v1689, %v1915
        %v1917 = vsub.f32 1.0, %v1916
        %v1918 = vmul.f32 %v1915, %v1917
        %v1919 = vadd.f32 %v1915, %v1918
        %vm1920 = vweird.f32 %v1689
        %vm1921 = vweird.f32 %v1915
        %vm1922 = vmor %vm1920, %vm1921
        %v1923 = vsel %vm1922, %v1915, %v1919
        %v1924 = vand.u32 2147483647, %v1689
        %vm1925 = vcmp.eq.f32.partialorder %v1924, 8.507059e+37
        %v1926 = vand.u32 %v1689, 2147483648
        %v1927 = vor.u32 1.1754944e-38, %v1926
        %v1928 = vsel %vm1925, %v1927, %v1923
        %v1929 = vmul.f32 1.0, %v1928
        %v1930 = vmul.f32 %v1610, %v1704
        %v1931 = vmul.f32 %v1611, %v1719
        %v1932 = vmul.f32 %v1612, %v1734
        %v1933 = vmul.f32 %v1613, %v1749
        %v1934 = vmul.f32 %v1614, %v1764
        %v1935 = vmul.f32 %v1615, %v1779
        %v1936 = vmul.f32 %v1616, %v1794
        %v1937 = vmul.f32 %v1617, %v1809
        %v1938 = vmul.f32 %v1618, %v1824
        %v1939 = vmul.f32 %v1619, %v1839
        %v1940 = vmul.f32 %v1620, %v1854
        %v1941 = vmul.f32 %v1621, %v1869
        %v1942 = vmul.f32 %v1622, %v1884
        %v1943 = vmul.f32 %v1623, %v1899
        %v1944 = vmul.f32 %v1624, %v1914
        %v1945 = vmul.f32 %v1625, %v1929
        %s1946 = scalar_lea.vmem %s183, 128 [#allocation2]
        %1947 = vst.msk [vmem:[%s1946] sm:$0xff] %vm1185, %v1930
        %1948 = vst.msk [vmem:[%s1946 + $0x8] sm:$0xff] %vm1185, %v1931
        %1949 = vst.msk [vmem:[%s1946 + $0x10] sm:$0xff] %vm1185, %v1932
        %1950 = vst.msk [vmem:[%s1946 + $0x18] sm:$0xff] %vm1185, %v1933
        %1951 = vst.msk [vmem:[%s1946 + $0x20] sm:$0xff] %vm1185, %v1934
        %1952 = vst.msk [vmem:[%s1946 + $0x28] sm:$0xff] %vm1185, %v1935
        %1953 = vst.msk [vmem:[%s1946 + $0x30] sm:$0xff] %vm1185, %v1936
        %1954 = vst.msk [vmem:[%s1946 + $0x38] sm:$0xff] %vm1185, %v1937
        %1955 = vst.msk [vmem:[%s1946 + $0x40] sm:$0xff] %vm1185, %v1938
        %1956 = vst.msk [vmem:[%s1946 + $0x48] sm:$0xff] %vm1185, %v1939
        %1957 = vst.msk [vmem:[%s1946 + $0x50] sm:$0xff] %vm1185, %v1940
        %1958 = vst.msk [vmem:[%s1946 + $0x58] sm:$0xff] %vm1185, %v1941
        %1959 = vst.msk [vmem:[%s1946 + $0x60] sm:$0xff] %vm1185, %v1942
        %1960 = vst.msk [vmem:[%s1946 + $0x68] sm:$0xff] %vm1185, %v1943
        %1961 = vst.msk [vmem:[%s1946 + $0x70] sm:$0xff] %vm1185, %v1944
        %1962 = vst.msk [vmem:[%s1946 + $0x78] sm:$0xff] %vm1185, %v1945
        %s1963 = scalar_lea.vmem %s1, 32
        %v1964 = vld [vmem:[%s1963] sm:$0xf]
        %s1965 = scalar_lea.vmem %s1, 36
        %v1966 = vld [vmem:[%s1965] sm:$0xf]
        %v1968 = vsel %vm393, %v1966, 0
        %1970 = vmatpush.msra.mxu0 0.0
        %1971 = vmatpush.msra.mxu0 0.0
        %1972 = vmatpush.msra.mxu0 0.0
        %1973 = vmatpush.msra.mxu0 0.0
        %1974 = vmatpush.msra.mxu0 0.0
        %1975 = vmatpush.msra.mxu0 0.0
        %1976 = vmatpush.msra.mxu0 0.0
        %1977 = vmatpush.msra.mxu0 0.0
        %1978 = vmatpush.msra.mxu0 0.0
        %1979 = vmatpush.msra.mxu0 0.0
        %1980 = vmatpush.msra.mxu0 0.0
        %1981 = vmatpush.msra.mxu0 0.0
        %1982 = vmatpush.msra.mxu0 0.0
        %1983 = vmatpush.msra.mxu0 0.0
        %1984 = vmatpush.msra.mxu0 0.0
        %1985 = vmatpush.msra.mxu0 %v1968
        %1986 = vmatmul.f32.gmra.mxu0 %v715
        %v1987 = vpop.f32.mrf.mxu0
        %v1988 = vadd.f32 0.0, %v1987
        %1989 = vmatmul.f32.gmra.mxu0 %v718
        %v1990 = vpop.f32.mrf.mxu0
        %v1991 = vadd.f32 0.0, %v1990
        %1992 = vmatmul.f32.gmra.mxu0 %v721
        %v1993 = vpop.f32.mrf.mxu0
        %v1994 = vadd.f32 0.0, %v1993
        %1995 = vmatmul.f32.gmra.mxu0 %v724
        %v1996 = vpop.f32.mrf.mxu0
        %v1997 = vadd.f32 0.0, %v1996
        %1998 = vmatmul.f32.gmra.mxu0 %v727
        %v1999 = vpop.f32.mrf.mxu0
        %v2000 = vadd.f32 0.0, %v1999
        %2001 = vmatmul.f32.gmra.mxu0 %v730
        %v2002 = vpop.f32.mrf.mxu0
        %v2003 = vadd.f32 0.0, %v2002
        %2004 = vmatmul.f32.gmra.mxu0 %v733
        %v2005 = vpop.f32.mrf.mxu0
        %v2006 = vadd.f32 0.0, %v2005
        %2007 = vmatmul.f32.gmra.mxu0 %v736
        %v2008 = vpop.f32.mrf.mxu0
        %v2009 = vadd.f32 0.0, %v2008
        %2010 = vmatmul.f32.gmra.mxu0 %v739
        %v2011 = vpop.f32.mrf.mxu0
        %v2012 = vadd.f32 0.0, %v2011
        %2013 = vmatmul.f32.gmra.mxu0 %v742
        %v2014 = vpop.f32.mrf.mxu0
        %v2015 = vadd.f32 0.0, %v2014
        %2016 = vmatmul.f32.gmra.mxu0 %v745
        %v2017 = vpop.f32.mrf.mxu0
        %v2018 = vadd.f32 0.0, %v2017
        %2019 = vmatmul.f32.gmra.mxu0 %v748
        %v2020 = vpop.f32.mrf.mxu0
        %v2021 = vadd.f32 0.0, %v2020
        %2022 = vmatmul.f32.gmra.mxu0 %v751
        %v2023 = vpop.f32.mrf.mxu0
        %v2024 = vadd.f32 0.0, %v2023
        %2025 = vmatmul.f32.gmra.mxu0 %v754
        %v2026 = vpop.f32.mrf.mxu0
        %v2027 = vadd.f32 0.0, %v2026
        %2028 = vmatmul.f32.gmra.mxu0 %v757
        %v2029 = vpop.f32.mrf.mxu0
        %v2030 = vadd.f32 0.0, %v2029
        %2031 = vmatmul.f32.gmra.mxu0 %v760
        %v2032 = vpop.f32.mrf.mxu0
        %v2033 = vadd.f32 0.0, %v2032
        %2034 = vdwg.mxu0
        %v2036 = vsel %vm393, %v1964, 0
        %2038 = vmatpush.msra.mxu0 0.0
        %2039 = vmatpush.msra.mxu0 0.0
        %2040 = vmatpush.msra.mxu0 0.0
        %2041 = vmatpush.msra.mxu0 0.0
        %2042 = vmatpush.msra.mxu0 0.0
        %2043 = vmatpush.msra.mxu0 0.0
        %2044 = vmatpush.msra.mxu0 0.0
        %2045 = vmatpush.msra.mxu0 0.0
        %2046 = vmatpush.msra.mxu0 0.0
        %2047 = vmatpush.msra.mxu0 0.0
        %2048 = vmatpush.msra.mxu0 0.0
        %2049 = vmatpush.msra.mxu0 0.0
        %2050 = vmatpush.msra.mxu0 0.0
        %2051 = vmatpush.msra.mxu0 0.0
        %2052 = vmatpush.msra.mxu0 0.0
        %2053 = vmatpush.msra.mxu0 %v2036
        %2054 = vmatmul.f32.gmra.mxu0 %v581
        %v2055 = vpop.f32.mrf.mxu0
        %v2056 = vadd.f32 %v1988, %v2055
        %2057 = vmatmul.f32.gmra.mxu0 %v584
        %v2058 = vpop.f32.mrf.mxu0
        %v2059 = vadd.f32 %v1991, %v2058
        %2060 = vmatmul.f32.gmra.mxu0 %v587
        %v2061 = vpop.f32.mrf.mxu0
        %v2062 = vadd.f32 %v1994, %v2061
        %2063 = vmatmul.f32.gmra.mxu0 %v590
        %v2064 = vpop.f32.mrf.mxu0
        %v2065 = vadd.f32 %v1997, %v2064
        %2066 = vmatmul.f32.gmra.mxu0 %v593
        %v2067 = vpop.f32.mrf.mxu0
        %v2068 = vadd.f32 %v2000, %v2067
        %2069 = vmatmul.f32.gmra.mxu0 %v596
        %v2070 = vpop.f32.mrf.mxu0
        %v2071 = vadd.f32 %v2003, %v2070
        %2072 = vmatmul.f32.gmra.mxu0 %v599
        %v2073 = vpop.f32.mrf.mxu0
        %v2074 = vadd.f32 %v2006, %v2073
        %2075 = vmatmul.f32.gmra.mxu0 %v602
        %v2076 = vpop.f32.mrf.mxu0
        %v2077 = vadd.f32 %v2009, %v2076
        %2078 = vmatmul.f32.gmra.mxu0 %v605
        %v2079 = vpop.f32.mrf.mxu0
        %v2080 = vadd.f32 %v2012, %v2079
        %2081 = vmatmul.f32.gmra.mxu0 %v608
        %v2082 = vpop.f32.mrf.mxu0
        %v2083 = vadd.f32 %v2015, %v2082
        %2084 = vmatmul.f32.gmra.mxu0 %v611
        %v2085 = vpop.f32.mrf.mxu0
        %v2086 = vadd.f32 %v2018, %v2085
        %2087 = vmatmul.f32.gmra.mxu0 %v614
        %v2088 = vpop.f32.mrf.mxu0
        %v2089 = vadd.f32 %v2021, %v2088
        %2090 = vmatmul.f32.gmra.mxu0 %v617
        %v2091 = vpop.f32.mrf.mxu0
        %v2092 = vadd.f32 %v2024, %v2091
        %2093 = vmatmul.f32.gmra.mxu0 %v620
        %v2094 = vpop.f32.mrf.mxu0
        %v2095 = vadd.f32 %v2027, %v2094
        %2096 = vmatmul.f32.gmra.mxu0 %v623
        %v2097 = vpop.f32.mrf.mxu0
        %v2098 = vadd.f32 %v2030, %v2097
        %2099 = vmatmul.f32.gmra.mxu0 %v626
        %v2100 = vpop.f32.mrf.mxu0
        %v2101 = vadd.f32 %v2033, %v2100
        %2102 = vdwg.mxu0
        %s2103 = scalar_lea.vmem %s1, 40
        %v2104 = vld [vmem:[%s2103] sm:$0xf]
        %v2106 = vsel %vm344, %v292, 0
        %v2109 = vsel %vm344, %v293, 0
        %v2112 = vsel %vm344, %v294, 0
        %v2115 = vsel %vm344, %v295, 0
        %v2118 = vsel %vm344, %v296, 0
        %v2121 = vsel %vm344, %v297, 0
        %v2124 = vsel %vm344, %v298, 0
        %v2127 = vsel %vm344, %v299, 0
        %v2130 = vsel %vm344, %v300, 0
        %v2133 = vsel %vm344, %v301, 0
        %v2136 = vsel %vm344, %v302, 0
        %v2139 = vsel %vm344, %v303, 0
        %v2142 = vsel %vm344, %v304, 0
        %v2145 = vsel %vm344, %v305, 0
        %v2148 = vsel %vm344, %v306, 0
        %v2151 = vsel %vm344, %v307, 0
        %v2154 = vsel %vm393, %v2104, 0
        %2156 = vmatpush.msra.mxu0 0.0
        %2157 = vmatpush.msra.mxu0 0.0
        %2158 = vmatpush.msra.mxu0 0.0
        %2159 = vmatpush.msra.mxu0 0.0
        %2160 = vmatpush.msra.mxu0 0.0
        %2161 = vmatpush.msra.mxu0 0.0
        %2162 = vmatpush.msra.mxu0 0.0
        %2163 = vmatpush.msra.mxu0 0.0
        %2164 = vmatpush.msra.mxu0 0.0
        %2165 = vmatpush.msra.mxu0 0.0
        %2166 = vmatpush.msra.mxu0 0.0
        %2167 = vmatpush.msra.mxu0 0.0
        %2168 = vmatpush.msra.mxu0 0.0
        %2169 = vmatpush.msra.mxu0 0.0
        %2170 = vmatpush.msra.mxu0 0.0
        %2171 = vmatpush.msra.mxu0 %v2154
        %2172 = vmatmul.f32.gmra.mxu0 %v2106
        %v2173 = vpop.f32.mrf.mxu0
        %v2174 = vadd.f32 0.0, %v2173
        %2175 = vmatmul.f32.gmra.mxu0 %v2109
        %v2176 = vpop.f32.mrf.mxu0
        %v2177 = vadd.f32 0.0, %v2176
        %2178 = vmatmul.f32.gmra.mxu0 %v2112
        %v2179 = vpop.f32.mrf.mxu0
        %v2180 = vadd.f32 0.0, %v2179
        %2181 = vmatmul.f32.gmra.mxu0 %v2115
        %v2182 = vpop.f32.mrf.mxu0
        %v2183 = vadd.f32 0.0, %v2182
        %2184 = vmatmul.f32.gmra.mxu0 %v2118
        %v2185 = vpop.f32.mrf.mxu0
        %v2186 = vadd.f32 0.0, %v2185
        %2187 = vmatmul.f32.gmra.mxu0 %v2121
        %v2188 = vpop.f32.mrf.mxu0
        %v2189 = vadd.f32 0.0, %v2188
        %2190 = vmatmul.f32.gmra.mxu0 %v2124
        %v2191 = vpop.f32.mrf.mxu0
        %v2192 = vadd.f32 0.0, %v2191
        %2193 = vmatmul.f32.gmra.mxu0 %v2127
        %v2194 = vpop.f32.mrf.mxu0
        %v2195 = vadd.f32 0.0, %v2194
        %2196 = vmatmul.f32.gmra.mxu0 %v2130
        %v2197 = vpop.f32.mrf.mxu0
        %v2198 = vadd.f32 0.0, %v2197
        %2199 = vmatmul.f32.gmra.mxu0 %v2133
        %v2200 = vpop.f32.mrf.mxu0
        %v2201 = vadd.f32 0.0, %v2200
        %2202 = vmatmul.f32.gmra.mxu0 %v2136
        %v2203 = vpop.f32.mrf.mxu0
        %v2204 = vadd.f32 0.0, %v2203
        %2205 = vmatmul.f32.gmra.mxu0 %v2139
        %v2206 = vpop.f32.mrf.mxu0
        %v2207 = vadd.f32 0.0, %v2206
        %2208 = vmatmul.f32.gmra.mxu0 %v2142
        %v2209 = vpop.f32.mrf.mxu0
        %v2210 = vadd.f32 0.0, %v2209
        %2211 = vmatmul.f32.gmra.mxu0 %v2145
        %v2212 = vpop.f32.mrf.mxu0
        %v2213 = vadd.f32 0.0, %v2212
        %2214 = vmatmul.f32.gmra.mxu0 %v2148
        %v2215 = vpop.f32.mrf.mxu0
        %v2216 = vadd.f32 0.0, %v2215
        %2217 = vmatmul.f32.gmra.mxu0 %v2151
        %v2218 = vpop.f32.mrf.mxu0
        %v2219 = vadd.f32 0.0, %v2218
        %2220 = vdwg.mxu0
        %v2221 = vadd.f32 %v2056, %v2174
        %v2222 = vadd.f32 %v2059, %v2177
        %v2223 = vadd.f32 %v2062, %v2180
        %v2224 = vadd.f32 %v2065, %v2183
        %v2225 = vadd.f32 %v2068, %v2186
        %v2226 = vadd.f32 %v2071, %v2189
        %v2227 = vadd.f32 %v2074, %v2192
        %v2228 = vadd.f32 %v2077, %v2195
        %v2229 = vadd.f32 %v2080, %v2198
        %v2230 = vadd.f32 %v2083, %v2201
        %v2231 = vadd.f32 %v2086, %v2204
        %v2232 = vadd.f32 %v2089, %v2207
        %v2233 = vadd.f32 %v2092, %v2210
        %v2234 = vadd.f32 %v2095, %v2213
        %v2235 = vadd.f32 %v2098, %v2216
        %v2236 = vadd.f32 %v2101, %v2219
        %s2237 = scalar_lea.vmem %s1, 44
        %v2238 = vld [vmem:[%s2237] sm:$0xf]
        %v2240 = vsel %vm344, %v308, 0
        %v2243 = vsel %vm344, %v309, 0
        %v2246 = vsel %vm344, %v310, 0
        %v2249 = vsel %vm344, %v311, 0
        %v2252 = vsel %vm344, %v312, 0
        %v2255 = vsel %vm344, %v313, 0
        %v2258 = vsel %vm344, %v314, 0
        %v2261 = vsel %vm344, %v315, 0
        %v2264 = vsel %vm344, %v316, 0
        %v2267 = vsel %vm344, %v317, 0
        %v2270 = vsel %vm344, %v318, 0
        %v2273 = vsel %vm344, %v319, 0
        %v2276 = vsel %vm344, %v320, 0
        %v2279 = vsel %vm344, %v321, 0
        %v2282 = vsel %vm344, %v322, 0
        %v2285 = vsel %vm344, %v323, 0
        %v2288 = vsel %vm393, %v2238, 0
        %2290 = vmatpush.msra.mxu0 0.0
        %2291 = vmatpush.msra.mxu0 0.0
        %2292 = vmatpush.msra.mxu0 0.0
        %2293 = vmatpush.msra.mxu0 0.0
        %2294 = vmatpush.msra.mxu0 0.0
        %2295 = vmatpush.msra.mxu0 0.0
        %2296 = vmatpush.msra.mxu0 0.0
        %2297 = vmatpush.msra.mxu0 0.0
        %2298 = vmatpush.msra.mxu0 0.0
        %2299 = vmatpush.msra.mxu0 0.0
        %2300 = vmatpush.msra.mxu0 0.0
        %2301 = vmatpush.msra.mxu0 0.0
        %2302 = vmatpush.msra.mxu0 0.0
        %2303 = vmatpush.msra.mxu0 0.0
        %2304 = vmatpush.msra.mxu0 0.0
        %2305 = vmatpush.msra.mxu0 %v2288
        %2306 = vmatmul.f32.gmra.mxu0 %v2240
        %v2307 = vpop.f32.mrf.mxu0
        %v2308 = vadd.f32 0.0, %v2307
        %2309 = vmatmul.f32.gmra.mxu0 %v2243
        %v2310 = vpop.f32.mrf.mxu0
        %v2311 = vadd.f32 0.0, %v2310
        %2312 = vmatmul.f32.gmra.mxu0 %v2246
        %v2313 = vpop.f32.mrf.mxu0
        %v2314 = vadd.f32 0.0, %v2313
        %2315 = vmatmul.f32.gmra.mxu0 %v2249
        %v2316 = vpop.f32.mrf.mxu0
        %v2317 = vadd.f32 0.0, %v2316
        %2318 = vmatmul.f32.gmra.mxu0 %v2252
        %v2319 = vpop.f32.mrf.mxu0
        %v2320 = vadd.f32 0.0, %v2319
        %2321 = vmatmul.f32.gmra.mxu0 %v2255
        %v2322 = vpop.f32.mrf.mxu0
        %v2323 = vadd.f32 0.0, %v2322
        %2324 = vmatmul.f32.gmra.mxu0 %v2258
        %v2325 = vpop.f32.mrf.mxu0
        %v2326 = vadd.f32 0.0, %v2325
        %2327 = vmatmul.f32.gmra.mxu0 %v2261
        %v2328 = vpop.f32.mrf.mxu0
        %v2329 = vadd.f32 0.0, %v2328
        %2330 = vmatmul.f32.gmra.mxu0 %v2264
        %v2331 = vpop.f32.mrf.mxu0
        %v2332 = vadd.f32 0.0, %v2331
        %2333 = vmatmul.f32.gmra.mxu0 %v2267
        %v2334 = vpop.f32.mrf.mxu0
        %v2335 = vadd.f32 0.0, %v2334
        %2336 = vmatmul.f32.gmra.mxu0 %v2270
        %v2337 = vpop.f32.mrf.mxu0
        %v2338 = vadd.f32 0.0, %v2337
        %2339 = vmatmul.f32.gmra.mxu0 %v2273
        %v2340 = vpop.f32.mrf.mxu0
        %v2341 = vadd.f32 0.0, %v2340
        %2342 = vmatmul.f32.gmra.mxu0 %v2276
        %v2343 = vpop.f32.mrf.mxu0
        %v2344 = vadd.f32 0.0, %v2343
        %2345 = vmatmul.f32.gmra.mxu0 %v2279
        %v2346 = vpop.f32.mrf.mxu0
        %v2347 = vadd.f32 0.0, %v2346
        %2348 = vmatmul.f32.gmra.mxu0 %v2282
        %v2349 = vpop.f32.mrf.mxu0
        %v2350 = vadd.f32 0.0, %v2349
        %2351 = vmatmul.f32.gmra.mxu0 %v2285
        %v2352 = vpop.f32.mrf.mxu0
        %v2353 = vadd.f32 0.0, %v2352
        %2354 = vdwg.mxu0
        %v2355 = vadd.f32 %v2221, %v2308
        %v2356 = vadd.f32 %v2222, %v2311
        %v2357 = vadd.f32 %v2223, %v2314
        %v2358 = vadd.f32 %v2224, %v2317
        %v2359 = vadd.f32 %v2225, %v2320
        %v2360 = vadd.f32 %v2226, %v2323
        %v2361 = vadd.f32 %v2227, %v2326
        %v2362 = vadd.f32 %v2228, %v2329
        %v2363 = vadd.f32 %v2229, %v2332
        %v2364 = vadd.f32 %v2230, %v2335
        %v2365 = vadd.f32 %v2231, %v2338
        %v2366 = vadd.f32 %v2232, %v2341
        %v2367 = vadd.f32 %v2233, %v2344
        %v2368 = vadd.f32 %v2234, %v2347
        %v2369 = vadd.f32 %v2235, %v2350
        %v2370 = vadd.f32 %v2236, %v2353
        %v2371 = vadd.f32 %v2355, %v847
        %v2372 = vadd.f32 %v2356, %v847
        %v2373 = vadd.f32 %v2357, %v847
        %v2374 = vadd.f32 %v2358, %v847
        %v2375 = vadd.f32 %v2359, %v847
        %v2376 = vadd.f32 %v2360, %v847
        %v2377 = vadd.f32 %v2361, %v847
        %v2378 = vadd.f32 %v2362, %v847
        %v2379 = vadd.f32 %v2363, %v847
        %v2380 = vadd.f32 %v2364, %v847
        %v2381 = vadd.f32 %v2365, %v847
        %v2382 = vadd.f32 %v2366, %v847
        %v2383 = vadd.f32 %v2367, %v847
        %v2384 = vadd.f32 %v2368, %v847
        %v2385 = vadd.f32 %v2369, %v847
        %v2386 = vadd.f32 %v2370, %v847
        %v2387 = vxor.u32 %v2371, 2147483648
        %v2388 = vxor.u32 %v2372, 2147483648
        %v2389 = vxor.u32 %v2373, 2147483648
        %v2390 = vxor.u32 %v2374, 2147483648
        %v2391 = vxor.u32 %v2375, 2147483648
        %v2392 = vxor.u32 %v2376, 2147483648
        %v2393 = vxor.u32 %v2377, 2147483648
        %v2394 = vxor.u32 %v2378, 2147483648
        %v2395 = vxor.u32 %v2379, 2147483648
        %v2396 = vxor.u32 %v2380, 2147483648
        %v2397 = vxor.u32 %v2381, 2147483648
        %v2398 = vxor.u32 %v2382, 2147483648
        %v2399 = vxor.u32 %v2383, 2147483648
        %v2400 = vxor.u32 %v2384, 2147483648
        %v2401 = vxor.u32 %v2385, 2147483648
        %v2402 = vxor.u32 %v2386, 2147483648
        %v2403 = vmul.f32 %v2387, 1.442695
        %v2404 = vpow.pop %v2403
        %v2405 = vmul.f32 %v2388, 1.442695
        %v2406 = vpow.pop %v2405
        %v2407 = vmul.f32 %v2389, 1.442695
        %v2408 = vpow.pop %v2407
        %v2409 = vmul.f32 %v2390, 1.442695
        %v2410 = vpow.pop %v2409
        %v2411 = vmul.f32 %v2391, 1.442695
        %v2412 = vpow.pop %v2411
        %v2413 = vmul.f32 %v2392, 1.442695
        %v2414 = vpow.pop %v2413
        %v2415 = vmul.f32 %v2393, 1.442695
        %v2416 = vpow.pop %v2415
        %v2417 = vmul.f32 %v2394, 1.442695
        %v2418 = vpow.pop %v2417
        %v2419 = vmul.f32 %v2395, 1.442695
        %v2420 = vpow.pop %v2419
        %v2421 = vmul.f32 %v2396, 1.442695
        %v2422 = vpow.pop %v2421
        %v2423 = vmul.f32 %v2397, 1.442695
        %v2424 = vpow.pop %v2423
        %v2425 = vmul.f32 %v2398, 1.442695
        %v2426 = vpow.pop %v2425
        %v2427 = vmul.f32 %v2399, 1.442695
        %v2428 = vpow.pop %v2427
        %v2429 = vmul.f32 %v2400, 1.442695
        %v2430 = vpow.pop %v2429
        %v2431 = vmul.f32 %v2401, 1.442695
        %v2432 = vpow.pop %v2431
        %v2433 = vmul.f32 %v2402, 1.442695
        %v2434 = vpow.pop %v2433
        %v2435 = vadd.f32 %v2404, 1.0
        %v2436 = vadd.f32 %v2406, 1.0
        %v2437 = vadd.f32 %v2408, 1.0
        %v2438 = vadd.f32 %v2410, 1.0
        %v2439 = vadd.f32 %v2412, 1.0
        %v2440 = vadd.f32 %v2414, 1.0
        %v2441 = vadd.f32 %v2416, 1.0
        %v2442 = vadd.f32 %v2418, 1.0
        %v2443 = vadd.f32 %v2420, 1.0
        %v2444 = vadd.f32 %v2422, 1.0
        %v2445 = vadd.f32 %v2424, 1.0
        %v2446 = vadd.f32 %v2426, 1.0
        %v2447 = vadd.f32 %v2428, 1.0
        %v2448 = vadd.f32 %v2430, 1.0
        %v2449 = vadd.f32 %v2432, 1.0
        %v2450 = vadd.f32 %v2434, 1.0
        %v2451 = vrcp.pop %v2435
        %v2452 = vmul.f32 %v2435, %v2451
        %v2453 = vsub.f32 1.0, %v2452
        %v2454 = vmul.f32 %v2451, %v2453
        %v2455 = vadd.f32 %v2451, %v2454
        %vm2456 = vweird.f32 %v2435
        %vm2457 = vweird.f32 %v2451
        %vm2458 = vmor %vm2456, %vm2457
        %v2459 = vsel %vm2458, %v2451, %v2455
        %v2460 = vand.u32 2147483647, %v2435
        %vm2461 = vcmp.eq.f32.partialorder %v2460, 8.507059e+37
        %v2462 = vand.u32 %v2435, 2147483648
        %v2463 = vor.u32 1.1754944e-38, %v2462
        %v2464 = vsel %vm2461, %v2463, %v2459
        %v2465 = vmul.f32 1.0, %v2464
        %v2466 = vrcp.pop %v2436
        %v2467 = vmul.f32 %v2436, %v2466
        %v2468 = vsub.f32 1.0, %v2467
        %v2469 = vmul.f32 %v2466, %v2468
        %v2470 = vadd.f32 %v2466, %v2469
        %vm2471 = vweird.f32 %v2436
        %vm2472 = vweird.f32 %v2466
        %vm2473 = vmor %vm2471, %vm2472
        %v2474 = vsel %vm2473, %v2466, %v2470
        %v2475 = vand.u32 2147483647, %v2436
        %vm2476 = vcmp.eq.f32.partialorder %v2475, 8.507059e+37
        %v2477 = vand.u32 %v2436, 2147483648
        %v2478 = vor.u32 1.1754944e-38, %v2477
        %v2479 = vsel %vm2476, %v2478, %v2474
        %v2480 = vmul.f32 1.0, %v2479
        %v2481 = vrcp.pop %v2437
        %v2482 = vmul.f32 %v2437, %v2481
        %v2483 = vsub.f32 1.0, %v2482
        %v2484 = vmul.f32 %v2481, %v2483
        %v2485 = vadd.f32 %v2481, %v2484
        %vm2486 = vweird.f32 %v2437
        %vm2487 = vweird.f32 %v2481
        %vm2488 = vmor %vm2486, %vm2487
        %v2489 = vsel %vm2488, %v2481, %v2485
        %v2490 = vand.u32 2147483647, %v2437
        %vm2491 = vcmp.eq.f32.partialorder %v2490, 8.507059e+37
        %v2492 = vand.u32 %v2437, 2147483648
        %v2493 = vor.u32 1.1754944e-38, %v2492
        %v2494 = vsel %vm2491, %v2493, %v2489
        %v2495 = vmul.f32 1.0, %v2494
        %v2496 = vrcp.pop %v2438
        %v2497 = vmul.f32 %v2438, %v2496
        %v2498 = vsub.f32 1.0, %v2497
        %v2499 = vmul.f32 %v2496, %v2498
        %v2500 = vadd.f32 %v2496, %v2499
        %vm2501 = vweird.f32 %v2438
        %vm2502 = vweird.f32 %v2496
        %vm2503 = vmor %vm2501, %vm2502
        %v2504 = vsel %vm2503, %v2496, %v2500
        %v2505 = vand.u32 2147483647, %v2438
        %vm2506 = vcmp.eq.f32.partialorder %v2505, 8.507059e+37
        %v2507 = vand.u32 %v2438, 2147483648
        %v2508 = vor.u32 1.1754944e-38, %v2507
        %v2509 = vsel %vm2506, %v2508, %v2504
        %v2510 = vmul.f32 1.0, %v2509
        %v2511 = vrcp.pop %v2439
        %v2512 = vmul.f32 %v2439, %v2511
        %v2513 = vsub.f32 1.0, %v2512
        %v2514 = vmul.f32 %v2511, %v2513
        %v2515 = vadd.f32 %v2511, %v2514
        %vm2516 = vweird.f32 %v2439
        %vm2517 = vweird.f32 %v2511
        %vm2518 = vmor %vm2516, %vm2517
        %v2519 = vsel %vm2518, %v2511, %v2515
        %v2520 = vand.u32 2147483647, %v2439
        %vm2521 = vcmp.eq.f32.partialorder %v2520, 8.507059e+37
        %v2522 = vand.u32 %v2439, 2147483648
        %v2523 = vor.u32 1.1754944e-38, %v2522
        %v2524 = vsel %vm2521, %v2523, %v2519
        %v2525 = vmul.f32 1.0, %v2524
        %v2526 = vrcp.pop %v2440
        %v2527 = vmul.f32 %v2440, %v2526
        %v2528 = vsub.f32 1.0, %v2527
        %v2529 = vmul.f32 %v2526, %v2528
        %v2530 = vadd.f32 %v2526, %v2529
        %vm2531 = vweird.f32 %v2440
        %vm2532 = vweird.f32 %v2526
        %vm2533 = vmor %vm2531, %vm2532
        %v2534 = vsel %vm2533, %v2526, %v2530
        %v2535 = vand.u32 2147483647, %v2440
        %vm2536 = vcmp.eq.f32.partialorder %v2535, 8.507059e+37
        %v2537 = vand.u32 %v2440, 2147483648
        %v2538 = vor.u32 1.1754944e-38, %v2537
        %v2539 = vsel %vm2536, %v2538, %v2534
        %v2540 = vmul.f32 1.0, %v2539
        %v2541 = vrcp.pop %v2441
        %v2542 = vmul.f32 %v2441, %v2541
        %v2543 = vsub.f32 1.0, %v2542
        %v2544 = vmul.f32 %v2541, %v2543
        %v2545 = vadd.f32 %v2541, %v2544
        %vm2546 = vweird.f32 %v2441
        %vm2547 = vweird.f32 %v2541
        %vm2548 = vmor %vm2546, %vm2547
        %v2549 = vsel %vm2548, %v2541, %v2545
        %v2550 = vand.u32 2147483647, %v2441
        %vm2551 = vcmp.eq.f32.partialorder %v2550, 8.507059e+37
        %v2552 = vand.u32 %v2441, 2147483648
        %v2553 = vor.u32 1.1754944e-38, %v2552
        %v2554 = vsel %vm2551, %v2553, %v2549
        %v2555 = vmul.f32 1.0, %v2554
        %v2556 = vrcp.pop %v2442
        %v2557 = vmul.f32 %v2442, %v2556
        %v2558 = vsub.f32 1.0, %v2557
        %v2559 = vmul.f32 %v2556, %v2558
        %v2560 = vadd.f32 %v2556, %v2559
        %vm2561 = vweird.f32 %v2442
        %vm2562 = vweird.f32 %v2556
        %vm2563 = vmor %vm2561, %vm2562
        %v2564 = vsel %vm2563, %v2556, %v2560
        %v2565 = vand.u32 2147483647, %v2442
        %vm2566 = vcmp.eq.f32.partialorder %v2565, 8.507059e+37
        %v2567 = vand.u32 %v2442, 2147483648
        %v2568 = vor.u32 1.1754944e-38, %v2567
        %v2569 = vsel %vm2566, %v2568, %v2564
        %v2570 = vmul.f32 1.0, %v2569
        %v2571 = vrcp.pop %v2443
        %v2572 = vmul.f32 %v2443, %v2571
        %v2573 = vsub.f32 1.0, %v2572
        %v2574 = vmul.f32 %v2571, %v2573
        %v2575 = vadd.f32 %v2571, %v2574
        %vm2576 = vweird.f32 %v2443
        %vm2577 = vweird.f32 %v2571
        %vm2578 = vmor %vm2576, %vm2577
        %v2579 = vsel %vm2578, %v2571, %v2575
        %v2580 = vand.u32 2147483647, %v2443
        %vm2581 = vcmp.eq.f32.partialorder %v2580, 8.507059e+37
        %v2582 = vand.u32 %v2443, 2147483648
        %v2583 = vor.u32 1.1754944e-38, %v2582
        %v2584 = vsel %vm2581, %v2583, %v2579
        %v2585 = vmul.f32 1.0, %v2584
        %v2586 = vrcp.pop %v2444
        %v2587 = vmul.f32 %v2444, %v2586
        %v2588 = vsub.f32 1.0, %v2587
        %v2589 = vmul.f32 %v2586, %v2588
        %v2590 = vadd.f32 %v2586, %v2589
        %vm2591 = vweird.f32 %v2444
        %vm2592 = vweird.f32 %v2586
        %vm2593 = vmor %vm2591, %vm2592
        %v2594 = vsel %vm2593, %v2586, %v2590
        %v2595 = vand.u32 2147483647, %v2444
        %vm2596 = vcmp.eq.f32.partialorder %v2595, 8.507059e+37
        %v2597 = vand.u32 %v2444, 2147483648
        %v2598 = vor.u32 1.1754944e-38, %v2597
        %v2599 = vsel %vm2596, %v2598, %v2594
        %v2600 = vmul.f32 1.0, %v2599
        %v2601 = vrcp.pop %v2445
        %v2602 = vmul.f32 %v2445, %v2601
        %v2603 = vsub.f32 1.0, %v2602
        %v2604 = vmul.f32 %v2601, %v2603
        %v2605 = vadd.f32 %v2601, %v2604
        %vm2606 = vweird.f32 %v2445
        %vm2607 = vweird.f32 %v2601
        %vm2608 = vmor %vm2606, %vm2607
        %v2609 = vsel %vm2608, %v2601, %v2605
        %v2610 = vand.u32 2147483647, %v2445
        %vm2611 = vcmp.eq.f32.partialorder %v2610, 8.507059e+37
        %v2612 = vand.u32 %v2445, 2147483648
        %v2613 = vor.u32 1.1754944e-38, %v2612
        %v2614 = vsel %vm2611, %v2613, %v2609
        %v2615 = vmul.f32 1.0, %v2614
        %v2616 = vrcp.pop %v2446
        %v2617 = vmul.f32 %v2446, %v2616
        %v2618 = vsub.f32 1.0, %v2617
        %v2619 = vmul.f32 %v2616, %v2618
        %v2620 = vadd.f32 %v2616, %v2619
        %vm2621 = vweird.f32 %v2446
        %vm2622 = vweird.f32 %v2616
        %vm2623 = vmor %vm2621, %vm2622
        %v2624 = vsel %vm2623, %v2616, %v2620
        %v2625 = vand.u32 2147483647, %v2446
        %vm2626 = vcmp.eq.f32.partialorder %v2625, 8.507059e+37
        %v2627 = vand.u32 %v2446, 2147483648
        %v2628 = vor.u32 1.1754944e-38, %v2627
        %v2629 = vsel %vm2626, %v2628, %v2624
        %v2630 = vmul.f32 1.0, %v2629
        %v2631 = vrcp.pop %v2447
        %v2632 = vmul.f32 %v2447, %v2631
        %v2633 = vsub.f32 1.0, %v2632
        %v2634 = vmul.f32 %v2631, %v2633
        %v2635 = vadd.f32 %v2631, %v2634
        %vm2636 = vweird.f32 %v2447
        %vm2637 = vweird.f32 %v2631
        %vm2638 = vmor %vm2636, %vm2637
        %v2639 = vsel %vm2638, %v2631, %v2635
        %v2640 = vand.u32 2147483647, %v2447
        %vm2641 = vcmp.eq.f32.partialorder %v2640, 8.507059e+37
        %v2642 = vand.u32 %v2447, 2147483648
        %v2643 = vor.u32 1.1754944e-38, %v2642
        %v2644 = vsel %vm2641, %v2643, %v2639
        %v2645 = vmul.f32 1.0, %v2644
        %v2646 = vrcp.pop %v2448
        %v2647 = vmul.f32 %v2448, %v2646
        %v2648 = vsub.f32 1.0, %v2647
        %v2649 = vmul.f32 %v2646, %v2648
        %v2650 = vadd.f32 %v2646, %v2649
        %vm2651 = vweird.f32 %v2448
        %vm2652 = vweird.f32 %v2646
        %vm2653 = vmor %vm2651, %vm2652
        %v2654 = vsel %vm2653, %v2646, %v2650
        %v2655 = vand.u32 2147483647, %v2448
        %vm2656 = vcmp.eq.f32.partialorder %v2655, 8.507059e+37
        %v2657 = vand.u32 %v2448, 2147483648
        %v2658 = vor.u32 1.1754944e-38, %v2657
        %v2659 = vsel %vm2656, %v2658, %v2654
        %v2660 = vmul.f32 1.0, %v2659
        %v2661 = vrcp.pop %v2449
        %v2662 = vmul.f32 %v2449, %v2661
        %v2663 = vsub.f32 1.0, %v2662
        %v2664 = vmul.f32 %v2661, %v2663
        %v2665 = vadd.f32 %v2661, %v2664
        %vm2666 = vweird.f32 %v2449
        %vm2667 = vweird.f32 %v2661
        %vm2668 = vmor %vm2666, %vm2667
        %v2669 = vsel %vm2668, %v2661, %v2665
        %v2670 = vand.u32 2147483647, %v2449
        %vm2671 = vcmp.eq.f32.partialorder %v2670, 8.507059e+37
        %v2672 = vand.u32 %v2449, 2147483648
        %v2673 = vor.u32 1.1754944e-38, %v2672
        %v2674 = vsel %vm2671, %v2673, %v2669
        %v2675 = vmul.f32 1.0, %v2674
        %v2676 = vrcp.pop %v2450
        %v2677 = vmul.f32 %v2450, %v2676
        %v2678 = vsub.f32 1.0, %v2677
        %v2679 = vmul.f32 %v2676, %v2678
        %v2680 = vadd.f32 %v2676, %v2679
        %vm2681 = vweird.f32 %v2450
        %vm2682 = vweird.f32 %v2676
        %vm2683 = vmor %vm2681, %vm2682
        %v2684 = vsel %vm2683, %v2676, %v2680
        %v2685 = vand.u32 2147483647, %v2450
        %vm2686 = vcmp.eq.f32.partialorder %v2685, 8.507059e+37
        %v2687 = vand.u32 %v2450, 2147483648
        %v2688 = vor.u32 1.1754944e-38, %v2687
        %v2689 = vsel %vm2686, %v2688, %v2684
        %v2690 = vmul.f32 1.0, %v2689
        %v2691 = vmul.f32 %v2371, %v2465
        %v2692 = vmul.f32 %v2372, %v2480
        %v2693 = vmul.f32 %v2373, %v2495
        %v2694 = vmul.f32 %v2374, %v2510
        %v2695 = vmul.f32 %v2375, %v2525
        %v2696 = vmul.f32 %v2376, %v2540
        %v2697 = vmul.f32 %v2377, %v2555
        %v2698 = vmul.f32 %v2378, %v2570
        %v2699 = vmul.f32 %v2379, %v2585
        %v2700 = vmul.f32 %v2380, %v2600
        %v2701 = vmul.f32 %v2381, %v2615
        %v2702 = vmul.f32 %v2382, %v2630
        %v2703 = vmul.f32 %v2383, %v2645
        %v2704 = vmul.f32 %v2384, %v2660
        %v2705 = vmul.f32 %v2385, %v2675
        %v2706 = vmul.f32 %v2386, %v2690
        %s2707 = scalar_lea.vmem %s183, 256 [#allocation2]
        %2708 = vst.msk [vmem:[%s2707] sm:$0xff] %vm1185, %v2691
        %2709 = vst.msk [vmem:[%s2707 + $0x8] sm:$0xff] %vm1185, %v2692
        %2710 = vst.msk [vmem:[%s2707 + $0x10] sm:$0xff] %vm1185, %v2693
        %2711 = vst.msk [vmem:[%s2707 + $0x18] sm:$0xff] %vm1185, %v2694
        %2712 = vst.msk [vmem:[%s2707 + $0x20] sm:$0xff] %vm1185, %v2695
        %2713 = vst.msk [vmem:[%s2707 + $0x28] sm:$0xff] %vm1185, %v2696
        %2714 = vst.msk [vmem:[%s2707 + $0x30] sm:$0xff] %vm1185, %v2697
        %2715 = vst.msk [vmem:[%s2707 + $0x38] sm:$0xff] %vm1185, %v2698
        %2716 = vst.msk [vmem:[%s2707 + $0x40] sm:$0xff] %vm1185, %v2699
        %2717 = vst.msk [vmem:[%s2707 + $0x48] sm:$0xff] %vm1185, %v2700
        %2718 = vst.msk [vmem:[%s2707 + $0x50] sm:$0xff] %vm1185, %v2701
        %2719 = vst.msk [vmem:[%s2707 + $0x58] sm:$0xff] %vm1185, %v2702
        %2720 = vst.msk [vmem:[%s2707 + $0x60] sm:$0xff] %vm1185, %v2703
        %2721 = vst.msk [vmem:[%s2707 + $0x68] sm:$0xff] %vm1185, %v2704
        %2722 = vst.msk [vmem:[%s2707 + $0x70] sm:$0xff] %vm1185, %v2705
        %2723 = vst.msk [vmem:[%s2707 + $0x78] sm:$0xff] %vm1185, %v2706
        %s2724 = scalar_lea.vmem %s1, 48
        %v2725 = vld [vmem:[%s2724] sm:$0xf]
        %s2726 = scalar_lea.vmem %s1, 52
        %v2727 = vld [vmem:[%s2726] sm:$0xf]
        %v2729 = vsel %vm393, %v2727, 0
        %2731 = vmatpush.msra.mxu0 0.0
        %2732 = vmatpush.msra.mxu0 0.0
        %2733 = vmatpush.msra.mxu0 0.0
        %2734 = vmatpush.msra.mxu0 0.0
        %2735 = vmatpush.msra.mxu0 0.0
        %2736 = vmatpush.msra.mxu0 0.0
        %2737 = vmatpush.msra.mxu0 0.0
        %2738 = vmatpush.msra.mxu0 0.0
        %2739 = vmatpush.msra.mxu0 0.0
        %2740 = vmatpush.msra.mxu0 0.0
        %2741 = vmatpush.msra.mxu0 0.0
        %2742 = vmatpush.msra.mxu0 0.0
        %2743 = vmatpush.msra.mxu0 0.0
        %2744 = vmatpush.msra.mxu0 0.0
        %2745 = vmatpush.msra.mxu0 0.0
        %2746 = vmatpush.msra.mxu0 %v2729
        %2747 = vmatmul.f32.gmra.mxu0 %v1479
        %v2748 = vpop.f32.mrf.mxu0
        %v2749 = vadd.f32 0.0, %v2748
        %2750 = vmatmul.f32.gmra.mxu0 %v1482
        %v2751 = vpop.f32.mrf.mxu0
        %v2752 = vadd.f32 0.0, %v2751
        %2753 = vmatmul.f32.gmra.mxu0 %v1485
        %v2754 = vpop.f32.mrf.mxu0
        %v2755 = vadd.f32 0.0, %v2754
        %2756 = vmatmul.f32.gmra.mxu0 %v1488
        %v2757 = vpop.f32.mrf.mxu0
        %v2758 = vadd.f32 0.0, %v2757
        %2759 = vmatmul.f32.gmra.mxu0 %v1491
        %v2760 = vpop.f32.mrf.mxu0
        %v2761 = vadd.f32 0.0, %v2760
        %2762 = vmatmul.f32.gmra.mxu0 %v1494
        %v2763 = vpop.f32.mrf.mxu0
        %v2764 = vadd.f32 0.0, %v2763
        %2765 = vmatmul.f32.gmra.mxu0 %v1497
        %v2766 = vpop.f32.mrf.mxu0
        %v2767 = vadd.f32 0.0, %v2766
        %2768 = vmatmul.f32.gmra.mxu0 %v1500
        %v2769 = vpop.f32.mrf.mxu0
        %v2770 = vadd.f32 0.0, %v2769
        %2771 = vmatmul.f32.gmra.mxu0 %v1503
        %v2772 = vpop.f32.mrf.mxu0
        %v2773 = vadd.f32 0.0, %v2772
        %2774 = vmatmul.f32.gmra.mxu0 %v1506
        %v2775 = vpop.f32.mrf.mxu0
        %v2776 = vadd.f32 0.0, %v2775
        %2777 = vmatmul.f32.gmra.mxu0 %v1509
        %v2778 = vpop.f32.mrf.mxu0
        %v2779 = vadd.f32 0.0, %v2778
        %2780 = vmatmul.f32.gmra.mxu0 %v1512
        %v2781 = vpop.f32.mrf.mxu0
        %v2782 = vadd.f32 0.0, %v2781
        %2783 = vmatmul.f32.gmra.mxu0 %v1515
        %v2784 = vpop.f32.mrf.mxu0
        %v2785 = vadd.f32 0.0, %v2784
        %2786 = vmatmul.f32.gmra.mxu0 %v1518
        %v2787 = vpop.f32.mrf.mxu0
        %v2788 = vadd.f32 0.0, %v2787
        %2789 = vmatmul.f32.gmra.mxu0 %v1521
        %v2790 = vpop.f32.mrf.mxu0
        %v2791 = vadd.f32 0.0, %v2790
        %2792 = vmatmul.f32.gmra.mxu0 %v1524
        %v2793 = vpop.f32.mrf.mxu0
        %v2794 = vadd.f32 0.0, %v2793
        %2795 = vdwg.mxu0
        %v2797 = vsel %vm393, %v2725, 0
        %2799 = vmatpush.msra.mxu0 0.0
        %2800 = vmatpush.msra.mxu0 0.0
        %2801 = vmatpush.msra.mxu0 0.0
        %2802 = vmatpush.msra.mxu0 0.0
        %2803 = vmatpush.msra.mxu0 0.0
        %2804 = vmatpush.msra.mxu0 0.0
        %2805 = vmatpush.msra.mxu0 0.0
        %2806 = vmatpush.msra.mxu0 0.0
        %2807 = vmatpush.msra.mxu0 0.0
        %2808 = vmatpush.msra.mxu0 0.0
        %2809 = vmatpush.msra.mxu0 0.0
        %2810 = vmatpush.msra.mxu0 0.0
        %2811 = vmatpush.msra.mxu0 0.0
        %2812 = vmatpush.msra.mxu0 0.0
        %2813 = vmatpush.msra.mxu0 0.0
        %2814 = vmatpush.msra.mxu0 %v2797
        %2815 = vmatmul.f32.gmra.mxu0 %v715
        %v2816 = vpop.f32.mrf.mxu0
        %v2817 = vadd.f32 %v2749, %v2816
        %2818 = vmatmul.f32.gmra.mxu0 %v718
        %v2819 = vpop.f32.mrf.mxu0
        %v2820 = vadd.f32 %v2752, %v2819
        %2821 = vmatmul.f32.gmra.mxu0 %v721
        %v2822 = vpop.f32.mrf.mxu0
        %v2823 = vadd.f32 %v2755, %v2822
        %2824 = vmatmul.f32.gmra.mxu0 %v724
        %v2825 = vpop.f32.mrf.mxu0
        %v2826 = vadd.f32 %v2758, %v2825
        %2827 = vmatmul.f32.gmra.mxu0 %v727
        %v2828 = vpop.f32.mrf.mxu0
        %v2829 = vadd.f32 %v2761, %v2828
        %2830 = vmatmul.f32.gmra.mxu0 %v730
        %v2831 = vpop.f32.mrf.mxu0
        %v2832 = vadd.f32 %v2764, %v2831
        %2833 = vmatmul.f32.gmra.mxu0 %v733
        %v2834 = vpop.f32.mrf.mxu0
        %v2835 = vadd.f32 %v2767, %v2834
        %2836 = vmatmul.f32.gmra.mxu0 %v736
        %v2837 = vpop.f32.mrf.mxu0
        %v2838 = vadd.f32 %v2770, %v2837
        %2839 = vmatmul.f32.gmra.mxu0 %v739
        %v2840 = vpop.f32.mrf.mxu0
        %v2841 = vadd.f32 %v2773, %v2840
        %2842 = vmatmul.f32.gmra.mxu0 %v742
        %v2843 = vpop.f32.mrf.mxu0
        %v2844 = vadd.f32 %v2776, %v2843
        %2845 = vmatmul.f32.gmra.mxu0 %v745
        %v2846 = vpop.f32.mrf.mxu0
        %v2847 = vadd.f32 %v2779, %v2846
        %2848 = vmatmul.f32.gmra.mxu0 %v748
        %v2849 = vpop.f32.mrf.mxu0
        %v2850 = vadd.f32 %v2782, %v2849
        %2851 = vmatmul.f32.gmra.mxu0 %v751
        %v2852 = vpop.f32.mrf.mxu0
        %v2853 = vadd.f32 %v2785, %v2852
        %2854 = vmatmul.f32.gmra.mxu0 %v754
        %v2855 = vpop.f32.mrf.mxu0
        %v2856 = vadd.f32 %v2788, %v2855
        %2857 = vmatmul.f32.gmra.mxu0 %v757
        %v2858 = vpop.f32.mrf.mxu0
        %v2859 = vadd.f32 %v2791, %v2858
        %2860 = vmatmul.f32.gmra.mxu0 %v760
        %v2861 = vpop.f32.mrf.mxu0
        %v2862 = vadd.f32 %v2794, %v2861
        %2863 = vdwg.mxu0
        %s2864 = scalar_lea.vmem %s1, 56
        %v2865 = vld [vmem:[%s2864] sm:$0xf]
        %v2867 = vsel %vm393, %v2865, 0
        %2869 = vmatpush.msra.mxu0 0.0
        %2870 = vmatpush.msra.mxu0 0.0
        %2871 = vmatpush.msra.mxu0 0.0
        %2872 = vmatpush.msra.mxu0 0.0
        %2873 = vmatpush.msra.mxu0 0.0
        %2874 = vmatpush.msra.mxu0 0.0
        %2875 = vmatpush.msra.mxu0 0.0
        %2876 = vmatpush.msra.mxu0 0.0
        %2877 = vmatpush.msra.mxu0 0.0
        %2878 = vmatpush.msra.mxu0 0.0
        %2879 = vmatpush.msra.mxu0 0.0
        %2880 = vmatpush.msra.mxu0 0.0
        %2881 = vmatpush.msra.mxu0 0.0
        %2882 = vmatpush.msra.mxu0 0.0
        %2883 = vmatpush.msra.mxu0 0.0
        %2884 = vmatpush.msra.mxu0 %v2867
        %2885 = vmatmul.f32.gmra.mxu0 %v2240
        %v2886 = vpop.f32.mrf.mxu0
        %v2887 = vadd.f32 0.0, %v2886
        %2888 = vmatmul.f32.gmra.mxu0 %v2243
        %v2889 = vpop.f32.mrf.mxu0
        %v2890 = vadd.f32 0.0, %v2889
        %2891 = vmatmul.f32.gmra.mxu0 %v2246
        %v2892 = vpop.f32.mrf.mxu0
        %v2893 = vadd.f32 0.0, %v2892
        %2894 = vmatmul.f32.gmra.mxu0 %v2249
        %v2895 = vpop.f32.mrf.mxu0
        %v2896 = vadd.f32 0.0, %v2895
        %2897 = vmatmul.f32.gmra.mxu0 %v2252
        %v2898 = vpop.f32.mrf.mxu0
        %v2899 = vadd.f32 0.0, %v2898
        %2900 = vmatmul.f32.gmra.mxu0 %v2255
        %v2901 = vpop.f32.mrf.mxu0
        %v2902 = vadd.f32 0.0, %v2901
        %2903 = vmatmul.f32.gmra.mxu0 %v2258
        %v2904 = vpop.f32.mrf.mxu0
        %v2905 = vadd.f32 0.0, %v2904
        %2906 = vmatmul.f32.gmra.mxu0 %v2261
        %v2907 = vpop.f32.mrf.mxu0
        %v2908 = vadd.f32 0.0, %v2907
        %2909 = vmatmul.f32.gmra.mxu0 %v2264
        %v2910 = vpop.f32.mrf.mxu0
        %v2911 = vadd.f32 0.0, %v2910
        %2912 = vmatmul.f32.gmra.mxu0 %v2267
        %v2913 = vpop.f32.mrf.mxu0
        %v2914 = vadd.f32 0.0, %v2913
        %2915 = vmatmul.f32.gmra.mxu0 %v2270
        %v2916 = vpop.f32.mrf.mxu0
        %v2917 = vadd.f32 0.0, %v2916
        %2918 = vmatmul.f32.gmra.mxu0 %v2273
        %v2919 = vpop.f32.mrf.mxu0
        %v2920 = vadd.f32 0.0, %v2919
        %2921 = vmatmul.f32.gmra.mxu0 %v2276
        %v2922 = vpop.f32.mrf.mxu0
        %v2923 = vadd.f32 0.0, %v2922
        %2924 = vmatmul.f32.gmra.mxu0 %v2279
        %v2925 = vpop.f32.mrf.mxu0
        %v2926 = vadd.f32 0.0, %v2925
        %2927 = vmatmul.f32.gmra.mxu0 %v2282
        %v2928 = vpop.f32.mrf.mxu0
        %v2929 = vadd.f32 0.0, %v2928
        %2930 = vmatmul.f32.gmra.mxu0 %v2285
        %v2931 = vpop.f32.mrf.mxu0
        %v2932 = vadd.f32 0.0, %v2931
        %2933 = vdwg.mxu0
        %v2934 = vadd.f32 %v2817, %v2887
        %v2935 = vadd.f32 %v2820, %v2890
        %v2936 = vadd.f32 %v2823, %v2893
        %v2937 = vadd.f32 %v2826, %v2896
        %v2938 = vadd.f32 %v2829, %v2899
        %v2939 = vadd.f32 %v2832, %v2902
        %v2940 = vadd.f32 %v2835, %v2905
        %v2941 = vadd.f32 %v2838, %v2908
        %v2942 = vadd.f32 %v2841, %v2911
        %v2943 = vadd.f32 %v2844, %v2914
        %v2944 = vadd.f32 %v2847, %v2917
        %v2945 = vadd.f32 %v2850, %v2920
        %v2946 = vadd.f32 %v2853, %v2923
        %v2947 = vadd.f32 %v2856, %v2926
        %v2948 = vadd.f32 %v2859, %v2929
        %v2949 = vadd.f32 %v2862, %v2932
        %s2950 = scalar_lea.vmem %s1, 60
        %v2951 = vld [vmem:[%s2950] sm:$0xf]
        %v2953 = vsel %vm344, %v324, 0
        %v2956 = vsel %vm344, %v325, 0
        %v2959 = vsel %vm344, %v326, 0
        %v2962 = vsel %vm344, %v327, 0
        %v2965 = vsel %vm344, %v328, 0
        %v2968 = vsel %vm344, %v329, 0
        %v2971 = vsel %vm344, %v330, 0
        %v2974 = vsel %vm344, %v331, 0
        %v2977 = vsel %vm344, %v332, 0
        %v2980 = vsel %vm344, %v333, 0
        %v2983 = vsel %vm344, %v334, 0
        %v2986 = vsel %vm344, %v335, 0
        %v2989 = vsel %vm344, %v336, 0
        %v2992 = vsel %vm344, %v337, 0
        %v2995 = vsel %vm344, %v338, 0
        %v2998 = vsel %vm344, %v339, 0
        %v3001 = vsel %vm393, %v2951, 0
        %3003 = vmatpush.msra.mxu0 0.0
        %3004 = vmatpush.msra.mxu0 0.0
        %3005 = vmatpush.msra.mxu0 0.0
        %3006 = vmatpush.msra.mxu0 0.0
        %3007 = vmatpush.msra.mxu0 0.0
        %3008 = vmatpush.msra.mxu0 0.0
        %3009 = vmatpush.msra.mxu0 0.0
        %3010 = vmatpush.msra.mxu0 0.0
        %3011 = vmatpush.msra.mxu0 0.0
        %3012 = vmatpush.msra.mxu0 0.0
        %3013 = vmatpush.msra.mxu0 0.0
        %3014 = vmatpush.msra.mxu0 0.0
        %3015 = vmatpush.msra.mxu0 0.0
        %3016 = vmatpush.msra.mxu0 0.0
        %3017 = vmatpush.msra.mxu0 0.0
        %3018 = vmatpush.msra.mxu0 %v3001
        %3019 = vmatmul.f32.gmra.mxu0 %v2953
        %v3020 = vpop.f32.mrf.mxu0
        %v3021 = vadd.f32 0.0, %v3020
        %3022 = vmatmul.f32.gmra.mxu0 %v2956
        %v3023 = vpop.f32.mrf.mxu0
        %v3024 = vadd.f32 0.0, %v3023
        %3025 = vmatmul.f32.gmra.mxu0 %v2959
        %v3026 = vpop.f32.mrf.mxu0
        %v3027 = vadd.f32 0.0, %v3026
        %3028 = vmatmul.f32.gmra.mxu0 %v2962
        %v3029 = vpop.f32.mrf.mxu0
        %v3030 = vadd.f32 0.0, %v3029
        %3031 = vmatmul.f32.gmra.mxu0 %v2965
        %v3032 = vpop.f32.mrf.mxu0
        %v3033 = vadd.f32 0.0, %v3032
        %3034 = vmatmul.f32.gmra.mxu0 %v2968
        %v3035 = vpop.f32.mrf.mxu0
        %v3036 = vadd.f32 0.0, %v3035
        %3037 = vmatmul.f32.gmra.mxu0 %v2971
        %v3038 = vpop.f32.mrf.mxu0
        %v3039 = vadd.f32 0.0, %v3038
        %3040 = vmatmul.f32.gmra.mxu0 %v2974
        %v3041 = vpop.f32.mrf.mxu0
        %v3042 = vadd.f32 0.0, %v3041
        %3043 = vmatmul.f32.gmra.mxu0 %v2977
        %v3044 = vpop.f32.mrf.mxu0
        %v3045 = vadd.f32 0.0, %v3044
        %3046 = vmatmul.f32.gmra.mxu0 %v2980
        %v3047 = vpop.f32.mrf.mxu0
        %v3048 = vadd.f32 0.0, %v3047
        %3049 = vmatmul.f32.gmra.mxu0 %v2983
        %v3050 = vpop.f32.mrf.mxu0
        %v3051 = vadd.f32 0.0, %v3050
        %3052 = vmatmul.f32.gmra.mxu0 %v2986
        %v3053 = vpop.f32.mrf.mxu0
        %v3054 = vadd.f32 0.0, %v3053
        %3055 = vmatmul.f32.gmra.mxu0 %v2989
        %v3056 = vpop.f32.mrf.mxu0
        %v3057 = vadd.f32 0.0, %v3056
        %3058 = vmatmul.f32.gmra.mxu0 %v2992
        %v3059 = vpop.f32.mrf.mxu0
        %v3060 = vadd.f32 0.0, %v3059
        %3061 = vmatmul.f32.gmra.mxu0 %v2995
        %v3062 = vpop.f32.mrf.mxu0
        %v3063 = vadd.f32 0.0, %v3062
        %3064 = vmatmul.f32.gmra.mxu0 %v2998
        %v3065 = vpop.f32.mrf.mxu0
        %v3066 = vadd.f32 0.0, %v3065
        %3067 = vdwg.mxu0
        %v3068 = vadd.f32 %v2934, %v3021
        %v3069 = vadd.f32 %v2935, %v3024
        %v3070 = vadd.f32 %v2936, %v3027
        %v3071 = vadd.f32 %v2937, %v3030
        %v3072 = vadd.f32 %v2938, %v3033
        %v3073 = vadd.f32 %v2939, %v3036
        %v3074 = vadd.f32 %v2940, %v3039
        %v3075 = vadd.f32 %v2941, %v3042
        %v3076 = vadd.f32 %v2942, %v3045
        %v3077 = vadd.f32 %v2943, %v3048
        %v3078 = vadd.f32 %v2944, %v3051
        %v3079 = vadd.f32 %v2945, %v3054
        %v3080 = vadd.f32 %v2946, %v3057
        %v3081 = vadd.f32 %v2947, %v3060
        %v3082 = vadd.f32 %v2948, %v3063
        %v3083 = vadd.f32 %v2949, %v3066
        %v3084 = vadd.f32 %v3068, %v847
        %v3085 = vadd.f32 %v3069, %v847
        %v3086 = vadd.f32 %v3070, %v847
        %v3087 = vadd.f32 %v3071, %v847
        %v3088 = vadd.f32 %v3072, %v847
        %v3089 = vadd.f32 %v3073, %v847
        %v3090 = vadd.f32 %v3074, %v847
        %v3091 = vadd.f32 %v3075, %v847
        %v3092 = vadd.f32 %v3076, %v847
        %v3093 = vadd.f32 %v3077, %v847
        %v3094 = vadd.f32 %v3078, %v847
        %v3095 = vadd.f32 %v3079, %v847
        %v3096 = vadd.f32 %v3080, %v847
        %v3097 = vadd.f32 %v3081, %v847
        %v3098 = vadd.f32 %v3082, %v847
        %v3099 = vadd.f32 %v3083, %v847
        %v3100 = vxor.u32 %v3084, 2147483648
        %v3101 = vxor.u32 %v3085, 2147483648
        %v3102 = vxor.u32 %v3086, 2147483648
        %v3103 = vxor.u32 %v3087, 2147483648
        %v3104 = vxor.u32 %v3088, 2147483648
        %v3105 = vxor.u32 %v3089, 2147483648
        %v3106 = vxor.u32 %v3090, 2147483648
        %v3107 = vxor.u32 %v3091, 2147483648
        %v3108 = vxor.u32 %v3092, 2147483648
        %v3109 = vxor.u32 %v3093, 2147483648
        %v3110 = vxor.u32 %v3094, 2147483648
        %v3111 = vxor.u32 %v3095, 2147483648
        %v3112 = vxor.u32 %v3096, 2147483648
        %v3113 = vxor.u32 %v3097, 2147483648
        %v3114 = vxor.u32 %v3098, 2147483648
        %v3115 = vxor.u32 %v3099, 2147483648
        %v3116 = vmul.f32 %v3100, 1.442695
        %v3117 = vpow.pop %v3116
        %v3118 = vmul.f32 %v3101, 1.442695
        %v3119 = vpow.pop %v3118
        %v3120 = vmul.f32 %v3102, 1.442695
        %v3121 = vpow.pop %v3120
        %v3122 = vmul.f32 %v3103, 1.442695
        %v3123 = vpow.pop %v3122
        %v3124 = vmul.f32 %v3104, 1.442695
        %v3125 = vpow.pop %v3124
        %v3126 = vmul.f32 %v3105, 1.442695
        %v3127 = vpow.pop %v3126
        %v3128 = vmul.f32 %v3106, 1.442695
        %v3129 = vpow.pop %v3128
        %v3130 = vmul.f32 %v3107, 1.442695
        %v3131 = vpow.pop %v3130
        %v3132 = vmul.f32 %v3108, 1.442695
        %v3133 = vpow.pop %v3132
        %v3134 = vmul.f32 %v3109, 1.442695
        %v3135 = vpow.pop %v3134
        %v3136 = vmul.f32 %v3110, 1.442695
        %v3137 = vpow.pop %v3136
        %v3138 = vmul.f32 %v3111, 1.442695
        %v3139 = vpow.pop %v3138
        %v3140 = vmul.f32 %v3112, 1.442695
        %v3141 = vpow.pop %v3140
        %v3142 = vmul.f32 %v3113, 1.442695
        %v3143 = vpow.pop %v3142
        %v3144 = vmul.f32 %v3114, 1.442695
        %v3145 = vpow.pop %v3144
        %v3146 = vmul.f32 %v3115, 1.442695
        %v3147 = vpow.pop %v3146
        %v3148 = vadd.f32 %v3117, 1.0
        %v3149 = vadd.f32 %v3119, 1.0
        %v3150 = vadd.f32 %v3121, 1.0
        %v3151 = vadd.f32 %v3123, 1.0
        %v3152 = vadd.f32 %v3125, 1.0
        %v3153 = vadd.f32 %v3127, 1.0
        %v3154 = vadd.f32 %v3129, 1.0
        %v3155 = vadd.f32 %v3131, 1.0
        %v3156 = vadd.f32 %v3133, 1.0
        %v3157 = vadd.f32 %v3135, 1.0
        %v3158 = vadd.f32 %v3137, 1.0
        %v3159 = vadd.f32 %v3139, 1.0
        %v3160 = vadd.f32 %v3141, 1.0
        %v3161 = vadd.f32 %v3143, 1.0
        %v3162 = vadd.f32 %v3145, 1.0
        %v3163 = vadd.f32 %v3147, 1.0
        %v3164 = vrcp.pop %v3148
        %v3165 = vmul.f32 %v3148, %v3164
        %v3166 = vsub.f32 1.0, %v3165
        %v3167 = vmul.f32 %v3164, %v3166
        %v3168 = vadd.f32 %v3164, %v3167
        %vm3169 = vweird.f32 %v3148
        %vm3170 = vweird.f32 %v3164
        %vm3171 = vmor %vm3169, %vm3170
        %v3172 = vsel %vm3171, %v3164, %v3168
        %v3173 = vand.u32 2147483647, %v3148
        %vm3174 = vcmp.eq.f32.partialorder %v3173, 8.507059e+37
        %v3175 = vand.u32 %v3148, 2147483648
        %v3176 = vor.u32 1.1754944e-38, %v3175
        %v3177 = vsel %vm3174, %v3176, %v3172
        %v3178 = vmul.f32 1.0, %v3177
        %v3179 = vrcp.pop %v3149
        %v3180 = vmul.f32 %v3149, %v3179
        %v3181 = vsub.f32 1.0, %v3180
        %v3182 = vmul.f32 %v3179, %v3181
        %v3183 = vadd.f32 %v3179, %v3182
        %vm3184 = vweird.f32 %v3149
        %vm3185 = vweird.f32 %v3179
        %vm3186 = vmor %vm3184, %vm3185
        %v3187 = vsel %vm3186, %v3179, %v3183
        %v3188 = vand.u32 2147483647, %v3149
        %vm3189 = vcmp.eq.f32.partialorder %v3188, 8.507059e+37
        %v3190 = vand.u32 %v3149, 2147483648
        %v3191 = vor.u32 1.1754944e-38, %v3190
        %v3192 = vsel %vm3189, %v3191, %v3187
        %v3193 = vmul.f32 1.0, %v3192
        %v3194 = vrcp.pop %v3150
        %v3195 = vmul.f32 %v3150, %v3194
        %v3196 = vsub.f32 1.0, %v3195
        %v3197 = vmul.f32 %v3194, %v3196
        %v3198 = vadd.f32 %v3194, %v3197
        %vm3199 = vweird.f32 %v3150
        %vm3200 = vweird.f32 %v3194
        %vm3201 = vmor %vm3199, %vm3200
        %v3202 = vsel %vm3201, %v3194, %v3198
        %v3203 = vand.u32 2147483647, %v3150
        %vm3204 = vcmp.eq.f32.partialorder %v3203, 8.507059e+37
        %v3205 = vand.u32 %v3150, 2147483648
        %v3206 = vor.u32 1.1754944e-38, %v3205
        %v3207 = vsel %vm3204, %v3206, %v3202
        %v3208 = vmul.f32 1.0, %v3207
        %v3209 = vrcp.pop %v3151
        %v3210 = vmul.f32 %v3151, %v3209
        %v3211 = vsub.f32 1.0, %v3210
        %v3212 = vmul.f32 %v3209, %v3211
        %v3213 = vadd.f32 %v3209, %v3212
        %vm3214 = vweird.f32 %v3151
        %vm3215 = vweird.f32 %v3209
        %vm3216 = vmor %vm3214, %vm3215
        %v3217 = vsel %vm3216, %v3209, %v3213
        %v3218 = vand.u32 2147483647, %v3151
        %vm3219 = vcmp.eq.f32.partialorder %v3218, 8.507059e+37
        %v3220 = vand.u32 %v3151, 2147483648
        %v3221 = vor.u32 1.1754944e-38, %v3220
        %v3222 = vsel %vm3219, %v3221, %v3217
        %v3223 = vmul.f32 1.0, %v3222
        %v3224 = vrcp.pop %v3152
        %v3225 = vmul.f32 %v3152, %v3224
        %v3226 = vsub.f32 1.0, %v3225
        %v3227 = vmul.f32 %v3224, %v3226
        %v3228 = vadd.f32 %v3224, %v3227
        %vm3229 = vweird.f32 %v3152
        %vm3230 = vweird.f32 %v3224
        %vm3231 = vmor %vm3229, %vm3230
        %v3232 = vsel %vm3231, %v3224, %v3228
        %v3233 = vand.u32 2147483647, %v3152
        %vm3234 = vcmp.eq.f32.partialorder %v3233, 8.507059e+37
        %v3235 = vand.u32 %v3152, 2147483648
        %v3236 = vor.u32 1.1754944e-38, %v3235
        %v3237 = vsel %vm3234, %v3236, %v3232
        %v3238 = vmul.f32 1.0, %v3237
        %v3239 = vrcp.pop %v3153
        %v3240 = vmul.f32 %v3153, %v3239
        %v3241 = vsub.f32 1.0, %v3240
        %v3242 = vmul.f32 %v3239, %v3241
        %v3243 = vadd.f32 %v3239, %v3242
        %vm3244 = vweird.f32 %v3153
        %vm3245 = vweird.f32 %v3239
        %vm3246 = vmor %vm3244, %vm3245
        %v3247 = vsel %vm3246, %v3239, %v3243
        %v3248 = vand.u32 2147483647, %v3153
        %vm3249 = vcmp.eq.f32.partialorder %v3248, 8.507059e+37
        %v3250 = vand.u32 %v3153, 2147483648
        %v3251 = vor.u32 1.1754944e-38, %v3250
        %v3252 = vsel %vm3249, %v3251, %v3247
        %v3253 = vmul.f32 1.0, %v3252
        %v3254 = vrcp.pop %v3154
        %v3255 = vmul.f32 %v3154, %v3254
        %v3256 = vsub.f32 1.0, %v3255
        %v3257 = vmul.f32 %v3254, %v3256
        %v3258 = vadd.f32 %v3254, %v3257
        %vm3259 = vweird.f32 %v3154
        %vm3260 = vweird.f32 %v3254
        %vm3261 = vmor %vm3259, %vm3260
        %v3262 = vsel %vm3261, %v3254, %v3258
        %v3263 = vand.u32 2147483647, %v3154
        %vm3264 = vcmp.eq.f32.partialorder %v3263, 8.507059e+37
        %v3265 = vand.u32 %v3154, 2147483648
        %v3266 = vor.u32 1.1754944e-38, %v3265
        %v3267 = vsel %vm3264, %v3266, %v3262
        %v3268 = vmul.f32 1.0, %v3267
        %v3269 = vrcp.pop %v3155
        %v3270 = vmul.f32 %v3155, %v3269
        %v3271 = vsub.f32 1.0, %v3270
        %v3272 = vmul.f32 %v3269, %v3271
        %v3273 = vadd.f32 %v3269, %v3272
        %vm3274 = vweird.f32 %v3155
        %vm3275 = vweird.f32 %v3269
        %vm3276 = vmor %vm3274, %vm3275
        %v3277 = vsel %vm3276, %v3269, %v3273
        %v3278 = vand.u32 2147483647, %v3155
        %vm3279 = vcmp.eq.f32.partialorder %v3278, 8.507059e+37
        %v3280 = vand.u32 %v3155, 2147483648
        %v3281 = vor.u32 1.1754944e-38, %v3280
        %v3282 = vsel %vm3279, %v3281, %v3277
        %v3283 = vmul.f32 1.0, %v3282
        %v3284 = vrcp.pop %v3156
        %v3285 = vmul.f32 %v3156, %v3284
        %v3286 = vsub.f32 1.0, %v3285
        %v3287 = vmul.f32 %v3284, %v3286
        %v3288 = vadd.f32 %v3284, %v3287
        %vm3289 = vweird.f32 %v3156
        %vm3290 = vweird.f32 %v3284
        %vm3291 = vmor %vm3289, %vm3290
        %v3292 = vsel %vm3291, %v3284, %v3288
        %v3293 = vand.u32 2147483647, %v3156
        %vm3294 = vcmp.eq.f32.partialorder %v3293, 8.507059e+37
        %v3295 = vand.u32 %v3156, 2147483648
        %v3296 = vor.u32 1.1754944e-38, %v3295
        %v3297 = vsel %vm3294, %v3296, %v3292
        %v3298 = vmul.f32 1.0, %v3297
        %v3299 = vrcp.pop %v3157
        %v3300 = vmul.f32 %v3157, %v3299
        %v3301 = vsub.f32 1.0, %v3300
        %v3302 = vmul.f32 %v3299, %v3301
        %v3303 = vadd.f32 %v3299, %v3302
        %vm3304 = vweird.f32 %v3157
        %vm3305 = vweird.f32 %v3299
        %vm3306 = vmor %vm3304, %vm3305
        %v3307 = vsel %vm3306, %v3299, %v3303
        %v3308 = vand.u32 2147483647, %v3157
        %vm3309 = vcmp.eq.f32.partialorder %v3308, 8.507059e+37
        %v3310 = vand.u32 %v3157, 2147483648
        %v3311 = vor.u32 1.1754944e-38, %v3310
        %v3312 = vsel %vm3309, %v3311, %v3307
        %v3313 = vmul.f32 1.0, %v3312
        %v3314 = vrcp.pop %v3158
        %v3315 = vmul.f32 %v3158, %v3314
        %v3316 = vsub.f32 1.0, %v3315
        %v3317 = vmul.f32 %v3314, %v3316
        %v3318 = vadd.f32 %v3314, %v3317
        %vm3319 = vweird.f32 %v3158
        %vm3320 = vweird.f32 %v3314
        %vm3321 = vmor %vm3319, %vm3320
        %v3322 = vsel %vm3321, %v3314, %v3318
        %v3323 = vand.u32 2147483647, %v3158
        %vm3324 = vcmp.eq.f32.partialorder %v3323, 8.507059e+37
        %v3325 = vand.u32 %v3158, 2147483648
        %v3326 = vor.u32 1.1754944e-38, %v3325
        %v3327 = vsel %vm3324, %v3326, %v3322
        %v3328 = vmul.f32 1.0, %v3327
        %v3329 = vrcp.pop %v3159
        %v3330 = vmul.f32 %v3159, %v3329
        %v3331 = vsub.f32 1.0, %v3330
        %v3332 = vmul.f32 %v3329, %v3331
        %v3333 = vadd.f32 %v3329, %v3332
        %vm3334 = vweird.f32 %v3159
        %vm3335 = vweird.f32 %v3329
        %vm3336 = vmor %vm3334, %vm3335
        %v3337 = vsel %vm3336, %v3329, %v3333
        %v3338 = vand.u32 2147483647, %v3159
        %vm3339 = vcmp.eq.f32.partialorder %v3338, 8.507059e+37
        %v3340 = vand.u32 %v3159, 2147483648
        %v3341 = vor.u32 1.1754944e-38, %v3340
        %v3342 = vsel %vm3339, %v3341, %v3337
        %v3343 = vmul.f32 1.0, %v3342
        %v3344 = vrcp.pop %v3160
        %v3345 = vmul.f32 %v3160, %v3344
        %v3346 = vsub.f32 1.0, %v3345
        %v3347 = vmul.f32 %v3344, %v3346
        %v3348 = vadd.f32 %v3344, %v3347
        %vm3349 = vweird.f32 %v3160
        %vm3350 = vweird.f32 %v3344
        %vm3351 = vmor %vm3349, %vm3350
        %v3352 = vsel %vm3351, %v3344, %v3348
        %v3353 = vand.u32 2147483647, %v3160
        %vm3354 = vcmp.eq.f32.partialorder %v3353, 8.507059e+37
        %v3355 = vand.u32 %v3160, 2147483648
        %v3356 = vor.u32 1.1754944e-38, %v3355
        %v3357 = vsel %vm3354, %v3356, %v3352
        %v3358 = vmul.f32 1.0, %v3357
        %v3359 = vrcp.pop %v3161
        %v3360 = vmul.f32 %v3161, %v3359
        %v3361 = vsub.f32 1.0, %v3360
        %v3362 = vmul.f32 %v3359, %v3361
        %v3363 = vadd.f32 %v3359, %v3362
        %vm3364 = vweird.f32 %v3161
        %vm3365 = vweird.f32 %v3359
        %vm3366 = vmor %vm3364, %vm3365
        %v3367 = vsel %vm3366, %v3359, %v3363
        %v3368 = vand.u32 2147483647, %v3161
        %vm3369 = vcmp.eq.f32.partialorder %v3368, 8.507059e+37
        %v3370 = vand.u32 %v3161, 2147483648
        %v3371 = vor.u32 1.1754944e-38, %v3370
        %v3372 = vsel %vm3369, %v3371, %v3367
        %v3373 = vmul.f32 1.0, %v3372
        %v3374 = vrcp.pop %v3162
        %v3375 = vmul.f32 %v3162, %v3374
        %v3376 = vsub.f32 1.0, %v3375
        %v3377 = vmul.f32 %v3374, %v3376
        %v3378 = vadd.f32 %v3374, %v3377
        %vm3379 = vweird.f32 %v3162
        %vm3380 = vweird.f32 %v3374
        %vm3381 = vmor %vm3379, %vm3380
        %v3382 = vsel %vm3381, %v3374, %v3378
        %v3383 = vand.u32 2147483647, %v3162
        %vm3384 = vcmp.eq.f32.partialorder %v3383, 8.507059e+37
        %v3385 = vand.u32 %v3162, 2147483648
        %v3386 = vor.u32 1.1754944e-38, %v3385
        %v3387 = vsel %vm3384, %v3386, %v3382
        %v3388 = vmul.f32 1.0, %v3387
        %v3389 = vrcp.pop %v3163
        %v3390 = vmul.f32 %v3163, %v3389
        %v3391 = vsub.f32 1.0, %v3390
        %v3392 = vmul.f32 %v3389, %v3391
        %v3393 = vadd.f32 %v3389, %v3392
        %vm3394 = vweird.f32 %v3163
        %vm3395 = vweird.f32 %v3389
        %vm3396 = vmor %vm3394, %vm3395
        %v3397 = vsel %vm3396, %v3389, %v3393
        %v3398 = vand.u32 2147483647, %v3163
        %vm3399 = vcmp.eq.f32.partialorder %v3398, 8.507059e+37
        %v3400 = vand.u32 %v3163, 2147483648
        %v3401 = vor.u32 1.1754944e-38, %v3400
        %v3402 = vsel %vm3399, %v3401, %v3397
        %v3403 = vmul.f32 1.0, %v3402
        %v3404 = vmul.f32 %v3084, %v3178
        %v3405 = vmul.f32 %v3085, %v3193
        %v3406 = vmul.f32 %v3086, %v3208
        %v3407 = vmul.f32 %v3087, %v3223
        %v3408 = vmul.f32 %v3088, %v3238
        %v3409 = vmul.f32 %v3089, %v3253
        %v3410 = vmul.f32 %v3090, %v3268
        %v3411 = vmul.f32 %v3091, %v3283
        %v3412 = vmul.f32 %v3092, %v3298
        %v3413 = vmul.f32 %v3093, %v3313
        %v3414 = vmul.f32 %v3094, %v3328
        %v3415 = vmul.f32 %v3095, %v3343
        %v3416 = vmul.f32 %v3096, %v3358
        %v3417 = vmul.f32 %v3097, %v3373
        %v3418 = vmul.f32 %v3098, %v3388
        %v3419 = vmul.f32 %v3099, %v3403
        %s3420 = scalar_lea.vmem %s183, 384 [#allocation2]
        %3421 = vst.msk [vmem:[%s3420] sm:$0xff] %vm1185, %v3404
        %3422 = vst.msk [vmem:[%s3420 + $0x8] sm:$0xff] %vm1185, %v3405
        %3423 = vst.msk [vmem:[%s3420 + $0x10] sm:$0xff] %vm1185, %v3406
        %3424 = vst.msk [vmem:[%s3420 + $0x18] sm:$0xff] %vm1185, %v3407
        %3425 = vst.msk [vmem:[%s3420 + $0x20] sm:$0xff] %vm1185, %v3408
        %3426 = vst.msk [vmem:[%s3420 + $0x28] sm:$0xff] %vm1185, %v3409
        %3427 = vst.msk [vmem:[%s3420 + $0x30] sm:$0xff] %vm1185, %v3410
        %3428 = vst.msk [vmem:[%s3420 + $0x38] sm:$0xff] %vm1185, %v3411
        %3429 = vst.msk [vmem:[%s3420 + $0x40] sm:$0xff] %vm1185, %v3412
        %3430 = vst.msk [vmem:[%s3420 + $0x48] sm:$0xff] %vm1185, %v3413
        %3431 = vst.msk [vmem:[%s3420 + $0x50] sm:$0xff] %vm1185, %v3414
        %3432 = vst.msk [vmem:[%s3420 + $0x58] sm:$0xff] %vm1185, %v3415
        %3433 = vst.msk [vmem:[%s3420 + $0x60] sm:$0xff] %vm1185, %v3416
        %3434 = vst.msk [vmem:[%s3420 + $0x68] sm:$0xff] %vm1185, %v3417
        %3435 = vst.msk [vmem:[%s3420 + $0x70] sm:$0xff] %vm1185, %v3418
        %3436 = vst.msk [vmem:[%s3420 + $0x78] sm:$0xff] %vm1185, %v3419
        %s3437 = sand.u32 %s106, 1
        %s3438 = sand.u32 %s106, 1
        %s3439 = smul.addr %s3438, 512
        %s3440 = scalar_lea.vmem [#allocation2], %s3439
        // Predicated region
        $region33: #{tpu_custom_call.1} parent=31 // pred_check
          %p3441 = pneg %p116
        $region34: #{tpu_custom_call.1} parent=31 // pred_check_branch
          %3443 = sbr.rel (%p3441) target = $region36
        $region35: #{tpu_custom_call.1} parent=31 // pred_region
          %s3444 = smul.u32 16, %s19
          %s3445 = smul.addr %s18, 128
          %s3446 = sadd.s32 %s3444, %s3445
          %s3447 = smul.addr %s3446, 8
          %s3448 = scalar_lea.vmem %s3, %s3447
          // Predicated region
          $region37: #{tpu_custom_call.1} parent=35 // pred_check
            _
          $region38: #{tpu_custom_call.1} parent=35 // pred_check_branch
            %3450 = sbr.rel (0) target = $region40
          $region39: #{tpu_custom_call.1} parent=35 // pred_region
            // Predicated region
            $region41: #{tpu_custom_call.1} parent=39 // pred_check
              _
            $region42: #{tpu_custom_call.1} parent=39 // pred_check_branch
              %3452 = sbr.rel (0) target = $region44
            $region43: #{tpu_custom_call.1} parent=39 // pred_region
              // Predicated region
              $region56: #{tpu_custom_call.1} parent=43 // pred_check
                _
              $region57: #{tpu_custom_call.1} parent=43 // pred_check_branch
                %3594 = sbr.rel (0) target = $region59
              $region58: #{tpu_custom_call.1} parent=43 // pred_region
                loop: start=0, step=1, limit=1
                $region60: #{tpu_custom_call.1} parent=58 // loop_pre_header
                  _
                $region61: #{tpu_custom_call.1} parent=58 // loop_header
                  %s3596 = sphi 0, %s3600
                  %p3597 = scmp.ge.s32.totalorder %s3596, 1
                  %s3601 = sphi %s3440, %s3440
                  %s3602 = sphi %s3448, %s3448
                $region62: #{tpu_custom_call.1} parent=58 // loop_header_branch
                  %3599 = sbr.rel (%p3597) target = $region66
                $region63: #{tpu_custom_call.1} parent=58 // loop_body
                  %v3603 = vld [vmem:[%s3601] sm:$0xff]
                  %3604 = vst [vmem:[%s3602] sm:$0xff] %v3603
                  %v3605 = vld [vmem:[%s3601 + $0x8] sm:$0xff]
                  %3606 = vst [vmem:[%s3602 + $0x8] sm:$0xff] %v3605
                  %v3607 = vld [vmem:[%s3601 + $0x10] sm:$0xff]
                  %3608 = vst [vmem:[%s3602 + $0x10] sm:$0xff] %v3607
                  %v3609 = vld [vmem:[%s3601 + $0x18] sm:$0xff]
                  %3610 = vst [vmem:[%s3602 + $0x18] sm:$0xff] %v3609
                  %v3611 = vld [vmem:[%s3601 + $0x20] sm:$0xff]
                  %3612 = vst [vmem:[%s3602 + $0x20] sm:$0xff] %v3611
                  %v3613 = vld [vmem:[%s3601 + $0x28] sm:$0xff]
                  %3614 = vst [vmem:[%s3602 + $0x28] sm:$0xff] %v3613
                  %v3615 = vld [vmem:[%s3601 + $0x30] sm:$0xff]
                  %3616 = vst [vmem:[%s3602 + $0x30] sm:$0xff] %v3615
                  %v3617 = vld [vmem:[%s3601 + $0x38] sm:$0xff]
                  %3618 = vst [vmem:[%s3602 + $0x38] sm:$0xff] %v3617
                  %v3619 = vld [vmem:[%s3601 + $0x40] sm:$0xff]
                  %3620 = vst [vmem:[%s3602 + $0x40] sm:$0xff] %v3619
                  %v3621 = vld [vmem:[%s3601 + $0x48] sm:$0xff]
                  %3622 = vst [vmem:[%s3602 + $0x48] sm:$0xff] %v3621
                  %v3623 = vld [vmem:[%s3601 + $0x50] sm:$0xff]
                  %3624 = vst [vmem:[%s3602 + $0x50] sm:$0xff] %v3623
                  %v3625 = vld [vmem:[%s3601 + $0x58] sm:$0xff]
                  %3626 = vst [vmem:[%s3602 + $0x58] sm:$0xff] %v3625
                  %v3627 = vld [vmem:[%s3601 + $0x60] sm:$0xff]
                  %3628 = vst [vmem:[%s3602 + $0x60] sm:$0xff] %v3627
                  %v3629 = vld [vmem:[%s3601 + $0x68] sm:$0xff]
                  %3630 = vst [vmem:[%s3602 + $0x68] sm:$0xff] %v3629
                  %v3631 = vld [vmem:[%s3601 + $0x70] sm:$0xff]
                  %3632 = vst [vmem:[%s3602 + $0x70] sm:$0xff] %v3631
                  %v3633 = vld [vmem:[%s3601 + $0x78] sm:$0xff]
                  %3634 = vst [vmem:[%s3602 + $0x78] sm:$0xff] %v3633
                  %v3635 = vld [vmem:[%s3601 + $0x80] sm:$0xff]
                  %3636 = vst [vmem:[%s3602 + $0x100] sm:$0xff] %v3635
                  %v3637 = vld [vmem:[%s3601 + $0x88] sm:$0xff]
                  %3638 = vst [vmem:[%s3602 + $0x108] sm:$0xff] %v3637
                  %v3639 = vld [vmem:[%s3601 + $0x90] sm:$0xff]
                  %3640 = vst [vmem:[%s3602 + $0x110] sm:$0xff] %v3639
                  %v3641 = vld [vmem:[%s3601 + $0x98] sm:$0xff]
                  %3642 = vst [vmem:[%s3602 + $0x118] sm:$0xff] %v3641
                  %v3643 = vld [vmem:[%s3601 + $0xa0] sm:$0xff]
                  %3644 = vst [vmem:[%s3602 + $0x120] sm:$0xff] %v3643
                  %v3645 = vld [vmem:[%s3601 + $0xa8] sm:$0xff]
                  %3646 = vst [vmem:[%s3602 + $0x128] sm:$0xff] %v3645
                  %v3647 = vld [vmem:[%s3601 + $0xb0] sm:$0xff]
                  %3648 = vst [vmem:[%s3602 + $0x130] sm:$0xff] %v3647
                  %v3649 = vld [vmem:[%s3601 + $0xb8] sm:$0xff]
                  %3650 = vst [vmem:[%s3602 + $0x138] sm:$0xff] %v3649
                  %v3651 = vld [vmem:[%s3601 + $0xc0] sm:$0xff]
                  %3652 = vst [vmem:[%s3602 + $0x140] sm:$0xff] %v3651
                  %v3653 = vld [vmem:[%s3601 + $0xc8] sm:$0xff]
                  %3654 = vst [vmem:[%s3602 + $0x148] sm:$0xff] %v3653
                  %v3655 = vld [vmem:[%s3601 + $0xd0] sm:$0xff]
                  %3656 = vst [vmem:[%s3602 + $0x150] sm:$0xff] %v3655
                  %v3657 = vld [vmem:[%s3601 + $0xd8] sm:$0xff]
                  %3658 = vst [vmem:[%s3602 + $0x158] sm:$0xff] %v3657
                  %v3659 = vld [vmem:[%s3601 + $0xe0] sm:$0xff]
                  %3660 = vst [vmem:[%s3602 + $0x160] sm:$0xff] %v3659
                  %v3661 = vld [vmem:[%s3601 + $0xe8] sm:$0xff]
                  %3662 = vst [vmem:[%s3602 + $0x168] sm:$0xff] %v3661
                  %v3663 = vld [vmem:[%s3601 + $0xf0] sm:$0xff]
                  %3664 = vst [vmem:[%s3602 + $0x170] sm:$0xff] %v3663
                  %v3665 = vld [vmem:[%s3601 + $0xf8] sm:$0xff]
                  %3666 = vst [vmem:[%s3602 + $0x178] sm:$0xff] %v3665
                  %v3667 = vld [vmem:[%s3601 + $0x100] sm:$0xff]
                  %3668 = vst [vmem:[%s3602 + $0x200] sm:$0xff] %v3667
                  %v3669 = vld [vmem:[%s3601 + $0x108] sm:$0xff]
                  %3670 = vst [vmem:[%s3602 + $0x208] sm:$0xff] %v3669
                  %v3671 = vld [vmem:[%s3601 + $0x110] sm:$0xff]
                  %3672 = vst [vmem:[%s3602 + $0x210] sm:$0xff] %v3671
                  %v3673 = vld [vmem:[%s3601 + $0x118] sm:$0xff]
                  %3674 = vst [vmem:[%s3602 + $0x218] sm:$0xff] %v3673
                  %v3675 = vld [vmem:[%s3601 + $0x120] sm:$0xff]
                  %3676 = vst [vmem:[%s3602 + $0x220] sm:$0xff] %v3675
                  %v3677 = vld [vmem:[%s3601 + $0x128] sm:$0xff]
                  %3678 = vst [vmem:[%s3602 + $0x228] sm:$0xff] %v3677
                  %v3679 = vld [vmem:[%s3601 + $0x130] sm:$0xff]
                  %3680 = vst [vmem:[%s3602 + $0x230] sm:$0xff] %v3679
                  %v3681 = vld [vmem:[%s3601 + $0x138] sm:$0xff]
                  %3682 = vst [vmem:[%s3602 + $0x238] sm:$0xff] %v3681
                  %v3683 = vld [vmem:[%s3601 + $0x140] sm:$0xff]
                  %3684 = vst [vmem:[%s3602 + $0x240] sm:$0xff] %v3683
                  %v3685 = vld [vmem:[%s3601 + $0x148] sm:$0xff]
                  %3686 = vst [vmem:[%s3602 + $0x248] sm:$0xff] %v3685
                  %v3687 = vld [vmem:[%s3601 + $0x150] sm:$0xff]
                  %3688 = vst [vmem:[%s3602 + $0x250] sm:$0xff] %v3687
                  %v3689 = vld [vmem:[%s3601 + $0x158] sm:$0xff]
                  %3690 = vst [vmem:[%s3602 + $0x258] sm:$0xff] %v3689
                  %v3691 = vld [vmem:[%s3601 + $0x160] sm:$0xff]
                  %3692 = vst [vmem:[%s3602 + $0x260] sm:$0xff] %v3691
                  %v3693 = vld [vmem:[%s3601 + $0x168] sm:$0xff]
                  %3694 = vst [vmem:[%s3602 + $0x268] sm:$0xff] %v3693
                  %v3695 = vld [vmem:[%s3601 + $0x170] sm:$0xff]
                  %3696 = vst [vmem:[%s3602 + $0x270] sm:$0xff] %v3695
                  %v3697 = vld [vmem:[%s3601 + $0x178] sm:$0xff]
                  %3698 = vst [vmem:[%s3602 + $0x278] sm:$0xff] %v3697
                  %v3699 = vld [vmem:[%s3601 + $0x180] sm:$0xff]
                  %3700 = vst [vmem:[%s3602 + $0x300] sm:$0xff] %v3699
                  %v3701 = vld [vmem:[%s3601 + $0x188] sm:$0xff]
                  %3702 = vst [vmem:[%s3602 + $0x308] sm:$0xff] %v3701
                  %v3703 = vld [vmem:[%s3601 + $0x190] sm:$0xff]
                  %3704 = vst [vmem:[%s3602 + $0x310] sm:$0xff] %v3703
                  %v3705 = vld [vmem:[%s3601 + $0x198] sm:$0xff]
                  %3706 = vst [vmem:[%s3602 + $0x318] sm:$0xff] %v3705
                  %v3707 = vld [vmem:[%s3601 + $0x1a0] sm:$0xff]
                  %3708 = vst [vmem:[%s3602 + $0x320] sm:$0xff] %v3707
                  %v3709 = vld [vmem:[%s3601 + $0x1a8] sm:$0xff]
                  %3710 = vst [vmem:[%s3602 + $0x328] sm:$0xff] %v3709
                  %v3711 = vld [vmem:[%s3601 + $0x1b0] sm:$0xff]
                  %3712 = vst [vmem:[%s3602 + $0x330] sm:$0xff] %v3711
                  %v3713 = vld [vmem:[%s3601 + $0x1b8] sm:$0xff]
                  %3714 = vst [vmem:[%s3602 + $0x338] sm:$0xff] %v3713
                  %v3715 = vld [vmem:[%s3601 + $0x1c0] sm:$0xff]
                  %3716 = vst [vmem:[%s3602 + $0x340] sm:$0xff] %v3715
                  %v3717 = vld [vmem:[%s3601 + $0x1c8] sm:$0xff]
                  %3718 = vst [vmem:[%s3602 + $0x348] sm:$0xff] %v3717
                  %v3719 = vld [vmem:[%s3601 + $0x1d0] sm:$0xff]
                  %3720 = vst [vmem:[%s3602 + $0x350] sm:$0xff] %v3719
                  %v3721 = vld [vmem:[%s3601 + $0x1d8] sm:$0xff]
                  %3722 = vst [vmem:[%s3602 + $0x358] sm:$0xff] %v3721
                  %v3723 = vld [vmem:[%s3601 + $0x1e0] sm:$0xff]
                  %3724 = vst [vmem:[%s3602 + $0x360] sm:$0xff] %v3723
                  %v3725 = vld [vmem:[%s3601 + $0x1e8] sm:$0xff]
                  %3726 = vst [vmem:[%s3602 + $0x368] sm:$0xff] %v3725
                  %v3727 = vld [vmem:[%s3601 + $0x1f0] sm:$0xff]
                  %3728 = vst [vmem:[%s3602 + $0x370] sm:$0xff] %v3727
                  %v3729 = vld [vmem:[%s3601 + $0x1f8] sm:$0xff]
                  %3730 = vst [vmem:[%s3602 + $0x378] sm:$0xff] %v3729
                $region64: #{tpu_custom_call.1} parent=58 // loop_footer
                  %s3600 = sadd.s32 1, %s3596
                $region65: #{tpu_custom_call.1} parent=58 // loop_footer_branch
                  %3595 = sbr.rel target = $region61
                $region66: #{tpu_custom_call.1} parent=58 // loop_exit
                  _
              $region59: #{tpu_custom_call.1} parent=43 // pred_fallthru
                _
              // Predicated region
              $region67: #{tpu_custom_call.1} parent=43 // pred_check
                _
              $region68: #{tpu_custom_call.1} parent=43 // pred_check_branch
                %3732 = sbr.rel target = $region70
              $region69: #{tpu_custom_call.1} parent=43 // pred_region
                _
              $region70: #{tpu_custom_call.1} parent=43 // pred_fallthru
                _
            $region44: #{tpu_custom_call.1} parent=39 // pred_fallthru
              _
            // Predicated region
            $region45: #{tpu_custom_call.1} parent=39 // pred_check
              _
            $region46: #{tpu_custom_call.1} parent=39 // pred_check_branch
              %3454 = sbr.rel target = $region48
            $region47: #{tpu_custom_call.1} parent=39 // pred_region
              %s3456 = ssub.s32 256, 1
              loop: start=0, step=1, limit=1
              $region49: #{tpu_custom_call.1} parent=47 // loop_pre_header
                _
              $region50: #{tpu_custom_call.1} parent=47 // loop_header
                %s3458 = sphi 0, %s3462
                %p3459 = scmp.ge.s32.totalorder %s3458, 1
                %s3463 = sphi %s3440, %s3440
                %s3464 = sphi %s3448, %s3448
              $region51: #{tpu_custom_call.1} parent=47 // loop_header_branch
                %3461 = sbr.rel (%p3459) target = $region55
              $region52: #{tpu_custom_call.1} parent=47 // loop_body
                %v3465 = vld [vmem:[%s3463] sm:%s3456]
                %3466 = vst [vmem:[%s3464] sm:%s3456] %v3465
                %v3467 = vld [vmem:[%s3463 + $0x8] sm:%s3456]
                %3468 = vst [vmem:[%s3464 + $0x8] sm:%s3456] %v3467
                %v3469 = vld [vmem:[%s3463 + $0x10] sm:%s3456]
                %3470 = vst [vmem:[%s3464 + $0x10] sm:%s3456] %v3469
                %v3471 = vld [vmem:[%s3463 + $0x18] sm:%s3456]
                %3472 = vst [vmem:[%s3464 + $0x18] sm:%s3456] %v3471
                %v3473 = vld [vmem:[%s3463 + $0x20] sm:%s3456]
                %3474 = vst [vmem:[%s3464 + $0x20] sm:%s3456] %v3473
                %v3475 = vld [vmem:[%s3463 + $0x28] sm:%s3456]
                %3476 = vst [vmem:[%s3464 + $0x28] sm:%s3456] %v3475
                %v3477 = vld [vmem:[%s3463 + $0x30] sm:%s3456]
                %3478 = vst [vmem:[%s3464 + $0x30] sm:%s3456] %v3477
                %v3479 = vld [vmem:[%s3463 + $0x38] sm:%s3456]
                %3480 = vst [vmem:[%s3464 + $0x38] sm:%s3456] %v3479
                %v3481 = vld [vmem:[%s3463 + $0x40] sm:%s3456]
                %3482 = vst [vmem:[%s3464 + $0x40] sm:%s3456] %v3481
                %v3483 = vld [vmem:[%s3463 + $0x48] sm:%s3456]
                %3484 = vst [vmem:[%s3464 + $0x48] sm:%s3456] %v3483
                %v3485 = vld [vmem:[%s3463 + $0x50] sm:%s3456]
                %3486 = vst [vmem:[%s3464 + $0x50] sm:%s3456] %v3485
                %v3487 = vld [vmem:[%s3463 + $0x58] sm:%s3456]
                %3488 = vst [vmem:[%s3464 + $0x58] sm:%s3456] %v3487
                %v3489 = vld [vmem:[%s3463 + $0x60] sm:%s3456]
                %3490 = vst [vmem:[%s3464 + $0x60] sm:%s3456] %v3489
                %v3491 = vld [vmem:[%s3463 + $0x68] sm:%s3456]
                %3492 = vst [vmem:[%s3464 + $0x68] sm:%s3456] %v3491
                %v3493 = vld [vmem:[%s3463 + $0x70] sm:%s3456]
                %3494 = vst [vmem:[%s3464 + $0x70] sm:%s3456] %v3493
                %v3495 = vld [vmem:[%s3463 + $0x78] sm:%s3456]
                %3496 = vst [vmem:[%s3464 + $0x78] sm:%s3456] %v3495
                %v3497 = vld [vmem:[%s3463 + $0x80] sm:%s3456]
                %3498 = vst [vmem:[%s3464 + $0x100] sm:%s3456] %v3497
                %v3499 = vld [vmem:[%s3463 + $0x88] sm:%s3456]
                %3500 = vst [vmem:[%s3464 + $0x108] sm:%s3456] %v3499
                %v3501 = vld [vmem:[%s3463 + $0x90] sm:%s3456]
                %3502 = vst [vmem:[%s3464 + $0x110] sm:%s3456] %v3501
                %v3503 = vld [vmem:[%s3463 + $0x98] sm:%s3456]
                %3504 = vst [vmem:[%s3464 + $0x118] sm:%s3456] %v3503
                %v3505 = vld [vmem:[%s3463 + $0xa0] sm:%s3456]
                %3506 = vst [vmem:[%s3464 + $0x120] sm:%s3456] %v3505
                %v3507 = vld [vmem:[%s3463 + $0xa8] sm:%s3456]
                %3508 = vst [vmem:[%s3464 + $0x128] sm:%s3456] %v3507
                %v3509 = vld [vmem:[%s3463 + $0xb0] sm:%s3456]
                %3510 = vst [vmem:[%s3464 + $0x130] sm:%s3456] %v3509
                %v3511 = vld [vmem:[%s3463 + $0xb8] sm:%s3456]
                %3512 = vst [vmem:[%s3464 + $0x138] sm:%s3456] %v3511
                %v3513 = vld [vmem:[%s3463 + $0xc0] sm:%s3456]
                %3514 = vst [vmem:[%s3464 + $0x140] sm:%s3456] %v3513
                %v3515 = vld [vmem:[%s3463 + $0xc8] sm:%s3456]
                %3516 = vst [vmem:[%s3464 + $0x148] sm:%s3456] %v3515
                %v3517 = vld [vmem:[%s3463 + $0xd0] sm:%s3456]
                %3518 = vst [vmem:[%s3464 + $0x150] sm:%s3456] %v3517
                %v3519 = vld [vmem:[%s3463 + $0xd8] sm:%s3456]
                %3520 = vst [vmem:[%s3464 + $0x158] sm:%s3456] %v3519
                %v3521 = vld [vmem:[%s3463 + $0xe0] sm:%s3456]
                %3522 = vst [vmem:[%s3464 + $0x160] sm:%s3456] %v3521
                %v3523 = vld [vmem:[%s3463 + $0xe8] sm:%s3456]
                %3524 = vst [vmem:[%s3464 + $0x168] sm:%s3456] %v3523
                %v3525 = vld [vmem:[%s3463 + $0xf0] sm:%s3456]
                %3526 = vst [vmem:[%s3464 + $0x170] sm:%s3456] %v3525
                %v3527 = vld [vmem:[%s3463 + $0xf8] sm:%s3456]
                %3528 = vst [vmem:[%s3464 + $0x178] sm:%s3456] %v3527
                %v3529 = vld [vmem:[%s3463 + $0x100] sm:%s3456]
                %3530 = vst [vmem:[%s3464 + $0x200] sm:%s3456] %v3529
                %v3531 = vld [vmem:[%s3463 + $0x108] sm:%s3456]
                %3532 = vst [vmem:[%s3464 + $0x208] sm:%s3456] %v3531
                %v3533 = vld [vmem:[%s3463 + $0x110] sm:%s3456]
                %3534 = vst [vmem:[%s3464 + $0x210] sm:%s3456] %v3533
                %v3535 = vld [vmem:[%s3463 + $0x118] sm:%s3456]
                %3536 = vst [vmem:[%s3464 + $0x218] sm:%s3456] %v3535
                %v3537 = vld [vmem:[%s3463 + $0x120] sm:%s3456]
                %3538 = vst [vmem:[%s3464 + $0x220] sm:%s3456] %v3537
                %v3539 = vld [vmem:[%s3463 + $0x128] sm:%s3456]
                %3540 = vst [vmem:[%s3464 + $0x228] sm:%s3456] %v3539
                %v3541 = vld [vmem:[%s3463 + $0x130] sm:%s3456]
                %3542 = vst [vmem:[%s3464 + $0x230] sm:%s3456] %v3541
                %v3543 = vld [vmem:[%s3463 + $0x138] sm:%s3456]
                %3544 = vst [vmem:[%s3464 + $0x238] sm:%s3456] %v3543
                %v3545 = vld [vmem:[%s3463 + $0x140] sm:%s3456]
                %3546 = vst [vmem:[%s3464 + $0x240] sm:%s3456] %v3545
                %v3547 = vld [vmem:[%s3463 + $0x148] sm:%s3456]
                %3548 = vst [vmem:[%s3464 + $0x248] sm:%s3456] %v3547
                %v3549 = vld [vmem:[%s3463 + $0x150] sm:%s3456]
                %3550 = vst [vmem:[%s3464 + $0x250] sm:%s3456] %v3549
                %v3551 = vld [vmem:[%s3463 + $0x158] sm:%s3456]
                %3552 = vst [vmem:[%s3464 + $0x258] sm:%s3456] %v3551
                %v3553 = vld [vmem:[%s3463 + $0x160] sm:%s3456]
                %3554 = vst [vmem:[%s3464 + $0x260] sm:%s3456] %v3553
                %v3555 = vld [vmem:[%s3463 + $0x168] sm:%s3456]
                %3556 = vst [vmem:[%s3464 + $0x268] sm:%s3456] %v3555
                %v3557 = vld [vmem:[%s3463 + $0x170] sm:%s3456]
                %3558 = vst [vmem:[%s3464 + $0x270] sm:%s3456] %v3557
                %v3559 = vld [vmem:[%s3463 + $0x178] sm:%s3456]
                %3560 = vst [vmem:[%s3464 + $0x278] sm:%s3456] %v3559
                %v3561 = vld [vmem:[%s3463 + $0x180] sm:%s3456]
                %3562 = vst [vmem:[%s3464 + $0x300] sm:%s3456] %v3561
                %v3563 = vld [vmem:[%s3463 + $0x188] sm:%s3456]
                %3564 = vst [vmem:[%s3464 + $0x308] sm:%s3456] %v3563
                %v3565 = vld [vmem:[%s3463 + $0x190] sm:%s3456]
                %3566 = vst [vmem:[%s3464 + $0x310] sm:%s3456] %v3565
                %v3567 = vld [vmem:[%s3463 + $0x198] sm:%s3456]
                %3568 = vst [vmem:[%s3464 + $0x318] sm:%s3456] %v3567
                %v3569 = vld [vmem:[%s3463 + $0x1a0] sm:%s3456]
                %3570 = vst [vmem:[%s3464 + $0x320] sm:%s3456] %v3569
                %v3571 = vld [vmem:[%s3463 + $0x1a8] sm:%s3456]
                %3572 = vst [vmem:[%s3464 + $0x328] sm:%s3456] %v3571
                %v3573 = vld [vmem:[%s3463 + $0x1b0] sm:%s3456]
                %3574 = vst [vmem:[%s3464 + $0x330] sm:%s3456] %v3573
                %v3575 = vld [vmem:[%s3463 + $0x1b8] sm:%s3456]
                %3576 = vst [vmem:[%s3464 + $0x338] sm:%s3456] %v3575
                %v3577 = vld [vmem:[%s3463 + $0x1c0] sm:%s3456]
                %3578 = vst [vmem:[%s3464 + $0x340] sm:%s3456] %v3577
                %v3579 = vld [vmem:[%s3463 + $0x1c8] sm:%s3456]
                %3580 = vst [vmem:[%s3464 + $0x348] sm:%s3456] %v3579
                %v3581 = vld [vmem:[%s3463 + $0x1d0] sm:%s3456]
                %3582 = vst [vmem:[%s3464 + $0x350] sm:%s3456] %v3581
                %v3583 = vld [vmem:[%s3463 + $0x1d8] sm:%s3456]
                %3584 = vst [vmem:[%s3464 + $0x358] sm:%s3456] %v3583
                %v3585 = vld [vmem:[%s3463 + $0x1e0] sm:%s3456]
                %3586 = vst [vmem:[%s3464 + $0x360] sm:%s3456] %v3585
                %v3587 = vld [vmem:[%s3463 + $0x1e8] sm:%s3456]
                %3588 = vst [vmem:[%s3464 + $0x368] sm:%s3456] %v3587
                %v3589 = vld [vmem:[%s3463 + $0x1f0] sm:%s3456]
                %3590 = vst [vmem:[%s3464 + $0x370] sm:%s3456] %v3589
                %v3591 = vld [vmem:[%s3463 + $0x1f8] sm:%s3456]
                %3592 = vst [vmem:[%s3464 + $0x378] sm:%s3456] %v3591
              $region53: #{tpu_custom_call.1} parent=47 // loop_footer
                %s3462 = sadd.s32 1, %s3458
              $region54: #{tpu_custom_call.1} parent=47 // loop_footer_branch
                %3457 = sbr.rel target = $region50
              $region55: #{tpu_custom_call.1} parent=47 // loop_exit
                _
            $region48: #{tpu_custom_call.1} parent=39 // pred_fallthru
              _
          $region40: #{tpu_custom_call.1} parent=35 // pred_fallthru
            _
          %3733 = vnop
        $region36: #{tpu_custom_call.1} parent=31 // pred_fallthru
          _
      $region32: #{tpu_custom_call.1} parent=5 // pred_fallthru
        _
      %p3734 = scmp.le.s32.totalorder 2, %s9
      // Predicated region
      $region71: #{tpu_custom_call.1} parent=5 // pred_check
        %p3735 = pneg %p3734
      $region72: #{tpu_custom_call.1} parent=5 // pred_check_branch
        %3737 = sbr.rel (%p3735) target = $region74
      $region73: #{tpu_custom_call.1} parent=5 // pred_region
        %s3738 = ssub.s32 %s9, 2
        // Predicated region
        $region75: #{tpu_custom_call.1} parent=73 // pred_check
          %p3739 = pneg %p122
        $region76: #{tpu_custom_call.1} parent=73 // pred_check_branch
          %3741 = sbr.rel (%p3739) target = $region78
        $region77: #{tpu_custom_call.1} parent=73 // pred_region
          %s3742 = sand.u32 %s107, 1
          %s3743 = sand.u32 %s107, 1
          %s3744 = smul.addr %s3743, 512
          %s3745 = scalar_lea.vmem [#allocation2], %s3744
        $region78: #{tpu_custom_call.1} parent=73 // pred_fallthru
          _
      $region74: #{tpu_custom_call.1} parent=5 // pred_fallthru
        _
    $region6: #{tpu_custom_call.1} parent=1 // loop_footer
      %s13 = sadd.s32 1, %s9
    $region7: #{tpu_custom_call.1} parent=1 // loop_footer_branch
      %8 = sbr.rel target = $region3
    $region8: #{tpu_custom_call.1} parent=1 // loop_exit
      _

</llo_original>
